<compile_context>
chip_gen: v6e
topology: v6e:2x2x1
jax: 0.10.0
libtpu: 0.0.40
codegen_flags: <defaults>
</compile_context>

<pallas_src>
import jax
import jax.numpy as jnp
from jax.experimental import pallas as pl
from jax.experimental.pallas import tpu as pltpu

# ------------------------------- configuration -------------------------------
TB = 128                    # batch rows per grid block (fills sublanes, amortizes step overhead)
B_DEMO = 256                # demo batch (multiple of TB -> 2 grid steps, exercises the grid)
E = 32                      # embedding_size
MAX_STR_LEN = 16
ALPHABET = 8
L = MAX_STR_LEN * ALPHABET  # 128 = flattened conv length (lane dim)
C = 4                       # StringEmbedCNN n_channels
FLAT = (MAX_STR_LEN // 2) * ALPHABET * C    # 256 = flat_size
T = 8                       # max multitoken sequence length
V = 16                      # semantic vocab size
F = 2                       # number of fields
LN_EPS = 1e-5


# ------------------------------ fused Pallas kernel ---------------------------
def _blocker_fused_kernel(x_ref, ids_ref, nlen_ref, tlen_ref,
                          wconv_ref, wdense_ref, bdense_ref, vec_ref,
                          poolw_ref, gamma_ref, beta_ref, out_ref):
    # x_ref      (TB, L)   f32  VMEM : one-hot string, NCL input with singleton channel squeezed
    # ids_ref    (TB, T)   i32  VMEM : title token ids
    # nlen_ref   (TB, 1)   i32  VMEM : name sequence lengths
    # tlen_ref   (TB, 1)   i32  VMEM : title sequence lengths
    # wconv_ref  (C*3,)    f32  SMEM : Conv1d(in=1, out=C, k=3) weight, flattened
    # wdense_ref (C*L, E)  bf16 VMEM : dense weight, odd rows exactly zero (fuses max_pool1d)
    # bdense_ref (1, E)    f32  VMEM
    # vec_ref    (V, E)    f32  VMEM : SemanticEmbedNet vector table
    # poolw_ref  (F,)      f32  SMEM : EntityAvgPoolNet weights
    # gamma/beta (1, E)    f32  VMEM : LayerNorm affine
    # out_ref    (TB, E)   f32  VMEM
    x = x_ref[...]
    tb, l = x.shape

    # ---- StringEmbedCNN ("name"): Conv1d(k=3, pad=1) + ReLU + MaxPool1d(2) + Linear ----
    lane = jax.lax.broadcasted_iota(jnp.int32, (tb, l), 1)
    x_prev = jnp.where(lane == 0, 0.0, pltpu.roll(x, shift=1, axis=1))        # x[:, i-1], zero pad
    x_next = jnp.where(lane == l - 1, 0.0, pltpu.roll(x, shift=l - 1, axis=1))  # x[:, i+1], zero pad

    parts = []
    for c in range(C):                         # static channel loop; one fused matmul below
        w0 = wconv_ref[3 * c + 0]
        w1 = wconv_ref[3 * c + 1]
        w2 = wconv_ref[3 * c + 2]
        conv_c = jnp.maximum(w0 * x_prev + w1 * x + w2 * x_next, 0.0)         # Conv1d(pad=1)+ReLU
        # max_pool1d(kernel=2): valid pooled value sits on even lanes; odd lanes (incl. the
        # wrapped lane L-1) hit the guaranteed-zero odd rows of wdense_ref.
        pooled_c = jnp.maximum(conv_c, pltpu.roll(conv_c, shift=l - 1, axis=1))
        parts.append(pooled_c.astype(jnp.bfloat16))                           # bf16 only at MXU input
    pooled_all = jnp.concatenate(parts, axis=1)                               # (TB, C*L) bf16
    name_emb = jnp.dot(pooled_all, wdense_ref[...],
                       preferred_element_type=jnp.float32) + bdense_ref[...]  # (TB, E) f32

    # ---- MultitokenAvgEmbed(SemanticEmbedNet) ("title"): in-kernel gather + masked average ----
    ids = ids_ref[...]                                                        # (TB, T) i32
    tlen = tlen_ref[...]                                                      # (TB, 1) i32
    pos = jax.lax.broadcasted_iota(jnp.int32, (tb, T), 1)
    mask = (pos < tlen).astype(jnp.float32)                                   # (TB, T)
    masked_scores = mask * (1.0 / T)
    att_sums = jnp.maximum(jnp.sum(masked_scores, axis=1, keepdims=True), 1e-5)
    scores = masked_scores / att_sums                                         # exact (review note)
    # Score-weighted vocab histogram: one-hot select fused into a single where; 2-D tiles,
    # statically unrolled over T (T=8, V=16 -- trivial VPU work).
    vocab = jax.lax.broadcasted_iota(jnp.int32, (tb, V), 1)
    wv = jnp.zeros((tb, V), jnp.float32)
    for t in range(T):
        wv = wv + jnp.where(vocab == ids[:, t:t + 1], scores[:, t:t + 1], 0.0)
    title_emb = jnp.dot(wv, vec_ref[...], preferred_element_type=jnp.float32)  # (TB, E) f32

    # ---- FieldsEmbedNet masking + EntityAvgPoolNet (LayerNorm, weighted pool, L2 normalize) ----
    gamma = gamma_ref[...]
    beta = beta_ref[...]

    def layernorm(v):                                                         # per-row LN over E
        mean = jnp.mean(v, axis=-1, keepdims=True)
        cent = v - mean
        var = jnp.mean(cent * cent, axis=-1, keepdims=True)
        return cent * jax.lax.rsqrt(var + LN_EPS) * gamma + beta

    nmask = jnp.minimum(nlen_ref[...], 1).astype(jnp.float32)                 # (TB, 1) clamp(max=1)
    tmask = jnp.minimum(tlen, 1).astype(jnp.float32)                          # (TB, 1)
    pooled = (poolw_ref[0] * layernorm(name_emb * nmask)
              + poolw_ref[1] * layernorm(title_emb * tmask))                  # weighted field pool
    sumsq = jnp.sum(pooled * pooled, axis=1, keepdims=True)
    out_ref[...] = pooled * jax.lax.rsqrt(jnp.maximum(sumsq, 1e-24))          # F.normalize(dim=1)


# ------------------------------ Pallas wrapper --------------------------------
def blocker_net_forward(x_flat, title_ids, name_len, title_len, prep):
    """Hot path = exactly one pallas_call.  Inputs must already be prepared (see prepare_*)."""
    b = x_flat.shape[0]
    assert b % TB == 0, "pad the batch to a multiple of TB at data-prep time"
    n_blocks = b // TB
    return pl.pallas_call(
        _blocker_fused_kernel,
        out_shape=jax.ShapeDtypeStruct((b, E), jnp.float32),
        grid=(n_blocks,),
        in_specs=[
            # per-block activations (auto double-buffered at the default depth)
            pl.BlockSpec((TB, L), lambda i: (i, 0)),                          # x_flat
            pl.BlockSpec((TB, T), lambda i: (i, 0)),                          # title_ids
            pl.BlockSpec((TB, 1), lambda i: (i, 0)),                          # name_len
            pl.BlockSpec((TB, 1), lambda i: (i, 0)),                          # title_len
            # weights: constant index_map -> fetched once, VMEM/SMEM-resident across the grid
            pl.BlockSpec(memory_space=pltpu.MemorySpace.SMEM),                # w_conv (12,)
            pl.BlockSpec((C * L, E), lambda i: (0, 0)),                       # w_dense_exp (bf16)
            pl.BlockSpec((1, E), lambda i: (0, 0)),                           # b_dense
            pl.BlockSpec((V, E), lambda i: (0, 0)),                           # vectors
            pl.BlockSpec(memory_space=pltpu.MemorySpace.SMEM),                # pool_w (F,)
            pl.BlockSpec((1, E), lambda i: (0, 0)),                           # gamma
            pl.BlockSpec((1, E), lambda i: (0, 0)),                           # beta
        ],
        out_specs=pl.BlockSpec((TB, E), lambda i: (i, 0)),
        compiler_params=pltpu.CompilerParams(
            dimension_semantics=("parallel",)),      # required to use both v7x TensorCores
    )(x_flat, title_ids, name_len, title_len,
      prep["w_conv"], prep["w_dense_exp"], prep["b_dense"], prep["vectors"],
      prep["pool_w"], prep["gamma"], prep["beta"])


# ------------------------------ parameters (glue) ------------------------------
def init_params(key):
    k0, k1, k2, k3 = jax.random.split(key, 4)
    conv_bound = 1.0 / (1 * 3) ** 0.5                 # PyTorch Conv1d default init range
    w_conv = jax.random.uniform(k0, (C, 3), jnp.float32, -conv_bound, conv_bound)
    dense_bound = 1.0 / FLAT ** 0.5                   # PyTorch Linear default init range
    w_dense = jax.random.uniform(k1, (E, FLAT), jnp.float32, -dense_bound, dense_bound)
    b_dense = jax.random.uniform(k2, (E,), jnp.float32, -dense_bound, dense_bound)
    vectors = 0.1 * jax.random.normal(k3, (V, E), jnp.float32)   # SemanticEmbedNet vector_tensor
    pool_w = jnp.full((F,), 1.0 / F, jnp.float32)                # EntityAvgPoolNet.weights
    gamma = jnp.ones((E,), jnp.float32)                          # LayerNorm affine
    beta = jnp.zeros((E,), jnp.float32)
    return dict(w_conv=w_conv, w_dense=w_dense, b_dense=b_dense,
                vectors=vectors, pool_w=pool_w, gamma=gamma, beta=beta)


def expand_dense_weight(w_dense):
    # PyTorch flat index f = c*(L//2) + p (flatten of (B, C, L//2)); out = flat @ W.T.
    # Expand to (C*L, E): row c*L + 2p holds W[:, c*(L//2)+p]; odd rows are EXACTLY zero --
    # this invariant fuses the max_pool1d "take even positions" compaction into the dense dot
    # and masks the wrapped odd-lane garbage from the in-kernel pooling roll.  Preserve it.
    wt = w_dense.T.reshape(C, L // 2, E)
    exp = jnp.zeros((C, L, E), jnp.float32).at[:, 0::2, :].set(wt)
    return exp.reshape(C * L, E)


def prepare_params(params):
    """Pre-materialize params in kernel-final shapes/dtypes (keeps the jitted forward to one op)."""
    return dict(
        w_conv=params["w_conv"].reshape(-1),                                  # (12,)  f32 SMEM
        w_dense_exp=expand_dense_weight(params["w_dense"]).astype(jnp.bfloat16),  # (512,32) bf16
        b_dense=params["b_dense"].reshape(1, E),                              # (1,32) f32
        vectors=params["vectors"],                                            # (16,32) f32
        pool_w=params["pool_w"],                                              # (2,)   f32 SMEM
        gamma=params["gamma"].reshape(1, E),
        beta=params["beta"].reshape(1, E),
    )


def prepare_inputs(name_onehot, name_len, title_ids, title_len):
    """Data-prep time reshapes/casts (kept out of the jitted forward)."""
    b = name_onehot.shape[0]
    return (name_onehot.reshape(b, L).astype(jnp.float32),
            title_ids.astype(jnp.int32),
            name_len.astype(jnp.int32).reshape(b, 1),
            title_len.astype(jnp.int32).reshape(b, 1))


# --------------------------- pure-JAX reference check --------------------------
def blocker_net_reference(params, name_onehot, name_len, title_ids, title_len):
    b = name_onehot.shape[0]
    xp = jnp.pad(name_onehot.reshape(b, L), ((0, 0), (1, 1)))
    conv = jnp.stack([params["w_conv"][c, 0] * xp[:, :-2]
                      + params["w_conv"][c, 1] * xp[:, 1:-1]
                      + params["w_conv"][c, 2] * xp[:, 2:] for c in range(C)], axis=1)
    conv = jnp.maximum(conv, 0.0)
    pooled = jnp.max(conv.reshape(b, C, L // 2, 2), axis=-1)
    flat = pooled.reshape(b, FLAT)
    # Mirror the kernel's MXU dtype on the dense dot (bf16 operands, f32 accumulation).
    name_emb = jnp.dot(flat.astype(jnp.bfloat16),
                       params["w_dense"].T.astype(jnp.bfloat16),
                       preferred_element_type=jnp.float32) + params["b_dense"]

    tok = jnp.take(params["vectors"], title_ids, axis=0)
    pos = jnp.arange(T)[None, :]
    mask = (pos < title_len[:, None]).astype(jnp.float32)
    masked = mask * (1.0 / T)
    sums = jnp.maximum(masked.sum(axis=1, keepdims=True), 1e-5)
    title_emb = (tok * (masked / sums)[:, :, None]).sum(axis=1)

    fields = jnp.stack([name_emb, title_emb], axis=1)
    fmask = jnp.minimum(jnp.stack([name_len, title_len], axis=1), 1).astype(jnp.float32)
    x = fields * fmask[:, :, None]
    mean = x.mean(axis=-1, keepdims=True)
    var = ((x - mean) ** 2).mean(axis=-1, keepdims=True)
    xn = (x - mean) / jnp.sqrt(var + LN_EPS)
    xn = xn * params["gamma"] + params["beta"]
    pooled_e = (xn * params["pool_w"][None, :, None]).sum(axis=1)
    nrm = jnp.sqrt((pooled_e ** 2).sum(axis=1, keepdims=True))
    return pooled_e / jnp.maximum(nrm, 1e-12)


if __name__ == "__main__":
    key = jax.random.PRNGKey(0)
    kp, ki1, ki2, ki3, ki4 = jax.random.split(key, 5)
    params = init_params(kp)
    prep = prepare_params(params)

    # Inputs: one-hot string tensor (StringNumericalizer style) + multitoken id tensor.
    char_ids = jax.random.randint(ki1, (B_DEMO, MAX_STR_LEN), 0, ALPHABET)
    name_onehot = jax.nn.one_hot(char_ids, ALPHABET, dtype=jnp.float32)       # (B, 16, 8)
    name_len = jax.random.randint(ki2, (B_DEMO,), 0, MAX_STR_LEN + 1)         # includes zeros
    title_ids = jax.random.randint(ki3, (B_DEMO, T), 0, V)                    # (B, 8)
    title_len = jax.random.randint(ki4, (B_DEMO,), 0, T + 1)                  # includes zeros

    x_flat, ids_i, nlen_i, tlen_i = prepare_inputs(name_onehot, name_len, title_ids, title_len)

    fwd = jax.jit(blocker_net_forward)
    out = jax.block_until_ready(fwd(x_flat, ids_i, nlen_i, tlen_i, prep))

    ref = blocker_net_reference(params, name_onehot, name_len, title_ids, title_len)
    assert out.shape == (B_DEMO, E)
    assert bool(jnp.allclose(out, ref, atol=1e-3, rtol=1e-3)), "mismatch vs pure-JAX reference"
    print("KERNEL_OK")
</pallas_src>

<mosaic_0001>
module attributes {stable_mosaic.version = 11 : i64} {
  func.func @_blocker_fused_kernel(%arg0: i32, %arg1: memref<128x128xf32, #tpu.memory_space<vmem>>, %arg2: memref<128x8xi32, #tpu.memory_space<vmem>>, %arg3: memref<128x1xi32, #tpu.memory_space<vmem>>, %arg4: memref<128x1xi32, #tpu.memory_space<vmem>>, %arg5: memref<12xf32, #tpu.memory_space<smem>>, %arg6: memref<512x32xbf16, #tpu.memory_space<vmem>>, %arg7: memref<1x32xf32, #tpu.memory_space<vmem>>, %arg8: memref<16x32xf32, #tpu.memory_space<vmem>>, %arg9: memref<2xf32, #tpu.memory_space<smem>>, %arg10: memref<1x32xf32, #tpu.memory_space<vmem>>, %arg11: memref<1x32xf32, #tpu.memory_space<vmem>>, %arg12: memref<128x32xf32, #tpu.memory_space<vmem>>) attributes {dimension_semantics = [#tpu.dimension_semantics<parallel>], iteration_bounds = array<i64: 2>, scalar_prefetch = 0 : i64, scratch_operands = 0 : i64, tpu.core_type = #tpu.core_type<tc>, window_params = [{transform_indices = @transform_0, window_bounds = array<i64: 128, 128>}, {transform_indices = @transform_1, window_bounds = array<i64: 128, 8>}, {transform_indices = @transform_2, window_bounds = array<i64: 128, 1>}, {transform_indices = @transform_3, window_bounds = array<i64: 128, 1>}, {transform_indices = @transform_4, window_bounds = array<i64: 12>}, {pipeline_mode = #tpu.pipeline_mode<synchronous>, transform_indices = @transform_5, window_bounds = array<i64: 512, 32>}, {pipeline_mode = #tpu.pipeline_mode<synchronous>, transform_indices = @transform_6, window_bounds = array<i64: 1, 32>}, {pipeline_mode = #tpu.pipeline_mode<synchronous>, transform_indices = @transform_7, window_bounds = array<i64: 16, 32>}, {transform_indices = @transform_8, window_bounds = array<i64: 2>}, {pipeline_mode = #tpu.pipeline_mode<synchronous>, transform_indices = @transform_9, window_bounds = array<i64: 1, 32>}, {pipeline_mode = #tpu.pipeline_mode<synchronous>, transform_indices = @transform_10, window_bounds = array<i64: 1, 32>}, {transform_indices = @transform_11, window_bounds = array<i64: 128, 32>}]} {
    %c0 = arith.constant 0 : index
    %c0_0 = arith.constant 0 : index
    %0 = vector.load %arg1[%c0, %c0_0] : memref<128x128xf32, #tpu.memory_space<vmem>>, vector<128x128xf32>
    %1 = tpu.iota {dimensions = array<i32: 1>} : vector<128x128xi32>
    %c0_i32 = arith.constant 0 : i32
    %2 = vector.broadcast %c0_i32 : i32 to vector<128x128xi32>
    %3 = arith.cmpi eq, %1, %2 : vector<128x128xi32>
    %c1_i32 = arith.constant 1 : i32
    %4 = tpu.dynamic_rotate %0 by %c1_i32 dim 1 : vector<128x128xf32>, i32 -> vector<128x128xf32>
    %cst = arith.constant 0.000000e+00 : f32
    %5 = vector.broadcast %cst : f32 to vector<128x128xf32>
    %6 = arith.select %3, %5, %4 : vector<128x128xi1>, vector<128x128xf32>
    %c127_i32 = arith.constant 127 : i32
    %7 = vector.broadcast %c127_i32 : i32 to vector<128x128xi32>
    %8 = arith.cmpi eq, %1, %7 : vector<128x128xi32>
    %c127_i32_1 = arith.constant 127 : i32
    %9 = tpu.dynamic_rotate %0 by %c127_i32_1 dim 1 : vector<128x128xf32>, i32 -> vector<128x128xf32>
    %cst_2 = arith.constant 0.000000e+00 : f32
    %10 = vector.broadcast %cst_2 : f32 to vector<128x128xf32>
    %11 = arith.select %8, %10, %9 : vector<128x128xi1>, vector<128x128xf32>
    %c0_3 = arith.constant 0 : index
    %12 = memref.load %arg5[%c0_3] : memref<12xf32, #tpu.memory_space<smem>>
    %c1 = arith.constant 1 : index
    %13 = memref.load %arg5[%c1] : memref<12xf32, #tpu.memory_space<smem>>
    %c2 = arith.constant 2 : index
    %14 = memref.load %arg5[%c2] : memref<12xf32, #tpu.memory_space<smem>>
    %15 = vector.broadcast %12 : f32 to vector<128x128xf32>
    %16 = arith.mulf %15, %6 : vector<128x128xf32>
    %17 = vector.broadcast %13 : f32 to vector<128x128xf32>
    %18 = arith.mulf %17, %0 : vector<128x128xf32>
    %19 = arith.addf %16, %18 : vector<128x128xf32>
    %20 = vector.broadcast %14 : f32 to vector<128x128xf32>
    %21 = arith.mulf %20, %11 : vector<128x128xf32>
    %22 = arith.addf %19, %21 : vector<128x128xf32>
    %cst_4 = arith.constant 0.000000e+00 : f32
    %23 = vector.broadcast %cst_4 : f32 to vector<128x128xf32>
    %24 = arith.maximumf %22, %23 : vector<128x128xf32>
    %c127_i32_5 = arith.constant 127 : i32
    %25 = tpu.dynamic_rotate %24 by %c127_i32_5 dim 1 : vector<128x128xf32>, i32 -> vector<128x128xf32>
    %26 = arith.maximumf %24, %25 : vector<128x128xf32>
    %27 = arith.truncf %26 : vector<128x128xf32> to vector<128x128xbf16>
    %c3 = arith.constant 3 : index
    %28 = memref.load %arg5[%c3] : memref<12xf32, #tpu.memory_space<smem>>
    %c4 = arith.constant 4 : index
    %29 = memref.load %arg5[%c4] : memref<12xf32, #tpu.memory_space<smem>>
    %c5 = arith.constant 5 : index
    %30 = memref.load %arg5[%c5] : memref<12xf32, #tpu.memory_space<smem>>
    %31 = vector.broadcast %28 : f32 to vector<128x128xf32>
    %32 = arith.mulf %31, %6 : vector<128x128xf32>
    %33 = vector.broadcast %29 : f32 to vector<128x128xf32>
    %34 = arith.mulf %33, %0 : vector<128x128xf32>
    %35 = arith.addf %32, %34 : vector<128x128xf32>
    %36 = vector.broadcast %30 : f32 to vector<128x128xf32>
    %37 = arith.mulf %36, %11 : vector<128x128xf32>
    %38 = arith.addf %35, %37 : vector<128x128xf32>
    %cst_6 = arith.constant 0.000000e+00 : f32
    %39 = vector.broadcast %cst_6 : f32 to vector<128x128xf32>
    %40 = arith.maximumf %38, %39 : vector<128x128xf32>
    %c127_i32_7 = arith.constant 127 : i32
    %41 = tpu.dynamic_rotate %40 by %c127_i32_7 dim 1 : vector<128x128xf32>, i32 -> vector<128x128xf32>
    %42 = arith.maximumf %40, %41 : vector<128x128xf32>
    %43 = arith.truncf %42 : vector<128x128xf32> to vector<128x128xbf16>
    %c6 = arith.constant 6 : index
    %44 = memref.load %arg5[%c6] : memref<12xf32, #tpu.memory_space<smem>>
    %c7 = arith.constant 7 : index
    %45 = memref.load %arg5[%c7] : memref<12xf32, #tpu.memory_space<smem>>
    %c8 = arith.constant 8 : index
    %46 = memref.load %arg5[%c8] : memref<12xf32, #tpu.memory_space<smem>>
    %47 = vector.broadcast %44 : f32 to vector<128x128xf32>
    %48 = arith.mulf %47, %6 : vector<128x128xf32>
    %49 = vector.broadcast %45 : f32 to vector<128x128xf32>
    %50 = arith.mulf %49, %0 : vector<128x128xf32>
    %51 = arith.addf %48, %50 : vector<128x128xf32>
    %52 = vector.broadcast %46 : f32 to vector<128x128xf32>
    %53 = arith.mulf %52, %11 : vector<128x128xf32>
    %54 = arith.addf %51, %53 : vector<128x128xf32>
    %cst_8 = arith.constant 0.000000e+00 : f32
    %55 = vector.broadcast %cst_8 : f32 to vector<128x128xf32>
    %56 = arith.maximumf %54, %55 : vector<128x128xf32>
    %c127_i32_9 = arith.constant 127 : i32
    %57 = tpu.dynamic_rotate %56 by %c127_i32_9 dim 1 : vector<128x128xf32>, i32 -> vector<128x128xf32>
    %58 = arith.maximumf %56, %57 : vector<128x128xf32>
    %59 = arith.truncf %58 : vector<128x128xf32> to vector<128x128xbf16>
    %c9 = arith.constant 9 : index
    %60 = memref.load %arg5[%c9] : memref<12xf32, #tpu.memory_space<smem>>
    %c10 = arith.constant 10 : index
    %61 = memref.load %arg5[%c10] : memref<12xf32, #tpu.memory_space<smem>>
    %c11 = arith.constant 11 : index
    %62 = memref.load %arg5[%c11] : memref<12xf32, #tpu.memory_space<smem>>
    %63 = vector.broadcast %60 : f32 to vector<128x128xf32>
    %64 = arith.mulf %63, %6 : vector<128x128xf32>
    %65 = vector.broadcast %61 : f32 to vector<128x128xf32>
    %66 = arith.mulf %65, %0 : vector<128x128xf32>
    %67 = arith.addf %64, %66 : vector<128x128xf32>
    %68 = vector.broadcast %62 : f32 to vector<128x128xf32>
    %69 = arith.mulf %68, %11 : vector<128x128xf32>
    %70 = arith.addf %67, %69 : vector<128x128xf32>
    %cst_10 = arith.constant 0.000000e+00 : f32
    %71 = vector.broadcast %cst_10 : f32 to vector<128x128xf32>
    %72 = arith.maximumf %70, %71 : vector<128x128xf32>
    %c127_i32_11 = arith.constant 127 : i32
    %73 = tpu.dynamic_rotate %72 by %c127_i32_11 dim 1 : vector<128x128xf32>, i32 -> vector<128x128xf32>
    %74 = arith.maximumf %72, %73 : vector<128x128xf32>
    %75 = arith.truncf %74 : vector<128x128xf32> to vector<128x128xbf16>
    %76 = tpu.concatenate %27, %43, %59, %75 in 1 : vector<128x128xbf16>, vector<128x128xbf16>, vector<128x128xbf16>, vector<128x128xbf16> -> vector<128x512xbf16>
    %c0_12 = arith.constant 0 : index
    %c0_13 = arith.constant 0 : index
    %77 = vector.load %arg6[%c0_12, %c0_13] : memref<512x32xbf16, #tpu.memory_space<vmem>>, vector<512x32xbf16>
    %cst_14 = arith.constant dense<0.000000e+00> : vector<128x32xf32>
    %78 = tpu.matmul %76, %77, %cst_14 {dimension_numbers = #tpu.dot_dimension_numbers<[1], [0], [0], [1], [0, 0, 1, 1], [], []>} : vector<128x512xbf16>, vector<512x32xbf16>, vector<128x32xf32> -> vector<128x32xf32>
    %c0_15 = arith.constant 0 : index
    %c0_16 = arith.constant 0 : index
    %79 = vector.load %arg7[%c0_15, %c0_16] : memref<1x32xf32, #tpu.memory_space<vmem>>, vector<1x32xf32>
    %80 = vector.broadcast %79 : vector<1x32xf32> to vector<128x32xf32>
    %81 = arith.addf %78, %80 : vector<128x32xf32>
    %c0_17 = arith.constant 0 : index
    %c0_18 = arith.constant 0 : index
    %82 = vector.load %arg2[%c0_17, %c0_18] : memref<128x8xi32, #tpu.memory_space<vmem>>, vector<128x8xi32>
    %c0_19 = arith.constant 0 : index
    %c0_20 = arith.constant 0 : index
    %83 = vector.load %arg4[%c0_19, %c0_20] : memref<128x1xi32, #tpu.memory_space<vmem>>, vector<128x1xi32>
    %84 = tpu.iota {dimensions = array<i32: 1>} : vector<128x8xi32>
    %85 = vector.broadcast %83 : vector<128x1xi32> to vector<128x8xi32>
    %86 = arith.cmpi slt, %84, %85 : vector<128x8xi32>
    %87 = arith.extui %86 : vector<128x8xi1> to vector<128x8xi32>
    %88 = arith.sitofp %87 : vector<128x8xi32> to vector<128x8xf32>
    %cst_21 = arith.constant 1.250000e-01 : f32
    %89 = vector.broadcast %cst_21 : f32 to vector<128x8xf32>
    %90 = arith.mulf %88, %89 : vector<128x8xf32>
    %cst_22 = arith.constant dense<0.000000e+00> : vector<128xf32>
    %91 = vector.multi_reduction <add>, %90, %cst_22 [1] : vector<128x8xf32> to vector<128xf32>
    %92 = vector.shape_cast %91 : vector<128xf32> to vector<128x1xf32>
    %cst_23 = arith.constant 9.99999974E-6 : f32
    %93 = vector.broadcast %cst_23 : f32 to vector<128x1xf32>
    %94 = arith.maximumf %92, %93 : vector<128x1xf32>
    %95 = vector.broadcast %94 : vector<128x1xf32> to vector<128x8xf32>
    %96 = arith.divf %90, %95 : vector<128x8xf32>
    %97 = tpu.iota {dimensions = array<i32: 1>} : vector<128x16xi32>
    %cst_24 = arith.constant 0.000000e+00 : f32
    %98 = vector.broadcast %cst_24 : f32 to vector<128x16xf32>
    %99 = vector.extract_strided_slice %82 {offsets = [0, 0], sizes = [128, 1], strides = [1, 1]} : vector<128x8xi32> to vector<128x1xi32>
    %100 = vector.broadcast %99 : vector<128x1xi32> to vector<128x16xi32>
    %101 = arith.cmpi eq, %97, %100 : vector<128x16xi32>
    %102 = vector.extract_strided_slice %96 {offsets = [0, 0], sizes = [128, 1], strides = [1, 1]} : vector<128x8xf32> to vector<128x1xf32>
    %cst_25 = arith.constant 0.000000e+00 : f32
    %103 = vector.shape_cast %102 : vector<128x1xf32> to vector<128x1xf32>
    %104 = vector.broadcast %103 : vector<128x1xf32> to vector<128x16xf32>
    %105 = vector.broadcast %cst_25 : f32 to vector<128x16xf32>
    %106 = arith.select %101, %104, %105 : vector<128x16xi1>, vector<128x16xf32>
    %107 = arith.addf %98, %106 : vector<128x16xf32>
    %108 = vector.extract_strided_slice %82 {offsets = [0, 1], sizes = [128, 1], strides = [1, 1]} : vector<128x8xi32> to vector<128x1xi32>
    %109 = vector.broadcast %108 : vector<128x1xi32> to vector<128x16xi32>
    %110 = arith.cmpi eq, %97, %109 : vector<128x16xi32>
    %111 = vector.extract_strided_slice %96 {offsets = [0, 1], sizes = [128, 1], strides = [1, 1]} : vector<128x8xf32> to vector<128x1xf32>
    %cst_26 = arith.constant 0.000000e+00 : f32
    %112 = vector.shape_cast %111 : vector<128x1xf32> to vector<128x1xf32>
    %113 = vector.broadcast %112 : vector<128x1xf32> to vector<128x16xf32>
    %114 = vector.broadcast %cst_26 : f32 to vector<128x16xf32>
    %115 = arith.select %110, %113, %114 : vector<128x16xi1>, vector<128x16xf32>
    %116 = arith.addf %107, %115 : vector<128x16xf32>
    %117 = vector.extract_strided_slice %82 {offsets = [0, 2], sizes = [128, 1], strides = [1, 1]} : vector<128x8xi32> to vector<128x1xi32>
    %118 = vector.broadcast %117 : vector<128x1xi32> to vector<128x16xi32>
    %119 = arith.cmpi eq, %97, %118 : vector<128x16xi32>
    %120 = vector.extract_strided_slice %96 {offsets = [0, 2], sizes = [128, 1], strides = [1, 1]} : vector<128x8xf32> to vector<128x1xf32>
    %cst_27 = arith.constant 0.000000e+00 : f32
    %121 = vector.shape_cast %120 : vector<128x1xf32> to vector<128x1xf32>
    %122 = vector.broadcast %121 : vector<128x1xf32> to vector<128x16xf32>
    %123 = vector.broadcast %cst_27 : f32 to vector<128x16xf32>
    %124 = arith.select %119, %122, %123 : vector<128x16xi1>, vector<128x16xf32>
    %125 = arith.addf %116, %124 : vector<128x16xf32>
    %126 = vector.extract_strided_slice %82 {offsets = [0, 3], sizes = [128, 1], strides = [1, 1]} : vector<128x8xi32> to vector<128x1xi32>
    %127 = vector.broadcast %126 : vector<128x1xi32> to vector<128x16xi32>
    %128 = arith.cmpi eq, %97, %127 : vector<128x16xi32>
    %129 = vector.extract_strided_slice %96 {offsets = [0, 3], sizes = [128, 1], strides = [1, 1]} : vector<128x8xf32> to vector<128x1xf32>
    %cst_28 = arith.constant 0.000000e+00 : f32
    %130 = vector.shape_cast %129 : vector<128x1xf32> to vector<128x1xf32>
    %131 = vector.broadcast %130 : vector<128x1xf32> to vector<128x16xf32>
    %132 = vector.broadcast %cst_28 : f32 to vector<128x16xf32>
    %133 = arith.select %128, %131, %132 : vector<128x16xi1>, vector<128x16xf32>
    %134 = arith.addf %125, %133 : vector<128x16xf32>
    %135 = vector.extract_strided_slice %82 {offsets = [0, 4], sizes = [128, 1], strides = [1, 1]} : vector<128x8xi32> to vector<128x1xi32>
    %136 = vector.broadcast %135 : vector<128x1xi32> to vector<128x16xi32>
    %137 = arith.cmpi eq, %97, %136 : vector<128x16xi32>
    %138 = vector.extract_strided_slice %96 {offsets = [0, 4], sizes = [128, 1], strides = [1, 1]} : vector<128x8xf32> to vector<128x1xf32>
    %cst_29 = arith.constant 0.000000e+00 : f32
    %139 = vector.shape_cast %138 : vector<128x1xf32> to vector<128x1xf32>
    %140 = vector.broadcast %139 : vector<128x1xf32> to vector<128x16xf32>
    %141 = vector.broadcast %cst_29 : f32 to vector<128x16xf32>
    %142 = arith.select %137, %140, %141 : vector<128x16xi1>, vector<128x16xf32>
    %143 = arith.addf %134, %142 : vector<128x16xf32>
    %144 = vector.extract_strided_slice %82 {offsets = [0, 5], sizes = [128, 1], strides = [1, 1]} : vector<128x8xi32> to vector<128x1xi32>
    %145 = vector.broadcast %144 : vector<128x1xi32> to vector<128x16xi32>
    %146 = arith.cmpi eq, %97, %145 : vector<128x16xi32>
    %147 = vector.extract_strided_slice %96 {offsets = [0, 5], sizes = [128, 1], strides = [1, 1]} : vector<128x8xf32> to vector<128x1xf32>
    %cst_30 = arith.constant 0.000000e+00 : f32
    %148 = vector.shape_cast %147 : vector<128x1xf32> to vector<128x1xf32>
    %149 = vector.broadcast %148 : vector<128x1xf32> to vector<128x16xf32>
    %150 = vector.broadcast %cst_30 : f32 to vector<128x16xf32>
    %151 = arith.select %146, %149, %150 : vector<128x16xi1>, vector<128x16xf32>
    %152 = arith.addf %143, %151 : vector<128x16xf32>
    %153 = vector.extract_strided_slice %82 {offsets = [0, 6], sizes = [128, 1], strides = [1, 1]} : vector<128x8xi32> to vector<128x1xi32>
    %154 = vector.broadcast %153 : vector<128x1xi32> to vector<128x16xi32>
    %155 = arith.cmpi eq, %97, %154 : vector<128x16xi32>
    %156 = vector.extract_strided_slice %96 {offsets = [0, 6], sizes = [128, 1], strides = [1, 1]} : vector<128x8xf32> to vector<128x1xf32>
    %cst_31 = arith.constant 0.000000e+00 : f32
    %157 = vector.shape_cast %156 : vector<128x1xf32> to vector<128x1xf32>
    %158 = vector.broadcast %157 : vector<128x1xf32> to vector<128x16xf32>
    %159 = vector.broadcast %cst_31 : f32 to vector<128x16xf32>
    %160 = arith.select %155, %158, %159 : vector<128x16xi1>, vector<128x16xf32>
    %161 = arith.addf %152, %160 : vector<128x16xf32>
    %162 = vector.extract_strided_slice %82 {offsets = [0, 7], sizes = [128, 1], strides = [1, 1]} : vector<128x8xi32> to vector<128x1xi32>
    %163 = vector.broadcast %162 : vector<128x1xi32> to vector<128x16xi32>
    %164 = arith.cmpi eq, %97, %163 : vector<128x16xi32>
    %165 = vector.extract_strided_slice %96 {offsets = [0, 7], sizes = [128, 1], strides = [1, 1]} : vector<128x8xf32> to vector<128x1xf32>
    %cst_32 = arith.constant 0.000000e+00 : f32
    %166 = vector.shape_cast %165 : vector<128x1xf32> to vector<128x1xf32>
    %167 = vector.broadcast %166 : vector<128x1xf32> to vector<128x16xf32>
    %168 = vector.broadcast %cst_32 : f32 to vector<128x16xf32>
    %169 = arith.select %164, %167, %168 : vector<128x16xi1>, vector<128x16xf32>
    %170 = arith.addf %161, %169 : vector<128x16xf32>
    %c0_33 = arith.constant 0 : index
    %c0_34 = arith.constant 0 : index
    %171 = vector.load %arg8[%c0_33, %c0_34] : memref<16x32xf32, #tpu.memory_space<vmem>>, vector<16x32xf32>
    %cst_35 = arith.constant dense<0.000000e+00> : vector<128x32xf32>
    %172 = tpu.matmul %170, %171, %cst_35 {dimension_numbers = #tpu.dot_dimension_numbers<[1], [0], [0], [1], [0, 0, 1, 1], [], []>} : vector<128x16xf32>, vector<16x32xf32>, vector<128x32xf32> -> vector<128x32xf32>
    %c0_36 = arith.constant 0 : index
    %c0_37 = arith.constant 0 : index
    %173 = vector.load %arg10[%c0_36, %c0_37] : memref<1x32xf32, #tpu.memory_space<vmem>>, vector<1x32xf32>
    %c0_38 = arith.constant 0 : index
    %c0_39 = arith.constant 0 : index
    %174 = vector.load %arg11[%c0_38, %c0_39] : memref<1x32xf32, #tpu.memory_space<vmem>>, vector<1x32xf32>
    %c0_40 = arith.constant 0 : index
    %c0_41 = arith.constant 0 : index
    %175 = vector.load %arg3[%c0_40, %c0_41] : memref<128x1xi32, #tpu.memory_space<vmem>>, vector<128x1xi32>
    %c1_i32_42 = arith.constant 1 : i32
    %176 = vector.broadcast %c1_i32_42 : i32 to vector<128x1xi32>
    %177 = arith.minsi %175, %176 : vector<128x1xi32>
    %178 = arith.sitofp %177 : vector<128x1xi32> to vector<128x1xf32>
    %c1_i32_43 = arith.constant 1 : i32
    %179 = vector.broadcast %c1_i32_43 : i32 to vector<128x1xi32>
    %180 = arith.minsi %83, %179 : vector<128x1xi32>
    %181 = arith.sitofp %180 : vector<128x1xi32> to vector<128x1xf32>
    %c0_44 = arith.constant 0 : index
    %182 = memref.load %arg9[%c0_44] : memref<2xf32, #tpu.memory_space<smem>>
    %183 = vector.broadcast %178 : vector<128x1xf32> to vector<128x32xf32>
    %184 = arith.mulf %81, %183 : vector<128x32xf32>
    %cst_45 = arith.constant dense<0.000000e+00> : vector<128xf32>
    %185 = vector.multi_reduction <add>, %184, %cst_45 [1] : vector<128x32xf32> to vector<128xf32>
    %186 = vector.shape_cast %185 : vector<128xf32> to vector<128x1xf32>
    %cst_46 = arith.constant 3.200000e+01 : f32
    %187 = vector.broadcast %cst_46 : f32 to vector<128x1xf32>
    %188 = arith.divf %186, %187 : vector<128x1xf32>
    %189 = vector.broadcast %188 : vector<128x1xf32> to vector<128x32xf32>
    %190 = arith.subf %184, %189 : vector<128x32xf32>
    %191 = arith.mulf %190, %190 : vector<128x32xf32>
    %cst_47 = arith.constant dense<0.000000e+00> : vector<128xf32>
    %192 = vector.multi_reduction <add>, %191, %cst_47 [1] : vector<128x32xf32> to vector<128xf32>
    %193 = vector.shape_cast %192 : vector<128xf32> to vector<128x1xf32>
    %cst_48 = arith.constant 3.200000e+01 : f32
    %194 = vector.broadcast %cst_48 : f32 to vector<128x1xf32>
    %195 = arith.divf %193, %194 : vector<128x1xf32>
    %cst_49 = arith.constant 9.99999974E-6 : f32
    %196 = vector.broadcast %cst_49 : f32 to vector<128x1xf32>
    %197 = arith.addf %195, %196 : vector<128x1xf32>
    %198 = math.rsqrt %197 : vector<128x1xf32>
    %199 = vector.broadcast %198 : vector<128x1xf32> to vector<128x32xf32>
    %200 = arith.mulf %190, %199 : vector<128x32xf32>
    %201 = vector.broadcast %173 : vector<1x32xf32> to vector<128x32xf32>
    %202 = arith.mulf %200, %201 : vector<128x32xf32>
    %203 = vector.broadcast %174 : vector<1x32xf32> to vector<128x32xf32>
    %204 = arith.addf %202, %203 : vector<128x32xf32>
    %205 = vector.broadcast %182 : f32 to vector<128x32xf32>
    %206 = arith.mulf %205, %204 : vector<128x32xf32>
    %c1_50 = arith.constant 1 : index
    %207 = memref.load %arg9[%c1_50] : memref<2xf32, #tpu.memory_space<smem>>
    %208 = vector.broadcast %181 : vector<128x1xf32> to vector<128x32xf32>
    %209 = arith.mulf %172, %208 : vector<128x32xf32>
    %cst_51 = arith.constant dense<0.000000e+00> : vector<128xf32>
    %210 = vector.multi_reduction <add>, %209, %cst_51 [1] : vector<128x32xf32> to vector<128xf32>
    %211 = vector.shape_cast %210 : vector<128xf32> to vector<128x1xf32>
    %cst_52 = arith.constant 3.200000e+01 : f32
    %212 = vector.broadcast %cst_52 : f32 to vector<128x1xf32>
    %213 = arith.divf %211, %212 : vector<128x1xf32>
    %214 = vector.broadcast %213 : vector<128x1xf32> to vector<128x32xf32>
    %215 = arith.subf %209, %214 : vector<128x32xf32>
    %216 = arith.mulf %215, %215 : vector<128x32xf32>
    %cst_53 = arith.constant dense<0.000000e+00> : vector<128xf32>
    %217 = vector.multi_reduction <add>, %216, %cst_53 [1] : vector<128x32xf32> to vector<128xf32>
    %218 = vector.shape_cast %217 : vector<128xf32> to vector<128x1xf32>
    %cst_54 = arith.constant 3.200000e+01 : f32
    %219 = vector.broadcast %cst_54 : f32 to vector<128x1xf32>
    %220 = arith.divf %218, %219 : vector<128x1xf32>
    %cst_55 = arith.constant 9.99999974E-6 : f32
    %221 = vector.broadcast %cst_55 : f32 to vector<128x1xf32>
    %222 = arith.addf %220, %221 : vector<128x1xf32>
    %223 = math.rsqrt %222 : vector<128x1xf32>
    %224 = vector.broadcast %223 : vector<128x1xf32> to vector<128x32xf32>
    %225 = arith.mulf %215, %224 : vector<128x32xf32>
    %226 = vector.broadcast %173 : vector<1x32xf32> to vector<128x32xf32>
    %227 = arith.mulf %225, %226 : vector<128x32xf32>
    %228 = vector.broadcast %174 : vector<1x32xf32> to vector<128x32xf32>
    %229 = arith.addf %227, %228 : vector<128x32xf32>
    %230 = vector.broadcast %207 : f32 to vector<128x32xf32>
    %231 = arith.mulf %230, %229 : vector<128x32xf32>
    %232 = arith.addf %206, %231 : vector<128x32xf32>
    %233 = arith.mulf %232, %232 : vector<128x32xf32>
    %cst_56 = arith.constant dense<0.000000e+00> : vector<128xf32>
    %234 = vector.multi_reduction <add>, %233, %cst_56 [1] : vector<128x32xf32> to vector<128xf32>
    %235 = vector.shape_cast %234 : vector<128xf32> to vector<128x1xf32>
    %cst_57 = arith.constant 1.000000e-24 : f32
    %236 = vector.broadcast %cst_57 : f32 to vector<128x1xf32>
    %237 = arith.maximumf %235, %236 : vector<128x1xf32>
    %238 = math.rsqrt %237 : vector<128x1xf32>
    %239 = vector.broadcast %238 : vector<128x1xf32> to vector<128x32xf32>
    %240 = arith.mulf %232, %239 : vector<128x32xf32>
    %c0_58 = arith.constant 0 : index
    %c0_59 = arith.constant 0 : index
    %241 = vector.load %arg12[%c0_58, %c0_59] : memref<128x32xf32, #tpu.memory_space<vmem>>, vector<128x32xf32>
    tpu.vector_store %arg12[%c0_58, %c0_59], %240 {strides = array<i32>} : memref<128x32xf32, #tpu.memory_space<vmem>>, vector<128x32xf32>,
    return
  }
  func.func @transform_0(%arg0: i32) -> (i32, i32) {
    %c0_i32 = arith.constant 0 : i32
    %c0_i32_0 = arith.constant 0 : i32
    return %arg0, %c0_i32 : i32, i32
  }
  func.func @transform_1(%arg0: i32) -> (i32, i32) {
    %c0_i32 = arith.constant 0 : i32
    %c0_i32_0 = arith.constant 0 : i32
    return %arg0, %c0_i32 : i32, i32
  }
  func.func @transform_2(%arg0: i32) -> (i32, i32) {
    %c0_i32 = arith.constant 0 : i32
    %c0_i32_0 = arith.constant 0 : i32
    return %arg0, %c0_i32 : i32, i32
  }
  func.func @transform_3(%arg0: i32) -> (i32, i32) {
    %c0_i32 = arith.constant 0 : i32
    %c0_i32_0 = arith.constant 0 : i32
    return %arg0, %c0_i32 : i32, i32
  }
  func.func @transform_4(%arg0: i32) -> i32 {
    %c0_i32 = arith.constant 0 : i32
    %c0_i32_0 = arith.constant 0 : i32
    return %c0_i32 : i32
  }
  func.func @transform_5(%arg0: i32) -> (i32, i32) {
    %c0_i32 = arith.constant 0 : i32
    %c0_i32_0 = arith.constant 0 : i32
    %c0_i32_1 = arith.constant 0 : i32
    return %c0_i32, %c0_i32_0 : i32, i32
  }
  func.func @transform_6(%arg0: i32) -> (i32, i32) {
    %c0_i32 = arith.constant 0 : i32
    %c0_i32_0 = arith.constant 0 : i32
    %c0_i32_1 = arith.constant 0 : i32
    return %c0_i32, %c0_i32_0 : i32, i32
  }
  func.func @transform_7(%arg0: i32) -> (i32, i32) {
    %c0_i32 = arith.constant 0 : i32
    %c0_i32_0 = arith.constant 0 : i32
    %c0_i32_1 = arith.constant 0 : i32
    return %c0_i32, %c0_i32_0 : i32, i32
  }
  func.func @transform_8(%arg0: i32) -> i32 {
    %c0_i32 = arith.constant 0 : i32
    %c0_i32_0 = arith.constant 0 : i32
    return %c0_i32 : i32
  }
  func.func @transform_9(%arg0: i32) -> (i32, i32) {
    %c0_i32 = arith.constant 0 : i32
    %c0_i32_0 = arith.constant 0 : i32
    %c0_i32_1 = arith.constant 0 : i32
    return %c0_i32, %c0_i32_0 : i32, i32
  }
  func.func @transform_10(%arg0: i32) -> (i32, i32) {
    %c0_i32 = arith.constant 0 : i32
    %c0_i32_0 = arith.constant 0 : i32
    %c0_i32_1 = arith.constant 0 : i32
    return %c0_i32, %c0_i32_0 : i32, i32
  }
  func.func @transform_11(%arg0: i32) -> (i32, i32) {
    %c0_i32 = arith.constant 0 : i32
    %c0_i32_0 = arith.constant 0 : i32
    return %arg0, %c0_i32 : i32, i32
  }
}

</mosaic_0001>

<llo_original>
// kernel: blocker_net_forward.1
$region0: #{blocker_net_forward.1}
  #allocation0 [shape = 'u32[]', space=smem, size = 0x4, offset = 0x4, fixed_abs, tag = 'smem constant byte address 0x4 - core index']
  #allocation1 [shape = 'u32[144,128]{1,0:T(1,128)}', space=vmem, size = 0x12000, scoped, tag = 'internal scratch']
  %s0 = inlined_call_operand.vmem [shape: f32[256,128], index: 0, kind: input, shape index: {}]
  %s1 = inlined_call_operand.vmem [shape: s32[256,8], index: 1, kind: input, shape index: {}]
  %s2 = inlined_call_operand.vmem [shape: s32[256,1], index: 2, kind: input, shape index: {}]
  %s3 = inlined_call_operand.vmem [shape: s32[256,1], index: 3, kind: input, shape index: {}]
  %s4 = inlined_call_operand.vmem [shape: f32[12], index: 4, kind: input, shape index: {}]
  %s5 = inlined_call_operand.vmem [shape: bf16[512,32], index: 5, kind: input, shape index: {}]
  %s6 = inlined_call_operand.vmem [shape: f32[1,32], index: 6, kind: input, shape index: {}]
  %s7 = inlined_call_operand.vmem [shape: f32[16,32], index: 7, kind: input, shape index: {}]
  %s8 = inlined_call_operand.vmem [shape: f32[2], index: 8, kind: input, shape index: {}]
  %s9 = inlined_call_operand.vmem [shape: f32[1,32], index: 9, kind: input, shape index: {}]
  %s10 = inlined_call_operand.vmem [shape: f32[1,32], index: 10, kind: input, shape index: {}]
  %s11 = inlined_call_operand.vmem [shape: f32[256,32], index: 11, kind: output, shape index: {}]
  %s12 = sld [smem:[#allocation0]]
  $region85: #{blocker_net_forward.1} parent=0
    _
  %s14 = ssub.s32 1, %s12
  %s15 = scalar_select 0, %s14, %s12
  $region1: #{blocker_net_forward.1} parent=0
    #allocation2 [shape = 'u8[512]{0}', space=smem, size = 0x200, scoped, tag = 'input window, operand 4, single buffered']
    #allocation3 [shape = 's32[2]{0}', space=sflag, size = 0x8, scoped, tag = 'scoped memory for blocker_net_forward.1']
    #allocation4 [shape = 'u8[512]{0}', space=smem, size = 0x200, scoped, tag = 'input window, operand 8, single buffered']
    #allocation5 [shape = 's32[1]{0}', space=sflag, size = 0x4, scoped, tag = 'scoped memory for blocker_net_forward.1']
    %16 = vsyncpa [#allocation3], 0
    %17 = vsyncpa [#allocation5], 0
    loop: start=0, step=1, limit=4
    $region2: #{blocker_net_forward.1} parent=1 // loop_pre_header
      _
    $region3: #{blocker_net_forward.1} parent=1 // loop_header
      %s19 = sphi 0, %s23
      %p20 = scmp.ge.s32.totalorder %s19, 4
      %s29 = sphi 0, %s31
      %s32 = sphi 0, %s29
      %s33 = sphi 0, %s32
      %s49 = sphi 0, %s33
      %s55 = sphi 0, %s57
      %s58 = sphi 0, %s55
      %s59 = sphi 0, %s58
      %s75 = sphi 0, %s59
      %s81 = sphi 0, %s83
      %s84 = sphi 0, %s81
      %s85 = sphi 0, %s84
      %s101 = sphi 0, %s85
      %s107 = sphi 0, %s109
      %s110 = sphi 0, %s107
      %s111 = sphi 0, %s110
      %s127 = sphi 0, %s111
      %s131 = sphi 0, %s131
      %s133 = sphi 0, %s131
      %s134 = sphi 0, %s133
      %s148 = sphi 0, %s134
      %s152 = sphi 0, %s152
      %s154 = sphi 0, %s152
      %s155 = sphi 0, %s154
      %s169 = sphi 0, %s155
      %s173 = sphi 0, %s173
      %s175 = sphi 0, %s173
      %s176 = sphi 0, %s175
      %s190 = sphi 0, %s176
      %s194 = sphi 0, %s194
      %s196 = sphi 0, %s194
      %s197 = sphi 0, %s196
      %s211 = sphi 0, %s197
      %s215 = sphi 0, %s215
      %s217 = sphi 0, %s215
      %s218 = sphi 0, %s217
      %s232 = sphi 0, %s218
      %s236 = sphi 0, %s236
      %s238 = sphi 0, %s236
      %s239 = sphi 0, %s238
      %s253 = sphi 0, %s239
      %s257 = sphi 0, %s257
      %s259 = sphi 0, %s257
      %s260 = sphi 0, %s259
      %s274 = sphi 0, %s260
      %s280 = sphi 0, %s282
      %s283 = sphi 0, %s280
      %s284 = sphi 0, %s283
      %s300 = sphi 0, %s284
    $region4: #{blocker_net_forward.1} parent=1 // loop_header_branch
      %22 = sbr.rel (%p20) target = $region8
    $region5: #{blocker_net_forward.1} parent=1 // loop_body
      %s24 = ssub.s32 %s19, 1
      %s25 = ssub.s32 %s19, 2
      %s26 = sadd.s32 %s19, 1
      %s27 = ssub.s32 %s19, %s26
      %p28 = scmp.eq.s32.totalorder %s27, 0
      %s30 = sadd.s32 %s29, 1
      %s31 = scalar_select %p28, %s29, %s30
      %p34 = pneg %p28
      %p35 = scmp.eq.s32.totalorder %s19, 1
      %p36 = por %p34, %p35
      %p37 = scmp.ne.s32.totalorder %s29, %s32
      %p38 = scmp.eq.s32.totalorder %s19, 0
      %p39 = por %p37, %p38
      %p40 = scmp.ne.s32.totalorder %s29, %s32
      %p41 = scmp.eq.s32.totalorder %s24, 1
      %p42 = por %p40, %p41
      %p43 = scmp.ne.s32.totalorder %s32, %s33
      %p44 = scmp.eq.s32.totalorder %s24, 0
      %p45 = por %p43, %p44
      %p46 = scmp.ne.s32.totalorder %s32, %s33
      %p47 = scmp.eq.s32.totalorder %s25, 1
      %p48 = por %p46, %p47
      %p50 = scmp.ne.s32.totalorder %s33, %s49
      %p51 = scmp.eq.s32.totalorder %s25, 0
      %p52 = por %p50, %p51
      %s53 = ssub.s32 %s19, %s26
      %p54 = scmp.eq.s32.totalorder %s53, 0
      %s56 = sadd.s32 %s55, 1
      %s57 = scalar_select %p54, %s55, %s56
      %p60 = pneg %p54
      %p61 = scmp.eq.s32.totalorder %s19, 1
      %p62 = por %p60, %p61
      %p63 = scmp.ne.s32.totalorder %s55, %s58
      %p64 = scmp.eq.s32.totalorder %s19, 0
      %p65 = por %p63, %p64
      %p66 = scmp.ne.s32.totalorder %s55, %s58
      %p67 = scmp.eq.s32.totalorder %s24, 1
      %p68 = por %p66, %p67
      %p69 = scmp.ne.s32.totalorder %s58, %s59
      %p70 = scmp.eq.s32.totalorder %s24, 0
      %p71 = por %p69, %p70
      %p72 = scmp.ne.s32.totalorder %s58, %s59
      %p73 = scmp.eq.s32.totalorder %s25, 1
      %p74 = por %p72, %p73
      %p76 = scmp.ne.s32.totalorder %s59, %s75
      %p77 = scmp.eq.s32.totalorder %s25, 0
      %p78 = por %p76, %p77
      %s79 = ssub.s32 %s19, %s26
      %p80 = scmp.eq.s32.totalorder %s79, 0
      %s82 = sadd.s32 %s81, 1
      %s83 = scalar_select %p80, %s81, %s82
      %p86 = pneg %p80
      %p87 = scmp.eq.s32.totalorder %s19, 1
      %p88 = por %p86, %p87
      %p89 = scmp.ne.s32.totalorder %s81, %s84
      %p90 = scmp.eq.s32.totalorder %s19, 0
      %p91 = por %p89, %p90
      %p92 = scmp.ne.s32.totalorder %s81, %s84
      %p93 = scmp.eq.s32.totalorder %s24, 1
      %p94 = por %p92, %p93
      %p95 = scmp.ne.s32.totalorder %s84, %s85
      %p96 = scmp.eq.s32.totalorder %s24, 0
      %p97 = por %p95, %p96
      %p98 = scmp.ne.s32.totalorder %s84, %s85
      %p99 = scmp.eq.s32.totalorder %s25, 1
      %p100 = por %p98, %p99
      %p102 = scmp.ne.s32.totalorder %s85, %s101
      %p103 = scmp.eq.s32.totalorder %s25, 0
      %p104 = por %p102, %p103
      %s105 = ssub.s32 %s19, %s26
      %p106 = scmp.eq.s32.totalorder %s105, 0
      %s108 = sadd.s32 %s107, 1
      %s109 = scalar_select %p106, %s107, %s108
      %p112 = pneg %p106
      %p113 = scmp.eq.s32.totalorder %s19, 1
      %p114 = por %p112, %p113
      %p115 = scmp.ne.s32.totalorder %s107, %s110
      %p116 = scmp.eq.s32.totalorder %s19, 0
      %p117 = por %p115, %p116
      %p118 = scmp.ne.s32.totalorder %s107, %s110
      %p119 = scmp.eq.s32.totalorder %s24, 1
      %p120 = por %p118, %p119
      %p121 = scmp.ne.s32.totalorder %s110, %s111
      %p122 = scmp.eq.s32.totalorder %s24, 0
      %p123 = por %p121, %p122
      %p124 = scmp.ne.s32.totalorder %s110, %s111
      %p125 = scmp.eq.s32.totalorder %s25, 1
      %p126 = por %p124, %p125
      %p128 = scmp.ne.s32.totalorder %s111, %s127
      %p129 = scmp.eq.s32.totalorder %s25, 0
      %p130 = por %p128, %p129
      %s132 = sadd.s32 %s131, 1
      %p135 = scmp.eq.s32.totalorder %s19, 1
      %p136 = scmp.ne.s32.totalorder %s131, %s133
      %p137 = scmp.eq.s32.totalorder %s19, 0
      %p138 = por %p136, %p137
      %p139 = scmp.ne.s32.totalorder %s131, %s133
      %p140 = scmp.eq.s32.totalorder %s24, 1
      %p141 = por %p139, %p140
      %p142 = scmp.ne.s32.totalorder %s133, %s134
      %p143 = scmp.eq.s32.totalorder %s24, 0
      %p144 = por %p142, %p143
      %p145 = scmp.ne.s32.totalorder %s133, %s134
      %p146 = scmp.eq.s32.totalorder %s25, 1
      %p147 = por %p145, %p146
      %p149 = scmp.ne.s32.totalorder %s134, %s148
      %p150 = scmp.eq.s32.totalorder %s25, 0
      %p151 = por %p149, %p150
      %s153 = sadd.s32 %s152, 1
      %p156 = scmp.eq.s32.totalorder %s19, 1
      %p157 = scmp.ne.s32.totalorder %s152, %s154
      %p158 = scmp.eq.s32.totalorder %s19, 0
      %p159 = por %p157, %p158
      %p160 = scmp.ne.s32.totalorder %s152, %s154
      %p161 = scmp.eq.s32.totalorder %s24, 1
      %p162 = por %p160, %p161
      %p163 = scmp.ne.s32.totalorder %s154, %s155
      %p164 = scmp.eq.s32.totalorder %s24, 0
      %p165 = por %p163, %p164
      %p166 = scmp.ne.s32.totalorder %s154, %s155
      %p167 = scmp.eq.s32.totalorder %s25, 1
      %p168 = por %p166, %p167
      %p170 = scmp.ne.s32.totalorder %s155, %s169
      %p171 = scmp.eq.s32.totalorder %s25, 0
      %p172 = por %p170, %p171
      %s174 = sadd.s32 %s173, 1
      %p177 = scmp.eq.s32.totalorder %s19, 1
      %p178 = scmp.ne.s32.totalorder %s173, %s175
      %p179 = scmp.eq.s32.totalorder %s19, 0
      %p180 = por %p178, %p179
      %p181 = scmp.ne.s32.totalorder %s173, %s175
      %p182 = scmp.eq.s32.totalorder %s24, 1
      %p183 = por %p181, %p182
      %p184 = scmp.ne.s32.totalorder %s175, %s176
      %p185 = scmp.eq.s32.totalorder %s24, 0
      %p186 = por %p184, %p185
      %p187 = scmp.ne.s32.totalorder %s175, %s176
      %p188 = scmp.eq.s32.totalorder %s25, 1
      %p189 = por %p187, %p188
      %p191 = scmp.ne.s32.totalorder %s176, %s190
      %p192 = scmp.eq.s32.totalorder %s25, 0
      %p193 = por %p191, %p192
      %s195 = sadd.s32 %s194, 1
      %p198 = scmp.eq.s32.totalorder %s19, 1
      %p199 = scmp.ne.s32.totalorder %s194, %s196
      %p200 = scmp.eq.s32.totalorder %s19, 0
      %p201 = por %p199, %p200
      %p202 = scmp.ne.s32.totalorder %s194, %s196
      %p203 = scmp.eq.s32.totalorder %s24, 1
      %p204 = por %p202, %p203
      %p205 = scmp.ne.s32.totalorder %s196, %s197
      %p206 = scmp.eq.s32.totalorder %s24, 0
      %p207 = por %p205, %p206
      %p208 = scmp.ne.s32.totalorder %s196, %s197
      %p209 = scmp.eq.s32.totalorder %s25, 1
      %p210 = por %p208, %p209
      %p212 = scmp.ne.s32.totalorder %s197, %s211
      %p213 = scmp.eq.s32.totalorder %s25, 0
      %p214 = por %p212, %p213
      %s216 = sadd.s32 %s215, 1
      %p219 = scmp.eq.s32.totalorder %s19, 1
      %p220 = scmp.ne.s32.totalorder %s215, %s217
      %p221 = scmp.eq.s32.totalorder %s19, 0
      %p222 = por %p220, %p221
      %p223 = scmp.ne.s32.totalorder %s215, %s217
      %p224 = scmp.eq.s32.totalorder %s24, 1
      %p225 = por %p223, %p224
      %p226 = scmp.ne.s32.totalorder %s217, %s218
      %p227 = scmp.eq.s32.totalorder %s24, 0
      %p228 = por %p226, %p227
      %p229 = scmp.ne.s32.totalorder %s217, %s218
      %p230 = scmp.eq.s32.totalorder %s25, 1
      %p231 = por %p229, %p230
      %p233 = scmp.ne.s32.totalorder %s218, %s232
      %p234 = scmp.eq.s32.totalorder %s25, 0
      %p235 = por %p233, %p234
      %s237 = sadd.s32 %s236, 1
      %p240 = scmp.eq.s32.totalorder %s19, 1
      %p241 = scmp.ne.s32.totalorder %s236, %s238
      %p242 = scmp.eq.s32.totalorder %s19, 0
      %p243 = por %p241, %p242
      %p244 = scmp.ne.s32.totalorder %s236, %s238
      %p245 = scmp.eq.s32.totalorder %s24, 1
      %p246 = por %p244, %p245
      %p247 = scmp.ne.s32.totalorder %s238, %s239
      %p248 = scmp.eq.s32.totalorder %s24, 0
      %p249 = por %p247, %p248
      %p250 = scmp.ne.s32.totalorder %s238, %s239
      %p251 = scmp.eq.s32.totalorder %s25, 1
      %p252 = por %p250, %p251
      %p254 = scmp.ne.s32.totalorder %s239, %s253
      %p255 = scmp.eq.s32.totalorder %s25, 0
      %p256 = por %p254, %p255
      %s258 = sadd.s32 %s257, 1
      %p261 = scmp.eq.s32.totalorder %s19, 1
      %p262 = scmp.ne.s32.totalorder %s257, %s259
      %p263 = scmp.eq.s32.totalorder %s19, 0
      %p264 = por %p262, %p263
      %p265 = scmp.ne.s32.totalorder %s257, %s259
      %p266 = scmp.eq.s32.totalorder %s24, 1
      %p267 = por %p265, %p266
      %p268 = scmp.ne.s32.totalorder %s259, %s260
      %p269 = scmp.eq.s32.totalorder %s24, 0
      %p270 = por %p268, %p269
      %p271 = scmp.ne.s32.totalorder %s259, %s260
      %p272 = scmp.eq.s32.totalorder %s25, 1
      %p273 = por %p271, %p272
      %p275 = scmp.ne.s32.totalorder %s260, %s274
      %p276 = scmp.eq.s32.totalorder %s25, 0
      %p277 = por %p275, %p276
      %s278 = ssub.s32 %s19, %s26
      %p279 = scmp.eq.s32.totalorder %s278, 0
      %s281 = sadd.s32 %s280, 1
      %s282 = scalar_select %p279, %s280, %s281
      %p285 = pneg %p279
      %p286 = scmp.eq.s32.totalorder %s19, 1
      %p287 = por %p285, %p286
      %p288 = scmp.ne.s32.totalorder %s280, %s283
      %p289 = scmp.eq.s32.totalorder %s19, 0
      %p290 = por %p288, %p289
      %p291 = scmp.ne.s32.totalorder %s280, %s283
      %p292 = scmp.eq.s32.totalorder %s24, 1
      %p293 = por %p291, %p292
      %p294 = scmp.ne.s32.totalorder %s283, %s284
      %p295 = scmp.eq.s32.totalorder %s24, 0
      %p296 = por %p294, %p295
      %p297 = scmp.ne.s32.totalorder %s283, %s284
      %p298 = scmp.eq.s32.totalorder %s25, 1
      %p299 = por %p297, %p298
      %p301 = scmp.ne.s32.totalorder %s284, %s300
      %p302 = scmp.eq.s32.totalorder %s25, 0
      %p303 = por %p301, %p302
      %p304 = scmp.le.s32.totalorder 1, %s19
      %p305 = scmp.lt.s32.totalorder %s19, 3
      %p306 = pnand %p304, %p305
      %p307 = pneg %p306
      // Predicated region
      $region9: #{blocker_net_forward.1} parent=5 // pred_check
        _
      $region10: #{blocker_net_forward.1} parent=5 // pred_check_branch
        %309 = sbr.rel (%p306) target = $region12
      $region11: #{blocker_net_forward.1} parent=5 // pred_region
        %s310 = ssub.s32 %s19, 1
        // Predicated region
        $region13: #{blocker_net_forward.1} parent=11 // pred_check
          %p311 = pneg %p144
        $region14: #{blocker_net_forward.1} parent=11 // pred_check_branch
          %313 = sbr.rel (%p311) target = $region16
        $region15: #{blocker_net_forward.1} parent=11 // pred_region
          %s315 = ssub.s32 16, 16
          %316 = vsyncadd [#allocation3], %s315
          %s318 = sshll.u32 %s4, 4
          %s319 = int_to_ptr.vmem [resolvable:$true] %s318
          %321 = dma.vmem_to_smem %s319, 16, [#allocation2], [#allocation3]
        $region16: #{blocker_net_forward.1} parent=11 // pred_fallthru
          _
        // Predicated region
        $region17: #{blocker_net_forward.1} parent=11 // pred_check
          %p322 = pneg %p165
        $region18: #{blocker_net_forward.1} parent=11 // pred_check_branch
          %324 = sbr.rel (%p322) target = $region20
        $region19: #{blocker_net_forward.1} parent=11 // pred_region
          _
        $region20: #{blocker_net_forward.1} parent=11 // pred_fallthru
          _
        // Predicated region
        $region21: #{blocker_net_forward.1} parent=11 // pred_check
          %p325 = pneg %p186
        $region22: #{blocker_net_forward.1} parent=11 // pred_check_branch
          %327 = sbr.rel (%p325) target = $region24
        $region23: #{blocker_net_forward.1} parent=11 // pred_region
          _
        $region24: #{blocker_net_forward.1} parent=11 // pred_fallthru
          _
        // Predicated region
        $region25: #{blocker_net_forward.1} parent=11 // pred_check
          %p328 = pneg %p207
        $region26: #{blocker_net_forward.1} parent=11 // pred_check_branch
          %330 = sbr.rel (%p328) target = $region28
        $region27: #{blocker_net_forward.1} parent=11 // pred_region
          _
        $region28: #{blocker_net_forward.1} parent=11 // pred_fallthru
          _
        // Predicated region
        $region29: #{blocker_net_forward.1} parent=11 // pred_check
          %p331 = pneg %p228
        $region30: #{blocker_net_forward.1} parent=11 // pred_check_branch
          %333 = sbr.rel (%p331) target = $region32
        $region31: #{blocker_net_forward.1} parent=11 // pred_region
          %s335 = ssub.s32 16, 16
          %336 = vsyncadd [#allocation5], %s335
          %s338 = sshll.u32 %s8, 4
          %s339 = int_to_ptr.vmem [resolvable:$true] %s338
          %341 = dma.vmem_to_smem %s339, 16, [#allocation4], [#allocation5]
        $region32: #{blocker_net_forward.1} parent=11 // pred_fallthru
          _
        // Predicated region
        $region33: #{blocker_net_forward.1} parent=11 // pred_check
          %p342 = pneg %p249
        $region34: #{blocker_net_forward.1} parent=11 // pred_check_branch
          %344 = sbr.rel (%p342) target = $region36
        $region35: #{blocker_net_forward.1} parent=11 // pred_region
          _
        $region36: #{blocker_net_forward.1} parent=11 // pred_fallthru
          _
        // Predicated region
        $region37: #{blocker_net_forward.1} parent=11 // pred_check
          %p345 = pneg %p270
        $region38: #{blocker_net_forward.1} parent=11 // pred_check_branch
          %347 = sbr.rel (%p345) target = $region40
        $region39: #{blocker_net_forward.1} parent=11 // pred_region
          _
        $region40: #{blocker_net_forward.1} parent=11 // pred_fallthru
          _
      $region12: #{blocker_net_forward.1} parent=5 // pred_fallthru
        _
      %p348 = scmp.lt.s32.totalorder %s19, 2
      // Predicated region
      $region41: #{blocker_net_forward.1} parent=5 // pred_check
        %p349 = pneg %p348
      $region42: #{blocker_net_forward.1} parent=5 // pred_check_branch
        %351 = sbr.rel (%p349) target = $region44
      $region43: #{blocker_net_forward.1} parent=5 // pred_region
        // Predicated region
        $region45: #{blocker_net_forward.1} parent=43 // pred_check
          %p352 = pneg %p39
        $region46: #{blocker_net_forward.1} parent=43 // pred_check_branch
          %354 = sbr.rel (%p352) target = $region48
        $region47: #{blocker_net_forward.1} parent=43 // pred_region
          %s355 = smul.u32 16, %s19
          %p356 = scmp.lt.s32.totalorder %s355, 31
          %s357 = scalar_select %p356, %s355, 31
          %s358 = smul.addr %s357, 8
          %s359 = scalar_lea.vmem %s0, %s358
          %s360 = smul.u32 16, %s19
        $region48: #{blocker_net_forward.1} parent=43 // pred_fallthru
          _
        // Predicated region
        $region49: #{blocker_net_forward.1} parent=43 // pred_check
          %p361 = pneg %p65
        $region50: #{blocker_net_forward.1} parent=43 // pred_check_branch
          %363 = sbr.rel (%p361) target = $region52
        $region51: #{blocker_net_forward.1} parent=43 // pred_region
          %s364 = smul.u32 16, %s19
          %p365 = scmp.lt.s32.totalorder %s364, 31
          %s366 = scalar_select %p365, %s364, 31
          %s367 = smul.addr %s366, 8
          %s368 = scalar_lea.vmem %s1, %s367
          %s369 = smul.u32 16, %s19
        $region52: #{blocker_net_forward.1} parent=43 // pred_fallthru
          _
        // Predicated region
        $region53: #{blocker_net_forward.1} parent=43 // pred_check
          %p370 = pneg %p91
        $region54: #{blocker_net_forward.1} parent=43 // pred_check_branch
          %372 = sbr.rel (%p370) target = $region56
        $region55: #{blocker_net_forward.1} parent=43 // pred_region
          %s373 = smul.u32 16, %s19
          %p374 = scmp.lt.s32.totalorder %s373, 31
          %s375 = scalar_select %p374, %s373, 31
          %s376 = smul.addr %s375, 8
          %s377 = scalar_lea.vmem %s2, %s376
          %s378 = smul.u32 16, %s19
        $region56: #{blocker_net_forward.1} parent=43 // pred_fallthru
          _
        // Predicated region
        $region57: #{blocker_net_forward.1} parent=43 // pred_check
          %p379 = pneg %p117
        $region58: #{blocker_net_forward.1} parent=43 // pred_check_branch
          %381 = sbr.rel (%p379) target = $region60
        $region59: #{blocker_net_forward.1} parent=43 // pred_region
          %s382 = smul.u32 16, %s19
          %p383 = scmp.lt.s32.totalorder %s382, 31
          %s384 = scalar_select %p383, %s382, 31
          %s385 = smul.addr %s384, 8
          %s386 = scalar_lea.vmem %s3, %s385
          %s387 = smul.u32 16, %s19
        $region60: #{blocker_net_forward.1} parent=43 // pred_fallthru
          _
      $region44: #{blocker_net_forward.1} parent=5 // pred_fallthru
        _
      %p388 = scmp.le.s32.totalorder 1, %s19
      %p389 = scmp.lt.s32.totalorder %s19, 3
      %p390 = pnand %p388, %p389
      %p391 = pneg %p390
      // Predicated region
      $region61: #{blocker_net_forward.1} parent=5 // pred_check
        _
      $region62: #{blocker_net_forward.1} parent=5 // pred_check_branch
        %393 = sbr.rel (%p390) target = $region64
      $region63: #{blocker_net_forward.1} parent=5 // pred_region
        %s394 = ssub.s32 %s19, 1
        // Predicated region
        $region65: #{blocker_net_forward.1} parent=63 // pred_check
          %p395 = pneg %p144
        $region66: #{blocker_net_forward.1} parent=63 // pred_check_branch
          %397 = sbr.rel (%p395) target = $region68
        $region67: #{blocker_net_forward.1} parent=63 // pred_region
          %398 = dma.done [#allocation3], 16
        $region68: #{blocker_net_forward.1} parent=63 // pred_fallthru
          _
        // Predicated region
        $region69: #{blocker_net_forward.1} parent=63 // pred_check
          %p399 = pneg %p228
        $region70: #{blocker_net_forward.1} parent=63 // pred_check_branch
          %401 = sbr.rel (%p399) target = $region72
        $region71: #{blocker_net_forward.1} parent=63 // pred_region
          %402 = dma.done [#allocation5], 16
        $region72: #{blocker_net_forward.1} parent=63 // pred_fallthru
          _
        %403 = sfence
        %s404 = smul.u32 16, %s24
        %p405 = scmp.lt.s32.totalorder %s404, 31
        %s406 = scalar_select %p405, %s404, 31
        %s407 = smul.addr %s406, 8
        %s408 = scalar_lea.vmem %s0, %s407
        %p409 = pneg %p45
        %p410 = pneg %p42
        %s411 = smul.u32 16, %s24
        %p412 = scmp.lt.s32.totalorder %s411, 31
        %s413 = scalar_select %p412, %s411, 31
        %s414 = smul.addr %s413, 8
        %s415 = scalar_lea.vmem %s1, %s414
        %p416 = pneg %p71
        %p417 = pneg %p68
        %s418 = smul.u32 16, %s24
        %p419 = scmp.lt.s32.totalorder %s418, 31
        %s420 = scalar_select %p419, %s418, 31
        %s421 = smul.addr %s420, 8
        %s422 = scalar_lea.vmem %s2, %s421
        %p423 = pneg %p97
        %p424 = pneg %p94
        %s425 = smul.u32 16, %s24
        %p426 = scmp.lt.s32.totalorder %s425, 31
        %s427 = scalar_select %p426, %s425, 31
        %s428 = smul.addr %s427, 8
        %s429 = scalar_lea.vmem %s3, %s428
        %p430 = pneg %p123
        %p431 = pneg %p120
        %p432 = pneg %p144
        %p433 = pneg %p141
        %p434 = pneg %p165
        %p435 = pneg %p162
        %p436 = pneg %p186
        %p437 = pneg %p183
        %p438 = pneg %p207
        %p439 = pneg %p204
        %p440 = pneg %p228
        %p441 = pneg %p225
        %p442 = pneg %p249
        %p443 = pneg %p246
        %p444 = pneg %p270
        %p445 = pneg %p267
        %p446 = pneg %p296
        %p447 = pneg %p293
        %s448 = smul.u32 16, %s24
        %p449 = scmp.lt.s32.totalorder %s448, 31
        %s450 = scalar_select %p449, %s448, 31
        %s451 = smul.addr %s450, 8
        %s452 = scalar_lea.vmem %s11, %s451
        %s453 = smul.u32 16, %s24
        %p454 = scmp.lt.s32.totalorder %s453, 31
        %s455 = scalar_select %p454, %s453, 31
        %s456 = smul.addr %s455, 8
        %s457 = scalar_lea.vmem %s0, %s456
        %s458 = smul.u32 16, %s24
        %s459 = smul.u32 16, %s24
        %p460 = scmp.lt.s32.totalorder %s459, 31
        %s461 = scalar_select %p460, %s459, 31
        %s462 = smul.addr %s461, 8
        %s463 = scalar_lea.vmem %s1, %s462
        %s464 = smul.u32 16, %s24
        %s465 = smul.u32 16, %s24
        %p466 = scmp.lt.s32.totalorder %s465, 31
        %s467 = scalar_select %p466, %s465, 31
        %s468 = smul.addr %s467, 8
        %s469 = scalar_lea.vmem %s2, %s468
        %s470 = smul.u32 16, %s24
        %s471 = smul.u32 16, %s24
        %p472 = scmp.lt.s32.totalorder %s471, 31
        %s473 = scalar_select %p472, %s471, 31
        %s474 = smul.addr %s473, 8
        %s475 = scalar_lea.vmem %s3, %s474
        %s476 = smul.u32 16, %s24
        %s477 = smul.u32 16, %s24
        %p478 = scmp.lt.s32.totalorder %s477, 31
        %s479 = scalar_select %p478, %s477, 31
        %s480 = smul.addr %s479, 8
        %s481 = scalar_lea.vmem %s11, %s480
        %s482 = smul.u32 16, %s24
        %v484 = vld [vmem:[%s457] sm:$0xff]
        %v485 = vld [vmem:[%s457 + $0x8] sm:$0xff]
        %v486 = vld [vmem:[%s457 + $0x10] sm:$0xff]
        %v487 = vld [vmem:[%s457 + $0x18] sm:$0xff]
        %v488 = vld [vmem:[%s457 + $0x20] sm:$0xff]
        %v489 = vld [vmem:[%s457 + $0x28] sm:$0xff]
        %v490 = vld [vmem:[%s457 + $0x30] sm:$0xff]
        %v491 = vld [vmem:[%s457 + $0x38] sm:$0xff]
        %v492 = vld [vmem:[%s457 + $0x40] sm:$0xff]
        %v493 = vld [vmem:[%s457 + $0x48] sm:$0xff]
        %v494 = vld [vmem:[%s457 + $0x50] sm:$0xff]
        %v495 = vld [vmem:[%s457 + $0x58] sm:$0xff]
        %v496 = vld [vmem:[%s457 + $0x60] sm:$0xff]
        %v497 = vld [vmem:[%s457 + $0x68] sm:$0xff]
        %v498 = vld [vmem:[%s457 + $0x70] sm:$0xff]
        %v499 = vld [vmem:[%s457 + $0x78] sm:$0xff]
        %v500 = vlaneseq
        %v501 = vand.u32 %v500, 127
        %vm502 = vcmp.eq.s32.totalorder %v501, 0
        %503 = vrot.lane.b32.xlu0 %v484, 1
        %v504 = vpop.permute.xlu0 %503
        %505 = vrot.lane.b32.xlu0 %v485, 1
        %v506 = vpop.permute.xlu0 %505
        %507 = vrot.lane.b32.xlu0 %v486, 1
        %v508 = vpop.permute.xlu0 %507
        %509 = vrot.lane.b32.xlu0 %v487, 1
        %v510 = vpop.permute.xlu0 %509
        %511 = vrot.lane.b32.xlu0 %v488, 1
        %v512 = vpop.permute.xlu0 %511
        %513 = vrot.lane.b32.xlu0 %v489, 1
        %v514 = vpop.permute.xlu0 %513
        %515 = vrot.lane.b32.xlu0 %v490, 1
        %v516 = vpop.permute.xlu0 %515
        %517 = vrot.lane.b32.xlu0 %v491, 1
        %v518 = vpop.permute.xlu0 %517
        %519 = vrot.lane.b32.xlu0 %v492, 1
        %v520 = vpop.permute.xlu0 %519
        %521 = vrot.lane.b32.xlu0 %v493, 1
        %v522 = vpop.permute.xlu0 %521
        %523 = vrot.lane.b32.xlu0 %v494, 1
        %v524 = vpop.permute.xlu0 %523
        %525 = vrot.lane.b32.xlu0 %v495, 1
        %v526 = vpop.permute.xlu0 %525
        %527 = vrot.lane.b32.xlu0 %v496, 1
        %v528 = vpop.permute.xlu0 %527
        %529 = vrot.lane.b32.xlu0 %v497, 1
        %v530 = vpop.permute.xlu0 %529
        %531 = vrot.lane.b32.xlu0 %v498, 1
        %v532 = vpop.permute.xlu0 %531
        %533 = vrot.lane.b32.xlu0 %v499, 1
        %v534 = vpop.permute.xlu0 %533
        %v535 = vsel %vm502, 0.0, %v504
        %v536 = vsel %vm502, 0.0, %v506
        %v537 = vsel %vm502, 0.0, %v508
        %v538 = vsel %vm502, 0.0, %v510
        %v539 = vsel %vm502, 0.0, %v512
        %v540 = vsel %vm502, 0.0, %v514
        %v541 = vsel %vm502, 0.0, %v516
        %v542 = vsel %vm502, 0.0, %v518
        %v543 = vsel %vm502, 0.0, %v520
        %v544 = vsel %vm502, 0.0, %v522
        %v545 = vsel %vm502, 0.0, %v524
        %v546 = vsel %vm502, 0.0, %v526
        %v547 = vsel %vm502, 0.0, %v528
        %v548 = vsel %vm502, 0.0, %v530
        %v549 = vsel %vm502, 0.0, %v532
        %v550 = vsel %vm502, 0.0, %v534
        %vm551 = vcmp.eq.s32.totalorder %v501, 127
        %552 = vrot.lane.b32.xlu0 %v484, 127
        %v553 = vpop.permute.xlu0 %552
        %554 = vrot.lane.b32.xlu0 %v485, 127
        %v555 = vpop.permute.xlu0 %554
        %556 = vrot.lane.b32.xlu0 %v486, 127
        %v557 = vpop.permute.xlu0 %556
        %558 = vrot.lane.b32.xlu0 %v487, 127
        %v559 = vpop.permute.xlu0 %558
        %560 = vrot.lane.b32.xlu0 %v488, 127
        %v561 = vpop.permute.xlu0 %560
        %562 = vrot.lane.b32.xlu0 %v489, 127
        %v563 = vpop.permute.xlu0 %562
        %564 = vrot.lane.b32.xlu0 %v490, 127
        %v565 = vpop.permute.xlu0 %564
        %566 = vrot.lane.b32.xlu0 %v491, 127
        %v567 = vpop.permute.xlu0 %566
        %568 = vrot.lane.b32.xlu0 %v492, 127
        %v569 = vpop.permute.xlu0 %568
        %570 = vrot.lane.b32.xlu0 %v493, 127
        %v571 = vpop.permute.xlu0 %570
        %572 = vrot.lane.b32.xlu0 %v494, 127
        %v573 = vpop.permute.xlu0 %572
        %574 = vrot.lane.b32.xlu0 %v495, 127
        %v575 = vpop.permute.xlu0 %574
        %576 = vrot.lane.b32.xlu0 %v496, 127
        %v577 = vpop.permute.xlu0 %576
        %578 = vrot.lane.b32.xlu0 %v497, 127
        %v579 = vpop.permute.xlu0 %578
        %580 = vrot.lane.b32.xlu0 %v498, 127
        %v581 = vpop.permute.xlu0 %580
        %582 = vrot.lane.b32.xlu0 %v499, 127
        %v583 = vpop.permute.xlu0 %582
        %v584 = vsel %vm551, 0.0, %v553
        %v585 = vsel %vm551, 0.0, %v555
        %v586 = vsel %vm551, 0.0, %v557
        %v587 = vsel %vm551, 0.0, %v559
        %v588 = vsel %vm551, 0.0, %v561
        %v589 = vsel %vm551, 0.0, %v563
        %v590 = vsel %vm551, 0.0, %v565
        %v591 = vsel %vm551, 0.0, %v567
        %v592 = vsel %vm551, 0.0, %v569
        %v593 = vsel %vm551, 0.0, %v571
        %v594 = vsel %vm551, 0.0, %v573
        %v595 = vsel %vm551, 0.0, %v575
        %v596 = vsel %vm551, 0.0, %v577
        %v597 = vsel %vm551, 0.0, %v579
        %v598 = vsel %vm551, 0.0, %v581
        %v599 = vsel %vm551, 0.0, %v583
        %s600 = sld [smem:[#allocation2]]
        %s601 = sld [smem:[#allocation2 + $0x1]]
        %s602 = sld [smem:[#allocation2 + $0x2]]
        %v603 = vstv %s600
        %v604 = vmul.f32 %v603, %v535
        %v605 = vmul.f32 %v603, %v536
        %v606 = vmul.f32 %v603, %v537
        %v607 = vmul.f32 %v603, %v538
        %v608 = vmul.f32 %v603, %v539
        %v609 = vmul.f32 %v603, %v540
        %v610 = vmul.f32 %v603, %v541
        %v611 = vmul.f32 %v603, %v542
        %v612 = vmul.f32 %v603, %v543
        %v613 = vmul.f32 %v603, %v544
        %v614 = vmul.f32 %v603, %v545
        %v615 = vmul.f32 %v603, %v546
        %v616 = vmul.f32 %v603, %v547
        %v617 = vmul.f32 %v603, %v548
        %v618 = vmul.f32 %v603, %v549
        %v619 = vmul.f32 %v603, %v550
        %v620 = vstv %s601
        %v621 = vmul.f32 %v620, %v484
        %v622 = vmul.f32 %v620, %v485
        %v623 = vmul.f32 %v620, %v486
        %v624 = vmul.f32 %v620, %v487
        %v625 = vmul.f32 %v620, %v488
        %v626 = vmul.f32 %v620, %v489
        %v627 = vmul.f32 %v620, %v490
        %v628 = vmul.f32 %v620, %v491
        %v629 = vmul.f32 %v620, %v492
        %v630 = vmul.f32 %v620, %v493
        %v631 = vmul.f32 %v620, %v494
        %v632 = vmul.f32 %v620, %v495
        %v633 = vmul.f32 %v620, %v496
        %v634 = vmul.f32 %v620, %v497
        %v635 = vmul.f32 %v620, %v498
        %v636 = vmul.f32 %v620, %v499
        %v637 = vadd.f32 %v604, %v621
        %v638 = vadd.f32 %v605, %v622
        %v639 = vadd.f32 %v606, %v623
        %v640 = vadd.f32 %v607, %v624
        %v641 = vadd.f32 %v608, %v625
        %v642 = vadd.f32 %v609, %v626
        %v643 = vadd.f32 %v610, %v627
        %v644 = vadd.f32 %v611, %v628
        %v645 = vadd.f32 %v612, %v629
        %v646 = vadd.f32 %v613, %v630
        %v647 = vadd.f32 %v614, %v631
        %v648 = vadd.f32 %v615, %v632
        %v649 = vadd.f32 %v616, %v633
        %v650 = vadd.f32 %v617, %v634
        %v651 = vadd.f32 %v618, %v635
        %v652 = vadd.f32 %v619, %v636
        %v653 = vstv %s602
        %v654 = vmul.f32 %v653, %v584
        %v655 = vmul.f32 %v653, %v585
        %v656 = vmul.f32 %v653, %v586
        %v657 = vmul.f32 %v653, %v587
        %v658 = vmul.f32 %v653, %v588
        %v659 = vmul.f32 %v653, %v589
        %v660 = vmul.f32 %v653, %v590
        %v661 = vmul.f32 %v653, %v591
        %v662 = vmul.f32 %v653, %v592
        %v663 = vmul.f32 %v653, %v593
        %v664 = vmul.f32 %v653, %v594
        %v665 = vmul.f32 %v653, %v595
        %v666 = vmul.f32 %v653, %v596
        %v667 = vmul.f32 %v653, %v597
        %v668 = vmul.f32 %v653, %v598
        %v669 = vmul.f32 %v653, %v599
        %v670 = vadd.f32 %v637, %v654
        %v671 = vadd.f32 %v638, %v655
        %v672 = vadd.f32 %v639, %v656
        %v673 = vadd.f32 %v640, %v657
        %v674 = vadd.f32 %v641, %v658
        %v675 = vadd.f32 %v642, %v659
        %v676 = vadd.f32 %v643, %v660
        %v677 = vadd.f32 %v644, %v661
        %v678 = vadd.f32 %v645, %v662
        %v679 = vadd.f32 %v646, %v663
        %v680 = vadd.f32 %v647, %v664
        %v681 = vadd.f32 %v648, %v665
        %v682 = vadd.f32 %v649, %v666
        %v683 = vadd.f32 %v650, %v667
        %v684 = vadd.f32 %v651, %v668
        %v685 = vadd.f32 %v652, %v669
        %v686 = vmax.f32 %v670, 0.0
        %v687 = vmax.f32 %v671, 0.0
        %v688 = vmax.f32 %v672, 0.0
        %v689 = vmax.f32 %v673, 0.0
        %v690 = vmax.f32 %v674, 0.0
        %v691 = vmax.f32 %v675, 0.0
        %v692 = vmax.f32 %v676, 0.0
        %v693 = vmax.f32 %v677, 0.0
        %v694 = vmax.f32 %v678, 0.0
        %v695 = vmax.f32 %v679, 0.0
        %v696 = vmax.f32 %v680, 0.0
        %v697 = vmax.f32 %v681, 0.0
        %v698 = vmax.f32 %v682, 0.0
        %v699 = vmax.f32 %v683, 0.0
        %v700 = vmax.f32 %v684, 0.0
        %v701 = vmax.f32 %v685, 0.0
        %702 = vrot.lane.b32.xlu0 %v686, 127
        %v703 = vpop.permute.xlu0 %702
        %704 = vrot.lane.b32.xlu0 %v687, 127
        %v705 = vpop.permute.xlu0 %704
        %706 = vrot.lane.b32.xlu0 %v688, 127
        %v707 = vpop.permute.xlu0 %706
        %708 = vrot.lane.b32.xlu0 %v689, 127
        %v709 = vpop.permute.xlu0 %708
        %710 = vrot.lane.b32.xlu0 %v690, 127
        %v711 = vpop.permute.xlu0 %710
        %712 = vrot.lane.b32.xlu0 %v691, 127
        %v713 = vpop.permute.xlu0 %712
        %714 = vrot.lane.b32.xlu0 %v692, 127
        %v715 = vpop.permute.xlu0 %714
        %716 = vrot.lane.b32.xlu0 %v693, 127
        %v717 = vpop.permute.xlu0 %716
        %718 = vrot.lane.b32.xlu0 %v694, 127
        %v719 = vpop.permute.xlu0 %718
        %720 = vrot.lane.b32.xlu0 %v695, 127
        %v721 = vpop.permute.xlu0 %720
        %722 = vrot.lane.b32.xlu0 %v696, 127
        %v723 = vpop.permute.xlu0 %722
        %724 = vrot.lane.b32.xlu0 %v697, 127
        %v725 = vpop.permute.xlu0 %724
        %726 = vrot.lane.b32.xlu0 %v698, 127
        %v727 = vpop.permute.xlu0 %726
        %728 = vrot.lane.b32.xlu0 %v699, 127
        %v729 = vpop.permute.xlu0 %728
        %730 = vrot.lane.b32.xlu0 %v700, 127
        %v731 = vpop.permute.xlu0 %730
        %732 = vrot.lane.b32.xlu0 %v701, 127
        %v733 = vpop.permute.xlu0 %732
        %v734 = vmax.f32 %v686, %v703
        %v735 = vmax.f32 %v687, %v705
        %v736 = vmax.f32 %v688, %v707
        %v737 = vmax.f32 %v689, %v709
        %v738 = vmax.f32 %v690, %v711
        %v739 = vmax.f32 %v691, %v713
        %v740 = vmax.f32 %v692, %v715
        %v741 = vmax.f32 %v693, %v717
        %v742 = vmax.f32 %v694, %v719
        %v743 = vmax.f32 %v695, %v721
        %v744 = vmax.f32 %v696, %v723
        %v745 = vmax.f32 %v697, %v725
        %v746 = vmax.f32 %v698, %v727
        %v747 = vmax.f32 %v699, %v729
        %v748 = vmax.f32 %v700, %v731
        %v749 = vmax.f32 %v701, %v733
        %v750 = vpack.c.bf16 %v735, %v734
        %v751 = vpack.c.bf16 %v737, %v736
        %v752 = vpack.c.bf16 %v739, %v738
        %v753 = vpack.c.bf16 %v741, %v740
        %v754 = vpack.c.bf16 %v743, %v742
        %v755 = vpack.c.bf16 %v745, %v744
        %v756 = vpack.c.bf16 %v747, %v746
        %v757 = vpack.c.bf16 %v749, %v748
        %s758 = sld [smem:[#allocation2 + $0x3]]
        %s759 = sld [smem:[#allocation2 + $0x4]]
        %s760 = sld [smem:[#allocation2 + $0x5]]
        %v761 = vstv %s758
        %v762 = vmul.f32 %v761, %v535
        %v763 = vmul.f32 %v761, %v536
        %v764 = vmul.f32 %v761, %v537
        %v765 = vmul.f32 %v761, %v538
        %v766 = vmul.f32 %v761, %v539
        %v767 = vmul.f32 %v761, %v540
        %v768 = vmul.f32 %v761, %v541
        %v769 = vmul.f32 %v761, %v542
        %v770 = vmul.f32 %v761, %v543
        %v771 = vmul.f32 %v761, %v544
        %v772 = vmul.f32 %v761, %v545
        %v773 = vmul.f32 %v761, %v546
        %v774 = vmul.f32 %v761, %v547
        %v775 = vmul.f32 %v761, %v548
        %v776 = vmul.f32 %v761, %v549
        %v777 = vmul.f32 %v761, %v550
        %v778 = vstv %s759
        %v779 = vmul.f32 %v778, %v484
        %v780 = vmul.f32 %v778, %v485
        %v781 = vmul.f32 %v778, %v486
        %v782 = vmul.f32 %v778, %v487
        %v783 = vmul.f32 %v778, %v488
        %v784 = vmul.f32 %v778, %v489
        %v785 = vmul.f32 %v778, %v490
        %v786 = vmul.f32 %v778, %v491
        %v787 = vmul.f32 %v778, %v492
        %v788 = vmul.f32 %v778, %v493
        %v789 = vmul.f32 %v778, %v494
        %v790 = vmul.f32 %v778, %v495
        %v791 = vmul.f32 %v778, %v496
        %v792 = vmul.f32 %v778, %v497
        %v793 = vmul.f32 %v778, %v498
        %v794 = vmul.f32 %v778, %v499
        %v795 = vadd.f32 %v762, %v779
        %v796 = vadd.f32 %v763, %v780
        %v797 = vadd.f32 %v764, %v781
        %v798 = vadd.f32 %v765, %v782
        %v799 = vadd.f32 %v766, %v783
        %v800 = vadd.f32 %v767, %v784
        %v801 = vadd.f32 %v768, %v785
        %v802 = vadd.f32 %v769, %v786
        %v803 = vadd.f32 %v770, %v787
        %v804 = vadd.f32 %v771, %v788
        %v805 = vadd.f32 %v772, %v789
        %v806 = vadd.f32 %v773, %v790
        %v807 = vadd.f32 %v774, %v791
        %v808 = vadd.f32 %v775, %v792
        %v809 = vadd.f32 %v776, %v793
        %v810 = vadd.f32 %v777, %v794
        %v811 = vstv %s760
        %v812 = vmul.f32 %v811, %v584
        %v813 = vmul.f32 %v811, %v585
        %v814 = vmul.f32 %v811, %v586
        %v815 = vmul.f32 %v811, %v587
        %v816 = vmul.f32 %v811, %v588
        %v817 = vmul.f32 %v811, %v589
        %v818 = vmul.f32 %v811, %v590
        %v819 = vmul.f32 %v811, %v591
        %v820 = vmul.f32 %v811, %v592
        %v821 = vmul.f32 %v811, %v593
        %v822 = vmul.f32 %v811, %v594
        %v823 = vmul.f32 %v811, %v595
        %v824 = vmul.f32 %v811, %v596
        %v825 = vmul.f32 %v811, %v597
        %v826 = vmul.f32 %v811, %v598
        %v827 = vmul.f32 %v811, %v599
        %v828 = vadd.f32 %v795, %v812
        %v829 = vadd.f32 %v796, %v813
        %v830 = vadd.f32 %v797, %v814
        %v831 = vadd.f32 %v798, %v815
        %v832 = vadd.f32 %v799, %v816
        %v833 = vadd.f32 %v800, %v817
        %v834 = vadd.f32 %v801, %v818
        %v835 = vadd.f32 %v802, %v819
        %v836 = vadd.f32 %v803, %v820
        %v837 = vadd.f32 %v804, %v821
        %v838 = vadd.f32 %v805, %v822
        %v839 = vadd.f32 %v806, %v823
        %v840 = vadd.f32 %v807, %v824
        %v841 = vadd.f32 %v808, %v825
        %v842 = vadd.f32 %v809, %v826
        %v843 = vadd.f32 %v810, %v827
        %v844 = vmax.f32 %v828, 0.0
        %v845 = vmax.f32 %v829, 0.0
        %v846 = vmax.f32 %v830, 0.0
        %v847 = vmax.f32 %v831, 0.0
        %v848 = vmax.f32 %v832, 0.0
        %v849 = vmax.f32 %v833, 0.0
        %v850 = vmax.f32 %v834, 0.0
        %v851 = vmax.f32 %v835, 0.0
        %v852 = vmax.f32 %v836, 0.0
        %v853 = vmax.f32 %v837, 0.0
        %v854 = vmax.f32 %v838, 0.0
        %v855 = vmax.f32 %v839, 0.0
        %v856 = vmax.f32 %v840, 0.0
        %v857 = vmax.f32 %v841, 0.0
        %v858 = vmax.f32 %v842, 0.0
        %v859 = vmax.f32 %v843, 0.0
        %860 = vrot.lane.b32.xlu0 %v844, 127
        %v861 = vpop.permute.xlu0 %860
        %862 = vrot.lane.b32.xlu0 %v845, 127
        %v863 = vpop.permute.xlu0 %862
        %864 = vrot.lane.b32.xlu0 %v846, 127
        %v865 = vpop.permute.xlu0 %864
        %866 = vrot.lane.b32.xlu0 %v847, 127
        %v867 = vpop.permute.xlu0 %866
        %868 = vrot.lane.b32.xlu0 %v848, 127
        %v869 = vpop.permute.xlu0 %868
        %870 = vrot.lane.b32.xlu0 %v849, 127
        %v871 = vpop.permute.xlu0 %870
        %872 = vrot.lane.b32.xlu0 %v850, 127
        %v873 = vpop.permute.xlu0 %872
        %874 = vrot.lane.b32.xlu0 %v851, 127
        %v875 = vpop.permute.xlu0 %874
        %876 = vrot.lane.b32.xlu0 %v852, 127
        %v877 = vpop.permute.xlu0 %876
        %878 = vrot.lane.b32.xlu0 %v853, 127
        %v879 = vpop.permute.xlu0 %878
        %880 = vrot.lane.b32.xlu0 %v854, 127
        %v881 = vpop.permute.xlu0 %880
        %882 = vrot.lane.b32.xlu0 %v855, 127
        %v883 = vpop.permute.xlu0 %882
        %884 = vrot.lane.b32.xlu0 %v856, 127
        %v885 = vpop.permute.xlu0 %884
        %886 = vrot.lane.b32.xlu0 %v857, 127
        %v887 = vpop.permute.xlu0 %886
        %888 = vrot.lane.b32.xlu0 %v858, 127
        %v889 = vpop.permute.xlu0 %888
        %890 = vrot.lane.b32.xlu0 %v859, 127
        %v891 = vpop.permute.xlu0 %890
        %v892 = vmax.f32 %v844, %v861
        %v893 = vmax.f32 %v845, %v863
        %v894 = vmax.f32 %v846, %v865
        %v895 = vmax.f32 %v847, %v867
        %v896 = vmax.f32 %v848, %v869
        %v897 = vmax.f32 %v849, %v871
        %v898 = vmax.f32 %v850, %v873
        %v899 = vmax.f32 %v851, %v875
        %v900 = vmax.f32 %v852, %v877
        %v901 = vmax.f32 %v853, %v879
        %v902 = vmax.f32 %v854, %v881
        %v903 = vmax.f32 %v855, %v883
        %v904 = vmax.f32 %v856, %v885
        %v905 = vmax.f32 %v857, %v887
        %v906 = vmax.f32 %v858, %v889
        %v907 = vmax.f32 %v859, %v891
        %v908 = vpack.c.bf16 %v893, %v892
        %v909 = vpack.c.bf16 %v895, %v894
        %v910 = vpack.c.bf16 %v897, %v896
        %v911 = vpack.c.bf16 %v899, %v898
        %v912 = vpack.c.bf16 %v901, %v900
        %v913 = vpack.c.bf16 %v903, %v902
        %v914 = vpack.c.bf16 %v905, %v904
        %v915 = vpack.c.bf16 %v907, %v906
        %s916 = sld [smem:[#allocation2 + $0x6]]
        %s917 = sld [smem:[#allocation2 + $0x7]]
        %s918 = sld [smem:[#allocation2 + $0x8]]
        %v919 = vstv %s916
        %v920 = vmul.f32 %v919, %v535
        %v921 = vmul.f32 %v919, %v536
        %v922 = vmul.f32 %v919, %v537
        %v923 = vmul.f32 %v919, %v538
        %v924 = vmul.f32 %v919, %v539
        %v925 = vmul.f32 %v919, %v540
        %v926 = vmul.f32 %v919, %v541
        %v927 = vmul.f32 %v919, %v542
        %v928 = vmul.f32 %v919, %v543
        %v929 = vmul.f32 %v919, %v544
        %v930 = vmul.f32 %v919, %v545
        %v931 = vmul.f32 %v919, %v546
        %v932 = vmul.f32 %v919, %v547
        %v933 = vmul.f32 %v919, %v548
        %v934 = vmul.f32 %v919, %v549
        %v935 = vmul.f32 %v919, %v550
        %v936 = vstv %s917
        %v937 = vmul.f32 %v936, %v484
        %v938 = vmul.f32 %v936, %v485
        %v939 = vmul.f32 %v936, %v486
        %v940 = vmul.f32 %v936, %v487
        %v941 = vmul.f32 %v936, %v488
        %v942 = vmul.f32 %v936, %v489
        %v943 = vmul.f32 %v936, %v490
        %v944 = vmul.f32 %v936, %v491
        %v945 = vmul.f32 %v936, %v492
        %v946 = vmul.f32 %v936, %v493
        %v947 = vmul.f32 %v936, %v494
        %v948 = vmul.f32 %v936, %v495
        %v949 = vmul.f32 %v936, %v496
        %v950 = vmul.f32 %v936, %v497
        %v951 = vmul.f32 %v936, %v498
        %v952 = vmul.f32 %v936, %v499
        %v953 = vadd.f32 %v920, %v937
        %v954 = vadd.f32 %v921, %v938
        %v955 = vadd.f32 %v922, %v939
        %v956 = vadd.f32 %v923, %v940
        %v957 = vadd.f32 %v924, %v941
        %v958 = vadd.f32 %v925, %v942
        %v959 = vadd.f32 %v926, %v943
        %v960 = vadd.f32 %v927, %v944
        %v961 = vadd.f32 %v928, %v945
        %v962 = vadd.f32 %v929, %v946
        %v963 = vadd.f32 %v930, %v947
        %v964 = vadd.f32 %v931, %v948
        %v965 = vadd.f32 %v932, %v949
        %v966 = vadd.f32 %v933, %v950
        %v967 = vadd.f32 %v934, %v951
        %v968 = vadd.f32 %v935, %v952
        %v969 = vstv %s918
        %v970 = vmul.f32 %v969, %v584
        %v971 = vmul.f32 %v969, %v585
        %v972 = vmul.f32 %v969, %v586
        %v973 = vmul.f32 %v969, %v587
        %v974 = vmul.f32 %v969, %v588
        %v975 = vmul.f32 %v969, %v589
        %v976 = vmul.f32 %v969, %v590
        %v977 = vmul.f32 %v969, %v591
        %v978 = vmul.f32 %v969, %v592
        %v979 = vmul.f32 %v969, %v593
        %v980 = vmul.f32 %v969, %v594
        %v981 = vmul.f32 %v969, %v595
        %v982 = vmul.f32 %v969, %v596
        %v983 = vmul.f32 %v969, %v597
        %v984 = vmul.f32 %v969, %v598
        %v985 = vmul.f32 %v969, %v599
        %v986 = vadd.f32 %v953, %v970
        %v987 = vadd.f32 %v954, %v971
        %v988 = vadd.f32 %v955, %v972
        %v989 = vadd.f32 %v956, %v973
        %v990 = vadd.f32 %v957, %v974
        %v991 = vadd.f32 %v958, %v975
        %v992 = vadd.f32 %v959, %v976
        %v993 = vadd.f32 %v960, %v977
        %v994 = vadd.f32 %v961, %v978
        %v995 = vadd.f32 %v962, %v979
        %v996 = vadd.f32 %v963, %v980
        %v997 = vadd.f32 %v964, %v981
        %v998 = vadd.f32 %v965, %v982
        %v999 = vadd.f32 %v966, %v983
        %v1000 = vadd.f32 %v967, %v984
        %v1001 = vadd.f32 %v968, %v985
        %v1002 = vmax.f32 %v986, 0.0
        %v1003 = vmax.f32 %v987, 0.0
        %v1004 = vmax.f32 %v988, 0.0
        %v1005 = vmax.f32 %v989, 0.0
        %v1006 = vmax.f32 %v990, 0.0
        %v1007 = vmax.f32 %v991, 0.0
        %v1008 = vmax.f32 %v992, 0.0
        %v1009 = vmax.f32 %v993, 0.0
        %v1010 = vmax.f32 %v994, 0.0
        %v1011 = vmax.f32 %v995, 0.0
        %v1012 = vmax.f32 %v996, 0.0
        %v1013 = vmax.f32 %v997, 0.0
        %v1014 = vmax.f32 %v998, 0.0
        %v1015 = vmax.f32 %v999, 0.0
        %v1016 = vmax.f32 %v1000, 0.0
        %v1017 = vmax.f32 %v1001, 0.0
        %1018 = vrot.lane.b32.xlu0 %v1002, 127
        %v1019 = vpop.permute.xlu0 %1018
        %1020 = vrot.lane.b32.xlu0 %v1003, 127
        %v1021 = vpop.permute.xlu0 %1020
        %1022 = vrot.lane.b32.xlu0 %v1004, 127
        %v1023 = vpop.permute.xlu0 %1022
        %1024 = vrot.lane.b32.xlu0 %v1005, 127
        %v1025 = vpop.permute.xlu0 %1024
        %1026 = vrot.lane.b32.xlu0 %v1006, 127
        %v1027 = vpop.permute.xlu0 %1026
        %1028 = vrot.lane.b32.xlu0 %v1007, 127
        %v1029 = vpop.permute.xlu0 %1028
        %1030 = vrot.lane.b32.xlu0 %v1008, 127
        %v1031 = vpop.permute.xlu0 %1030
        %1032 = vrot.lane.b32.xlu0 %v1009, 127
        %v1033 = vpop.permute.xlu0 %1032
        %1034 = vrot.lane.b32.xlu0 %v1010, 127
        %v1035 = vpop.permute.xlu0 %1034
        %1036 = vrot.lane.b32.xlu0 %v1011, 127
        %v1037 = vpop.permute.xlu0 %1036
        %1038 = vrot.lane.b32.xlu0 %v1012, 127
        %v1039 = vpop.permute.xlu0 %1038
        %1040 = vrot.lane.b32.xlu0 %v1013, 127
        %v1041 = vpop.permute.xlu0 %1040
        %1042 = vrot.lane.b32.xlu0 %v1014, 127
        %v1043 = vpop.permute.xlu0 %1042
        %1044 = vrot.lane.b32.xlu0 %v1015, 127
        %v1045 = vpop.permute.xlu0 %1044
        %1046 = vrot.lane.b32.xlu0 %v1016, 127
        %v1047 = vpop.permute.xlu0 %1046
        %1048 = vrot.lane.b32.xlu0 %v1017, 127
        %v1049 = vpop.permute.xlu0 %1048
        %v1050 = vmax.f32 %v1002, %v1019
        %v1051 = vmax.f32 %v1003, %v1021
        %v1052 = vmax.f32 %v1004, %v1023
        %v1053 = vmax.f32 %v1005, %v1025
        %v1054 = vmax.f32 %v1006, %v1027
        %v1055 = vmax.f32 %v1007, %v1029
        %v1056 = vmax.f32 %v1008, %v1031
        %v1057 = vmax.f32 %v1009, %v1033
        %v1058 = vmax.f32 %v1010, %v1035
        %v1059 = vmax.f32 %v1011, %v1037
        %v1060 = vmax.f32 %v1012, %v1039
        %v1061 = vmax.f32 %v1013, %v1041
        %v1062 = vmax.f32 %v1014, %v1043
        %v1063 = vmax.f32 %v1015, %v1045
        %v1064 = vmax.f32 %v1016, %v1047
        %v1065 = vmax.f32 %v1017, %v1049
        %v1066 = vpack.c.bf16 %v1051, %v1050
        %v1067 = vpack.c.bf16 %v1053, %v1052
        %v1068 = vpack.c.bf16 %v1055, %v1054
        %v1069 = vpack.c.bf16 %v1057, %v1056
        %v1070 = vpack.c.bf16 %v1059, %v1058
        %v1071 = vpack.c.bf16 %v1061, %v1060
        %v1072 = vpack.c.bf16 %v1063, %v1062
        %v1073 = vpack.c.bf16 %v1065, %v1064
        %s1074 = sld [smem:[#allocation2 + $0x9]]
        %s1075 = sld [smem:[#allocation2 + $0xa]]
        %s1076 = sld [smem:[#allocation2 + $0xb]]
        %v1077 = vstv %s1074
        %v1078 = vmul.f32 %v1077, %v535
        %v1079 = vmul.f32 %v1077, %v536
        %v1080 = vmul.f32 %v1077, %v537
        %v1081 = vmul.f32 %v1077, %v538
        %v1082 = vmul.f32 %v1077, %v539
        %v1083 = vmul.f32 %v1077, %v540
        %v1084 = vmul.f32 %v1077, %v541
        %v1085 = vmul.f32 %v1077, %v542
        %v1086 = vmul.f32 %v1077, %v543
        %v1087 = vmul.f32 %v1077, %v544
        %v1088 = vmul.f32 %v1077, %v545
        %v1089 = vmul.f32 %v1077, %v546
        %v1090 = vmul.f32 %v1077, %v547
        %v1091 = vmul.f32 %v1077, %v548
        %v1092 = vmul.f32 %v1077, %v549
        %v1093 = vmul.f32 %v1077, %v550
        %v1094 = vstv %s1075
        %v1095 = vmul.f32 %v1094, %v484
        %v1096 = vmul.f32 %v1094, %v485
        %v1097 = vmul.f32 %v1094, %v486
        %v1098 = vmul.f32 %v1094, %v487
        %v1099 = vmul.f32 %v1094, %v488
        %v1100 = vmul.f32 %v1094, %v489
        %v1101 = vmul.f32 %v1094, %v490
        %v1102 = vmul.f32 %v1094, %v491
        %v1103 = vmul.f32 %v1094, %v492
        %v1104 = vmul.f32 %v1094, %v493
        %v1105 = vmul.f32 %v1094, %v494
        %v1106 = vmul.f32 %v1094, %v495
        %v1107 = vmul.f32 %v1094, %v496
        %v1108 = vmul.f32 %v1094, %v497
        %v1109 = vmul.f32 %v1094, %v498
        %v1110 = vmul.f32 %v1094, %v499
        %v1111 = vadd.f32 %v1078, %v1095
        %v1112 = vadd.f32 %v1079, %v1096
        %v1113 = vadd.f32 %v1080, %v1097
        %v1114 = vadd.f32 %v1081, %v1098
        %v1115 = vadd.f32 %v1082, %v1099
        %v1116 = vadd.f32 %v1083, %v1100
        %v1117 = vadd.f32 %v1084, %v1101
        %v1118 = vadd.f32 %v1085, %v1102
        %v1119 = vadd.f32 %v1086, %v1103
        %v1120 = vadd.f32 %v1087, %v1104
        %v1121 = vadd.f32 %v1088, %v1105
        %v1122 = vadd.f32 %v1089, %v1106
        %v1123 = vadd.f32 %v1090, %v1107
        %v1124 = vadd.f32 %v1091, %v1108
        %v1125 = vadd.f32 %v1092, %v1109
        %v1126 = vadd.f32 %v1093, %v1110
        %v1127 = vstv %s1076
        %v1128 = vmul.f32 %v1127, %v584
        %v1129 = vmul.f32 %v1127, %v585
        %v1130 = vmul.f32 %v1127, %v586
        %v1131 = vmul.f32 %v1127, %v587
        %v1132 = vmul.f32 %v1127, %v588
        %v1133 = vmul.f32 %v1127, %v589
        %v1134 = vmul.f32 %v1127, %v590
        %v1135 = vmul.f32 %v1127, %v591
        %v1136 = vmul.f32 %v1127, %v592
        %v1137 = vmul.f32 %v1127, %v593
        %v1138 = vmul.f32 %v1127, %v594
        %v1139 = vmul.f32 %v1127, %v595
        %v1140 = vmul.f32 %v1127, %v596
        %v1141 = vmul.f32 %v1127, %v597
        %v1142 = vmul.f32 %v1127, %v598
        %v1143 = vmul.f32 %v1127, %v599
        %v1144 = vadd.f32 %v1111, %v1128
        %v1145 = vadd.f32 %v1112, %v1129
        %v1146 = vadd.f32 %v1113, %v1130
        %v1147 = vadd.f32 %v1114, %v1131
        %v1148 = vadd.f32 %v1115, %v1132
        %v1149 = vadd.f32 %v1116, %v1133
        %v1150 = vadd.f32 %v1117, %v1134
        %v1151 = vadd.f32 %v1118, %v1135
        %v1152 = vadd.f32 %v1119, %v1136
        %v1153 = vadd.f32 %v1120, %v1137
        %v1154 = vadd.f32 %v1121, %v1138
        %v1155 = vadd.f32 %v1122, %v1139
        %v1156 = vadd.f32 %v1123, %v1140
        %v1157 = vadd.f32 %v1124, %v1141
        %v1158 = vadd.f32 %v1125, %v1142
        %v1159 = vadd.f32 %v1126, %v1143
        %v1160 = vmax.f32 %v1144, 0.0
        %v1161 = vmax.f32 %v1145, 0.0
        %v1162 = vmax.f32 %v1146, 0.0
        %v1163 = vmax.f32 %v1147, 0.0
        %v1164 = vmax.f32 %v1148, 0.0
        %v1165 = vmax.f32 %v1149, 0.0
        %v1166 = vmax.f32 %v1150, 0.0
        %v1167 = vmax.f32 %v1151, 0.0
        %v1168 = vmax.f32 %v1152, 0.0
        %v1169 = vmax.f32 %v1153, 0.0
        %v1170 = vmax.f32 %v1154, 0.0
        %v1171 = vmax.f32 %v1155, 0.0
        %v1172 = vmax.f32 %v1156, 0.0
        %v1173 = vmax.f32 %v1157, 0.0
        %v1174 = vmax.f32 %v1158, 0.0
        %v1175 = vmax.f32 %v1159, 0.0
        %1176 = vrot.lane.b32.xlu0 %v1160, 127
        %v1177 = vpop.permute.xlu0 %1176
        %1178 = vrot.lane.b32.xlu0 %v1161, 127
        %v1179 = vpop.permute.xlu0 %1178
        %1180 = vrot.lane.b32.xlu0 %v1162, 127
        %v1181 = vpop.permute.xlu0 %1180
        %1182 = vrot.lane.b32.xlu0 %v1163, 127
        %v1183 = vpop.permute.xlu0 %1182
        %1184 = vrot.lane.b32.xlu0 %v1164, 127
        %v1185 = vpop.permute.xlu0 %1184
        %1186 = vrot.lane.b32.xlu0 %v1165, 127
        %v1187 = vpop.permute.xlu0 %1186
        %1188 = vrot.lane.b32.xlu0 %v1166, 127
        %v1189 = vpop.permute.xlu0 %1188
        %1190 = vrot.lane.b32.xlu0 %v1167, 127
        %v1191 = vpop.permute.xlu0 %1190
        %1192 = vrot.lane.b32.xlu0 %v1168, 127
        %v1193 = vpop.permute.xlu0 %1192
        %1194 = vrot.lane.b32.xlu0 %v1169, 127
        %v1195 = vpop.permute.xlu0 %1194
        %1196 = vrot.lane.b32.xlu0 %v1170, 127
        %v1197 = vpop.permute.xlu0 %1196
        %1198 = vrot.lane.b32.xlu0 %v1171, 127
        %v1199 = vpop.permute.xlu0 %1198
        %1200 = vrot.lane.b32.xlu0 %v1172, 127
        %v1201 = vpop.permute.xlu0 %1200
        %1202 = vrot.lane.b32.xlu0 %v1173, 127
        %v1203 = vpop.permute.xlu0 %1202
        %1204 = vrot.lane.b32.xlu0 %v1174, 127
        %v1205 = vpop.permute.xlu0 %1204
        %1206 = vrot.lane.b32.xlu0 %v1175, 127
        %v1207 = vpop.permute.xlu0 %1206
        %v1208 = vmax.f32 %v1160, %v1177
        %v1209 = vmax.f32 %v1161, %v1179
        %v1210 = vmax.f32 %v1162, %v1181
        %v1211 = vmax.f32 %v1163, %v1183
        %v1212 = vmax.f32 %v1164, %v1185
        %v1213 = vmax.f32 %v1165, %v1187
        %v1214 = vmax.f32 %v1166, %v1189
        %v1215 = vmax.f32 %v1167, %v1191
        %v1216 = vmax.f32 %v1168, %v1193
        %v1217 = vmax.f32 %v1169, %v1195
        %v1218 = vmax.f32 %v1170, %v1197
        %v1219 = vmax.f32 %v1171, %v1199
        %v1220 = vmax.f32 %v1172, %v1201
        %v1221 = vmax.f32 %v1173, %v1203
        %v1222 = vmax.f32 %v1174, %v1205
        %v1223 = vmax.f32 %v1175, %v1207
        %v1224 = vpack.c.bf16 %v1209, %v1208
        %v1225 = vpack.c.bf16 %v1211, %v1210
        %v1226 = vpack.c.bf16 %v1213, %v1212
        %v1227 = vpack.c.bf16 %v1215, %v1214
        %v1228 = vpack.c.bf16 %v1217, %v1216
        %v1229 = vpack.c.bf16 %v1219, %v1218
        %v1230 = vpack.c.bf16 %v1221, %v1220
        %v1231 = vpack.c.bf16 %v1223, %v1222
        %v1232 = vld [vmem:[%s5] sm:$0xf]
        %v1233 = vld [vmem:[%s5 + $0x4] sm:$0xf]
        %v1234 = vld [vmem:[%s5 + $0x8] sm:$0xf]
        %v1235 = vld [vmem:[%s5 + $0xc] sm:$0xf]
        %v1236 = vld [vmem:[%s5 + $0x10] sm:$0xf]
        %v1237 = vld [vmem:[%s5 + $0x14] sm:$0xf]
        %v1238 = vld [vmem:[%s5 + $0x18] sm:$0xf]
        %v1239 = vld [vmem:[%s5 + $0x1c] sm:$0xf]
        %v1240 = vld [vmem:[%s5 + $0x20] sm:$0xf]
        %v1241 = vld [vmem:[%s5 + $0x24] sm:$0xf]
        %v1242 = vld [vmem:[%s5 + $0x28] sm:$0xf]
        %v1243 = vld [vmem:[%s5 + $0x2c] sm:$0xf]
        %v1244 = vld [vmem:[%s5 + $0x30] sm:$0xf]
        %v1245 = vld [vmem:[%s5 + $0x34] sm:$0xf]
        %v1246 = vld [vmem:[%s5 + $0x38] sm:$0xf]
        %v1247 = vld [vmem:[%s5 + $0x3c] sm:$0xf]
        %v1248 = vld [vmem:[%s5 + $0x40] sm:$0xf]
        %v1249 = vld [vmem:[%s5 + $0x44] sm:$0xf]
        %v1250 = vld [vmem:[%s5 + $0x48] sm:$0xf]
        %v1251 = vld [vmem:[%s5 + $0x4c] sm:$0xf]
        %v1252 = vld [vmem:[%s5 + $0x50] sm:$0xf]
        %v1253 = vld [vmem:[%s5 + $0x54] sm:$0xf]
        %v1254 = vld [vmem:[%s5 + $0x58] sm:$0xf]
        %v1255 = vld [vmem:[%s5 + $0x5c] sm:$0xf]
        %v1256 = vld [vmem:[%s5 + $0x60] sm:$0xf]
        %v1257 = vld [vmem:[%s5 + $0x64] sm:$0xf]
        %v1258 = vld [vmem:[%s5 + $0x68] sm:$0xf]
        %v1259 = vld [vmem:[%s5 + $0x6c] sm:$0xf]
        %v1260 = vld [vmem:[%s5 + $0x70] sm:$0xf]
        %v1261 = vld [vmem:[%s5 + $0x74] sm:$0xf]
        %v1262 = vld [vmem:[%s5 + $0x78] sm:$0xf]
        %v1263 = vld [vmem:[%s5 + $0x7c] sm:$0xf]
        %v1264 = vld [vmem:[%s5 + $0x80] sm:$0xf]
        %v1265 = vld [vmem:[%s5 + $0x84] sm:$0xf]
        %v1266 = vld [vmem:[%s5 + $0x88] sm:$0xf]
        %v1267 = vld [vmem:[%s5 + $0x8c] sm:$0xf]
        %v1268 = vld [vmem:[%s5 + $0x90] sm:$0xf]
        %v1269 = vld [vmem:[%s5 + $0x94] sm:$0xf]
        %v1270 = vld [vmem:[%s5 + $0x98] sm:$0xf]
        %v1271 = vld [vmem:[%s5 + $0x9c] sm:$0xf]
        %v1272 = vld [vmem:[%s5 + $0xa0] sm:$0xf]
        %v1273 = vld [vmem:[%s5 + $0xa4] sm:$0xf]
        %v1274 = vld [vmem:[%s5 + $0xa8] sm:$0xf]
        %v1275 = vld [vmem:[%s5 + $0xac] sm:$0xf]
        %v1276 = vld [vmem:[%s5 + $0xb0] sm:$0xf]
        %v1277 = vld [vmem:[%s5 + $0xb4] sm:$0xf]
        %v1278 = vld [vmem:[%s5 + $0xb8] sm:$0xf]
        %v1279 = vld [vmem:[%s5 + $0xbc] sm:$0xf]
        %v1280 = vld [vmem:[%s5 + $0xc0] sm:$0xf]
        %v1281 = vld [vmem:[%s5 + $0xc4] sm:$0xf]
        %v1282 = vld [vmem:[%s5 + $0xc8] sm:$0xf]
        %v1283 = vld [vmem:[%s5 + $0xcc] sm:$0xf]
        %v1284 = vld [vmem:[%s5 + $0xd0] sm:$0xf]
        %v1285 = vld [vmem:[%s5 + $0xd4] sm:$0xf]
        %v1286 = vld [vmem:[%s5 + $0xd8] sm:$0xf]
        %v1287 = vld [vmem:[%s5 + $0xdc] sm:$0xf]
        %v1288 = vld [vmem:[%s5 + $0xe0] sm:$0xf]
        %v1289 = vld [vmem:[%s5 + $0xe4] sm:$0xf]
        %v1290 = vld [vmem:[%s5 + $0xe8] sm:$0xf]
        %v1291 = vld [vmem:[%s5 + $0xec] sm:$0xf]
        %v1292 = vld [vmem:[%s5 + $0xf0] sm:$0xf]
        %v1293 = vld [vmem:[%s5 + $0xf4] sm:$0xf]
        %v1294 = vld [vmem:[%s5 + $0xf8] sm:$0xf]
        %v1295 = vld [vmem:[%s5 + $0xfc] sm:$0xf]
        %v1296 = vld [vmem:[%s6] sm:$0x1]
        %v1298 = vlaneseq
        %v1299 = vshrl.u32 %v1298, 7
        %v1300 = vsub.s32 0, %v1299
        %v1301 = vrot.slane %v1296, %v1300
        %v1367 = vunpack.c.l.b16 %v1232
        %v1368 = vunpack.c.l.b16 %v1233
        %v1369 = vunpack.c.l.b16 %v1234
        %v1370 = vunpack.c.l.b16 %v1235
        %v1371 = vunpack.c.l.b16 %v1236
        %v1372 = vunpack.c.l.b16 %v1237
        %v1373 = vunpack.c.l.b16 %v1238
        %v1374 = vunpack.c.l.b16 %v1239
        %v1375 = vunpack.c.l.b16 %v1240
        %v1376 = vunpack.c.l.b16 %v1241
        %v1377 = vunpack.c.l.b16 %v1242
        %v1378 = vunpack.c.l.b16 %v1243
        %v1379 = vunpack.c.l.b16 %v1244
        %v1380 = vunpack.c.l.b16 %v1245
        %v1381 = vunpack.c.l.b16 %v1246
        %v1382 = vunpack.c.l.b16 %v1247
        %v1383 = vunpack.c.l.b16 %v1248
        %v1384 = vunpack.c.l.b16 %v1249
        %v1385 = vunpack.c.l.b16 %v1250
        %v1386 = vunpack.c.l.b16 %v1251
        %v1387 = vunpack.c.l.b16 %v1252
        %v1388 = vunpack.c.l.b16 %v1253
        %v1389 = vunpack.c.l.b16 %v1254
        %v1390 = vunpack.c.l.b16 %v1255
        %v1391 = vunpack.c.l.b16 %v1256
        %v1392 = vunpack.c.l.b16 %v1257
        %v1393 = vunpack.c.l.b16 %v1258
        %v1394 = vunpack.c.l.b16 %v1259
        %v1395 = vunpack.c.l.b16 %v1260
        %v1396 = vunpack.c.l.b16 %v1261
        %v1397 = vunpack.c.l.b16 %v1262
        %v1398 = vunpack.c.l.b16 %v1263
        %v1399 = vunpack.c.l.b16 %v1264
        %v1400 = vunpack.c.l.b16 %v1265
        %v1401 = vunpack.c.l.b16 %v1266
        %v1402 = vunpack.c.l.b16 %v1267
        %v1403 = vunpack.c.l.b16 %v1268
        %v1404 = vunpack.c.l.b16 %v1269
        %v1405 = vunpack.c.l.b16 %v1270
        %v1406 = vunpack.c.l.b16 %v1271
        %v1407 = vunpack.c.l.b16 %v1272
        %v1408 = vunpack.c.l.b16 %v1273
        %v1409 = vunpack.c.l.b16 %v1274
        %v1410 = vunpack.c.l.b16 %v1275
        %v1411 = vunpack.c.l.b16 %v1276
        %v1412 = vunpack.c.l.b16 %v1277
        %v1413 = vunpack.c.l.b16 %v1278
        %v1414 = vunpack.c.l.b16 %v1279
        %v1415 = vunpack.c.l.b16 %v1280
        %v1416 = vunpack.c.l.b16 %v1281
        %v1417 = vunpack.c.l.b16 %v1282
        %v1418 = vunpack.c.l.b16 %v1283
        %v1419 = vunpack.c.l.b16 %v1284
        %v1420 = vunpack.c.l.b16 %v1285
        %v1421 = vunpack.c.l.b16 %v1286
        %v1422 = vunpack.c.l.b16 %v1287
        %v1423 = vunpack.c.l.b16 %v1288
        %v1424 = vunpack.c.l.b16 %v1289
        %v1425 = vunpack.c.l.b16 %v1290
        %v1426 = vunpack.c.l.b16 %v1291
        %v1427 = vunpack.c.l.b16 %v1292
        %v1428 = vunpack.c.l.b16 %v1293
        %v1429 = vunpack.c.l.b16 %v1294
        %v1430 = vunpack.c.l.b16 %v1295
        %v1431 = vpack.c.b16 %v1368, %v1367
        %v1432 = vpack.c.b16 %v1370, %v1369
        %v1433 = vpack.c.b16 %v1372, %v1371
        %v1434 = vpack.c.b16 %v1374, %v1373
        %v1435 = vpack.c.b16 %v1376, %v1375
        %v1436 = vpack.c.b16 %v1378, %v1377
        %v1437 = vpack.c.b16 %v1380, %v1379
        %v1438 = vpack.c.b16 %v1382, %v1381
        %v1439 = vpack.c.b16 %v1384, %v1383
        %v1440 = vpack.c.b16 %v1386, %v1385
        %v1441 = vpack.c.b16 %v1388, %v1387
        %v1442 = vpack.c.b16 %v1390, %v1389
        %v1443 = vpack.c.b16 %v1392, %v1391
        %v1444 = vpack.c.b16 %v1394, %v1393
        %v1445 = vpack.c.b16 %v1396, %v1395
        %v1446 = vpack.c.b16 %v1398, %v1397
        %v1447 = vpack.c.b16 %v1400, %v1399
        %v1448 = vpack.c.b16 %v1402, %v1401
        %v1449 = vpack.c.b16 %v1404, %v1403
        %v1450 = vpack.c.b16 %v1406, %v1405
        %v1451 = vpack.c.b16 %v1408, %v1407
        %v1452 = vpack.c.b16 %v1410, %v1409
        %v1453 = vpack.c.b16 %v1412, %v1411
        %v1454 = vpack.c.b16 %v1414, %v1413
        %v1455 = vpack.c.b16 %v1416, %v1415
        %v1456 = vpack.c.b16 %v1418, %v1417
        %v1457 = vpack.c.b16 %v1420, %v1419
        %v1458 = vpack.c.b16 %v1422, %v1421
        %v1459 = vpack.c.b16 %v1424, %v1423
        %v1460 = vpack.c.b16 %v1426, %v1425
        %v1461 = vpack.c.b16 %v1428, %v1427
        %v1462 = vpack.c.b16 %v1430, %v1429
        %1495 = vmatprep.subr.bf16.mxu0 0
        %1496 = vmatpush1.bf16.msra.mxu0 %v1438
        %1497 = vmatprep.subr.bf16.mxu0 0
        %1498 = vmatpush1.bf16.msra.mxu0 %v1437
        %1499 = vmatprep.subr.bf16.mxu0 0
        %1500 = vmatpush1.bf16.msra.mxu0 %v1436
        %1501 = vmatprep.subr.bf16.mxu0 0
        %1502 = vmatpush1.bf16.msra.mxu0 %v1435
        %1503 = vmatprep.subr.bf16.mxu0 0
        %1504 = vmatpush1.bf16.msra.mxu0 %v1434
        %1505 = vmatprep.subr.bf16.mxu0 0
        %1506 = vmatpush1.bf16.msra.mxu0 %v1433
        %1507 = vmatprep.subr.bf16.mxu0 0
        %1508 = vmatpush1.bf16.msra.mxu0 %v1432
        %1509 = vmatprep.subr.bf16.mxu0 0
        %1510 = vmatpush1.bf16.msra.mxu0 %v1431
        %1511 = vmatprep.subr.bf16.mxu0 0
        %1512 = vmatpush2.bf16.msra.mxu0 %v1446
        %1513 = vmatprep.subr.bf16.mxu0 0
        %1514 = vmatpush2.bf16.msra.mxu0 %v1445
        %1515 = vmatprep.subr.bf16.mxu0 0
        %1516 = vmatpush2.bf16.msra.mxu0 %v1444
        %1517 = vmatprep.subr.bf16.mxu0 0
        %1518 = vmatpush2.bf16.msra.mxu0 %v1443
        %1519 = vmatprep.subr.bf16.mxu0 0
        %1520 = vmatpush2.bf16.msra.mxu0 %v1442
        %1521 = vmatprep.subr.bf16.mxu0 0
        %1522 = vmatpush2.bf16.msra.mxu0 %v1441
        %1523 = vmatprep.subr.bf16.mxu0 0
        %1524 = vmatpush2.bf16.msra.mxu0 %v1440
        %1525 = vmatprep.subr.bf16.mxu0 0
        %1526 = vmatpush2.bf16.msra.mxu0 %v1439
        %1527 = vmatprep.mubr.bf16.mxu0 %v908
        %1528 = vmatmul.mubr.bf16.gmra.mxu0 %v750
        %v1529 = vpop.f32.mrf.mxu0
        %v1530 = vadd.f32 %v1301, %v1529
        %v1531 = vpop.f32.mrf.mxu0
        %v1532 = vpop.f32.mrf.mxu0
        %v1533 = vadd.f32 %v1301, %v1532
        %v1534 = vpop.f32.mrf.mxu0
        %1535 = vmatprep.mubr.bf16.mxu0 %v909
        %1536 = vmatmul.mubr.bf16.gmra.mxu0 %v751
        %v1537 = vpop.f32.mrf.mxu0
        %v1538 = vadd.f32 %v1301, %v1537
        %v1539 = vpop.f32.mrf.mxu0
        %v1540 = vpop.f32.mrf.mxu0
        %v1541 = vadd.f32 %v1301, %v1540
        %v1542 = vpop.f32.mrf.mxu0
        %1543 = vmatprep.mubr.bf16.mxu0 %v910
        %1544 = vmatmul.mubr.bf16.gmra.mxu0 %v752
        %v1545 = vpop.f32.mrf.mxu0
        %v1546 = vadd.f32 %v1301, %v1545
        %v1547 = vpop.f32.mrf.mxu0
        %v1548 = vpop.f32.mrf.mxu0
        %v1549 = vadd.f32 %v1301, %v1548
        %v1550 = vpop.f32.mrf.mxu0
        %1551 = vmatprep.mubr.bf16.mxu0 %v911
        %1552 = vmatmul.mubr.bf16.gmra.mxu0 %v753
        %v1553 = vpop.f32.mrf.mxu0
        %v1554 = vadd.f32 %v1301, %v1553
        %v1555 = vpop.f32.mrf.mxu0
        %v1556 = vpop.f32.mrf.mxu0
        %v1557 = vadd.f32 %v1301, %v1556
        %v1558 = vpop.f32.mrf.mxu0
        %1559 = vmatprep.mubr.bf16.mxu0 %v912
        %1560 = vmatmul.mubr.bf16.gmra.mxu0 %v754
        %v1561 = vpop.f32.mrf.mxu0
        %v1562 = vadd.f32 %v1301, %v1561
        %v1563 = vpop.f32.mrf.mxu0
        %v1564 = vpop.f32.mrf.mxu0
        %v1565 = vadd.f32 %v1301, %v1564
        %v1566 = vpop.f32.mrf.mxu0
        %1567 = vmatprep.mubr.bf16.mxu0 %v913
        %1568 = vmatmul.mubr.bf16.gmra.mxu0 %v755
        %v1569 = vpop.f32.mrf.mxu0
        %v1570 = vadd.f32 %v1301, %v1569
        %v1571 = vpop.f32.mrf.mxu0
        %v1572 = vpop.f32.mrf.mxu0
        %v1573 = vadd.f32 %v1301, %v1572
        %v1574 = vpop.f32.mrf.mxu0
        %1575 = vmatprep.mubr.bf16.mxu0 %v914
        %1576 = vmatmul.mubr.bf16.gmra.mxu0 %v756
        %v1577 = vpop.f32.mrf.mxu0
        %v1578 = vadd.f32 %v1301, %v1577
        %v1579 = vpop.f32.mrf.mxu0
        %v1580 = vpop.f32.mrf.mxu0
        %v1581 = vadd.f32 %v1301, %v1580
        %v1582 = vpop.f32.mrf.mxu0
        %1583 = vmatprep.mubr.bf16.mxu0 %v915
        %1584 = vmatmul.mubr.bf16.gmra.mxu0 %v757
        %v1585 = vpop.f32.mrf.mxu0
        %v1586 = vadd.f32 %v1301, %v1585
        %v1587 = vpop.f32.mrf.mxu0
        %v1588 = vpop.f32.mrf.mxu0
        %v1589 = vadd.f32 %v1301, %v1588
        %v1590 = vpop.f32.mrf.mxu0
        %1591 = vdwg.mxu0
        %1592 = vmatprep.subr.bf16.mxu0 0
        %1593 = vmatpush1.bf16.msra.mxu0 %v1454
        %1594 = vmatprep.subr.bf16.mxu0 0
        %1595 = vmatpush1.bf16.msra.mxu0 %v1453
        %1596 = vmatprep.subr.bf16.mxu0 0
        %1597 = vmatpush1.bf16.msra.mxu0 %v1452
        %1598 = vmatprep.subr.bf16.mxu0 0
        %1599 = vmatpush1.bf16.msra.mxu0 %v1451
        %1600 = vmatprep.subr.bf16.mxu0 0
        %1601 = vmatpush1.bf16.msra.mxu0 %v1450
        %1602 = vmatprep.subr.bf16.mxu0 0
        %1603 = vmatpush1.bf16.msra.mxu0 %v1449
        %1604 = vmatprep.subr.bf16.mxu0 0
        %1605 = vmatpush1.bf16.msra.mxu0 %v1448
        %1606 = vmatprep.subr.bf16.mxu0 0
        %1607 = vmatpush1.bf16.msra.mxu0 %v1447
        %1608 = vmatprep.subr.bf16.mxu0 0
        %1609 = vmatpush2.bf16.msra.mxu0 %v1462
        %1610 = vmatprep.subr.bf16.mxu0 0
        %1611 = vmatpush2.bf16.msra.mxu0 %v1461
        %1612 = vmatprep.subr.bf16.mxu0 0
        %1613 = vmatpush2.bf16.msra.mxu0 %v1460
        %1614 = vmatprep.subr.bf16.mxu0 0
        %1615 = vmatpush2.bf16.msra.mxu0 %v1459
        %1616 = vmatprep.subr.bf16.mxu0 0
        %1617 = vmatpush2.bf16.msra.mxu0 %v1458
        %1618 = vmatprep.subr.bf16.mxu0 0
        %1619 = vmatpush2.bf16.msra.mxu0 %v1457
        %1620 = vmatprep.subr.bf16.mxu0 0
        %1621 = vmatpush2.bf16.msra.mxu0 %v1456
        %1622 = vmatprep.subr.bf16.mxu0 0
        %1623 = vmatpush2.bf16.msra.mxu0 %v1455
        %1624 = vmatprep.mubr.bf16.mxu0 %v1224
        %1625 = vmatmul.mubr.bf16.gmra.mxu0 %v1066
        %v1626 = vpop.f32.mrf.mxu0
        %v1627 = vadd.f32 %v1530, %v1626
        %v1628 = vpop.f32.mrf.mxu0
        %v1629 = vpop.f32.mrf.mxu0
        %v1630 = vadd.f32 %v1533, %v1629
        %v1631 = vpop.f32.mrf.mxu0
        %1632 = vmatprep.mubr.bf16.mxu0 %v1225
        %1633 = vmatmul.mubr.bf16.gmra.mxu0 %v1067
        %v1634 = vpop.f32.mrf.mxu0
        %v1635 = vadd.f32 %v1538, %v1634
        %v1636 = vpop.f32.mrf.mxu0
        %v1637 = vpop.f32.mrf.mxu0
        %v1638 = vadd.f32 %v1541, %v1637
        %v1639 = vpop.f32.mrf.mxu0
        %1640 = vmatprep.mubr.bf16.mxu0 %v1226
        %1641 = vmatmul.mubr.bf16.gmra.mxu0 %v1068
        %v1642 = vpop.f32.mrf.mxu0
        %v1643 = vadd.f32 %v1546, %v1642
        %v1644 = vpop.f32.mrf.mxu0
        %v1645 = vpop.f32.mrf.mxu0
        %v1646 = vadd.f32 %v1549, %v1645
        %v1647 = vpop.f32.mrf.mxu0
        %1648 = vmatprep.mubr.bf16.mxu0 %v1227
        %1649 = vmatmul.mubr.bf16.gmra.mxu0 %v1069
        %v1650 = vpop.f32.mrf.mxu0
        %v1651 = vadd.f32 %v1554, %v1650
        %v1652 = vpop.f32.mrf.mxu0
        %v1653 = vpop.f32.mrf.mxu0
        %v1654 = vadd.f32 %v1557, %v1653
        %v1655 = vpop.f32.mrf.mxu0
        %1656 = vmatprep.mubr.bf16.mxu0 %v1228
        %1657 = vmatmul.mubr.bf16.gmra.mxu0 %v1070
        %v1658 = vpop.f32.mrf.mxu0
        %v1659 = vadd.f32 %v1562, %v1658
        %v1660 = vpop.f32.mrf.mxu0
        %v1661 = vpop.f32.mrf.mxu0
        %v1662 = vadd.f32 %v1565, %v1661
        %v1663 = vpop.f32.mrf.mxu0
        %1664 = vmatprep.mubr.bf16.mxu0 %v1229
        %1665 = vmatmul.mubr.bf16.gmra.mxu0 %v1071
        %v1666 = vpop.f32.mrf.mxu0
        %v1667 = vadd.f32 %v1570, %v1666
        %v1668 = vpop.f32.mrf.mxu0
        %v1669 = vpop.f32.mrf.mxu0
        %v1670 = vadd.f32 %v1573, %v1669
        %v1671 = vpop.f32.mrf.mxu0
        %1672 = vmatprep.mubr.bf16.mxu0 %v1230
        %1673 = vmatmul.mubr.bf16.gmra.mxu0 %v1072
        %v1674 = vpop.f32.mrf.mxu0
        %v1675 = vadd.f32 %v1578, %v1674
        %v1676 = vpop.f32.mrf.mxu0
        %v1677 = vpop.f32.mrf.mxu0
        %v1678 = vadd.f32 %v1581, %v1677
        %v1679 = vpop.f32.mrf.mxu0
        %1680 = vmatprep.mubr.bf16.mxu0 %v1231
        %1681 = vmatmul.mubr.bf16.gmra.mxu0 %v1073
        %v1682 = vpop.f32.mrf.mxu0
        %v1683 = vadd.f32 %v1586, %v1682
        %v1684 = vpop.f32.mrf.mxu0
        %v1685 = vpop.f32.mrf.mxu0
        %v1686 = vadd.f32 %v1589, %v1685
        %v1687 = vpop.f32.mrf.mxu0
        %1688 = vdwg.mxu0
        %v1689 = vld [vmem:[%s463] sm:$0xff]
        %v1690 = vld [vmem:[%s463 + $0x8] sm:$0xff]
        %v1691 = vld [vmem:[%s463 + $0x10] sm:$0xff]
        %v1692 = vld [vmem:[%s463 + $0x18] sm:$0xff]
        %v1693 = vld [vmem:[%s463 + $0x20] sm:$0xff]
        %v1694 = vld [vmem:[%s463 + $0x28] sm:$0xff]
        %v1695 = vld [vmem:[%s463 + $0x30] sm:$0xff]
        %v1696 = vld [vmem:[%s463 + $0x38] sm:$0xff]
        %v1697 = vld [vmem:[%s463 + $0x40] sm:$0xff]
        %v1698 = vld [vmem:[%s463 + $0x48] sm:$0xff]
        %v1699 = vld [vmem:[%s463 + $0x50] sm:$0xff]
        %v1700 = vld [vmem:[%s463 + $0x58] sm:$0xff]
        %v1701 = vld [vmem:[%s463 + $0x60] sm:$0xff]
        %v1702 = vld [vmem:[%s463 + $0x68] sm:$0xff]
        %v1703 = vld [vmem:[%s463 + $0x70] sm:$0xff]
        %v1704 = vld [vmem:[%s463 + $0x78] sm:$0xff]
        %v1705 = vld [vmem:[%s475] sm:$0xff]
        %v1706 = vld [vmem:[%s475 + $0x8] sm:$0xff]
        %v1707 = vld [vmem:[%s475 + $0x10] sm:$0xff]
        %v1708 = vld [vmem:[%s475 + $0x18] sm:$0xff]
        %v1709 = vld [vmem:[%s475 + $0x20] sm:$0xff]
        %v1710 = vld [vmem:[%s475 + $0x28] sm:$0xff]
        %v1711 = vld [vmem:[%s475 + $0x30] sm:$0xff]
        %v1712 = vld [vmem:[%s475 + $0x38] sm:$0xff]
        %v1713 = vld [vmem:[%s475 + $0x40] sm:$0xff]
        %v1714 = vld [vmem:[%s475 + $0x48] sm:$0xff]
        %v1715 = vld [vmem:[%s475 + $0x50] sm:$0xff]
        %v1716 = vld [vmem:[%s475 + $0x58] sm:$0xff]
        %v1717 = vld [vmem:[%s475 + $0x60] sm:$0xff]
        %v1718 = vld [vmem:[%s475 + $0x68] sm:$0xff]
        %v1719 = vld [vmem:[%s475 + $0x70] sm:$0xff]
        %v1720 = vld [vmem:[%s475 + $0x78] sm:$0xff]
        %1721 = vset.pattern.permute.xlu0 0
        %1722 = vperm.xlu0 %1721, %v1705
        %v1723 = vpop.permute.xlu0 %1722
        %1724 = vset.pattern.permute.xlu0 0
        %1725 = vperm.xlu0 %1724, %v1706
        %v1726 = vpop.permute.xlu0 %1725
        %1727 = vset.pattern.permute.xlu0 0
        %1728 = vperm.xlu0 %1727, %v1707
        %v1729 = vpop.permute.xlu0 %1728
        %1730 = vset.pattern.permute.xlu0 0
        %1731 = vperm.xlu0 %1730, %v1708
        %v1732 = vpop.permute.xlu0 %1731
        %1733 = vset.pattern.permute.xlu0 0
        %1734 = vperm.xlu0 %1733, %v1709
        %v1735 = vpop.permute.xlu0 %1734
        %1736 = vset.pattern.permute.xlu0 0
        %1737 = vperm.xlu0 %1736, %v1710
        %v1738 = vpop.permute.xlu0 %1737
        %1739 = vset.pattern.permute.xlu0 0
        %1740 = vperm.xlu0 %1739, %v1711
        %v1741 = vpop.permute.xlu0 %1740
        %1742 = vset.pattern.permute.xlu0 0
        %1743 = vperm.xlu0 %1742, %v1712
        %v1744 = vpop.permute.xlu0 %1743
        %1745 = vset.pattern.permute.xlu0 0
        %1746 = vperm.xlu0 %1745, %v1713
        %v1747 = vpop.permute.xlu0 %1746
        %1748 = vset.pattern.permute.xlu0 0
        %1749 = vperm.xlu0 %1748, %v1714
        %v1750 = vpop.permute.xlu0 %1749
        %1751 = vset.pattern.permute.xlu0 0
        %1752 = vperm.xlu0 %1751, %v1715
        %v1753 = vpop.permute.xlu0 %1752
        %1754 = vset.pattern.permute.xlu0 0
        %1755 = vperm.xlu0 %1754, %v1716
        %v1756 = vpop.permute.xlu0 %1755
        %1757 = vset.pattern.permute.xlu0 0
        %1758 = vperm.xlu0 %1757, %v1717
        %v1759 = vpop.permute.xlu0 %1758
        %1760 = vset.pattern.permute.xlu0 0
        %1761 = vperm.xlu0 %1760, %v1718
        %v1762 = vpop.permute.xlu0 %1761
        %1763 = vset.pattern.permute.xlu0 0
        %1764 = vperm.xlu0 %1763, %v1719
        %v1765 = vpop.permute.xlu0 %1764
        %1766 = vset.pattern.permute.xlu0 0
        %1767 = vperm.xlu0 %1766, %v1720
        %v1768 = vpop.permute.xlu0 %1767
        %vm1769 = vcmp.lt.s32.totalorder %v501, %v1723
        %vm1770 = vcmp.lt.s32.totalorder %v501, %v1726
        %vm1771 = vcmp.lt.s32.totalorder %v501, %v1729
        %vm1772 = vcmp.lt.s32.totalorder %v501, %v1732
        %vm1773 = vcmp.lt.s32.totalorder %v501, %v1735
        %vm1774 = vcmp.lt.s32.totalorder %v501, %v1738
        %vm1775 = vcmp.lt.s32.totalorder %v501, %v1741
        %vm1776 = vcmp.lt.s32.totalorder %v501, %v1744
        %vm1777 = vcmp.lt.s32.totalorder %v501, %v1747
        %vm1778 = vcmp.lt.s32.totalorder %v501, %v1750
        %vm1779 = vcmp.lt.s32.totalorder %v501, %v1753
        %vm1780 = vcmp.lt.s32.totalorder %v501, %v1756
        %vm1781 = vcmp.lt.s32.totalorder %v501, %v1759
        %vm1782 = vcmp.lt.s32.totalorder %v501, %v1762
        %vm1783 = vcmp.lt.s32.totalorder %v501, %v1765
        %vm1784 = vcmp.lt.s32.totalorder %v501, %v1768
        %v1785 = vsel %vm1769, 1, 0
        %v1786 = vsel %vm1770, 1, 0
        %v1787 = vsel %vm1771, 1, 0
        %v1788 = vsel %vm1772, 1, 0
        %v1789 = vsel %vm1773, 1, 0
        %v1790 = vsel %vm1774, 1, 0
        %v1791 = vsel %vm1775, 1, 0
        %v1792 = vsel %vm1776, 1, 0
        %v1793 = vsel %vm1777, 1, 0
        %v1794 = vsel %vm1778, 1, 0
        %v1795 = vsel %vm1779, 1, 0
        %v1796 = vsel %vm1780, 1, 0
        %v1797 = vsel %vm1781, 1, 0
        %v1798 = vsel %vm1782, 1, 0
        %v1799 = vsel %vm1783, 1, 0
        %v1800 = vsel %vm1784, 1, 0
        %v1801 = vcvt.s32.f32 %v1785
        %v1802 = vcvt.s32.f32 %v1786
        %v1803 = vcvt.s32.f32 %v1787
        %v1804 = vcvt.s32.f32 %v1788
        %v1805 = vcvt.s32.f32 %v1789
        %v1806 = vcvt.s32.f32 %v1790
        %v1807 = vcvt.s32.f32 %v1791
        %v1808 = vcvt.s32.f32 %v1792
        %v1809 = vcvt.s32.f32 %v1793
        %v1810 = vcvt.s32.f32 %v1794
        %v1811 = vcvt.s32.f32 %v1795
        %v1812 = vcvt.s32.f32 %v1796
        %v1813 = vcvt.s32.f32 %v1797
        %v1814 = vcvt.s32.f32 %v1798
        %v1815 = vcvt.s32.f32 %v1799
        %v1816 = vcvt.s32.f32 %v1800
        %v1817 = vmul.f32 %v1801, 0.125
        %v1818 = vmul.f32 %v1802, 0.125
        %v1819 = vmul.f32 %v1803, 0.125
        %v1820 = vmul.f32 %v1804, 0.125
        %v1821 = vmul.f32 %v1805, 0.125
        %v1822 = vmul.f32 %v1806, 0.125
        %v1823 = vmul.f32 %v1807, 0.125
        %v1824 = vmul.f32 %v1808, 0.125
        %v1825 = vmul.f32 %v1809, 0.125
        %v1826 = vmul.f32 %v1810, 0.125
        %v1827 = vmul.f32 %v1811, 0.125
        %v1828 = vmul.f32 %v1812, 0.125
        %v1829 = vmul.f32 %v1813, 0.125
        %v1830 = vmul.f32 %v1814, 0.125
        %v1831 = vmul.f32 %v1815, 0.125
        %v1832 = vmul.f32 %v1816, 0.125
        %vm1833 = vcmask 64512
        %v1834 = vsel %vm1833, %v1817, 0.0
        %1835 = vadd.xlane.f32.xlu0 %v1834
        %v1836 = vpop.xlane.xlu0 %1835
        %v1837 = vsel %vm1833, %v1818, 0.0
        %1838 = vadd.xlane.f32.xlu0 %v1837
        %v1839 = vpop.xlane.xlu0 %1838
        %v1840 = vsel %vm1833, %v1819, 0.0
        %1841 = vadd.xlane.f32.xlu0 %v1840
        %v1842 = vpop.xlane.xlu0 %1841
        %v1843 = vsel %vm1833, %v1820, 0.0
        %1844 = vadd.xlane.f32.xlu0 %v1843
        %v1845 = vpop.xlane.xlu0 %1844
        %v1846 = vsel %vm1833, %v1821, 0.0
        %1847 = vadd.xlane.f32.xlu0 %v1846
        %v1848 = vpop.xlane.xlu0 %1847
        %v1849 = vsel %vm1833, %v1822, 0.0
        %1850 = vadd.xlane.f32.xlu0 %v1849
        %v1851 = vpop.xlane.xlu0 %1850
        %v1852 = vsel %vm1833, %v1823, 0.0
        %1853 = vadd.xlane.f32.xlu0 %v1852
        %v1854 = vpop.xlane.xlu0 %1853
        %v1855 = vsel %vm1833, %v1824, 0.0
        %1856 = vadd.xlane.f32.xlu0 %v1855
        %v1857 = vpop.xlane.xlu0 %1856
        %v1858 = vsel %vm1833, %v1825, 0.0
        %1859 = vadd.xlane.f32.xlu0 %v1858
        %v1860 = vpop.xlane.xlu0 %1859
        %v1861 = vsel %vm1833, %v1826, 0.0
        %1862 = vadd.xlane.f32.xlu0 %v1861
        %v1863 = vpop.xlane.xlu0 %1862
        %v1864 = vsel %vm1833, %v1827, 0.0
        %1865 = vadd.xlane.f32.xlu0 %v1864
        %v1866 = vpop.xlane.xlu0 %1865
        %v1867 = vsel %vm1833, %v1828, 0.0
        %1868 = vadd.xlane.f32.xlu0 %v1867
        %v1869 = vpop.xlane.xlu0 %1868
        %v1870 = vsel %vm1833, %v1829, 0.0
        %1871 = vadd.xlane.f32.xlu0 %v1870
        %v1872 = vpop.xlane.xlu0 %1871
        %v1873 = vsel %vm1833, %v1830, 0.0
        %1874 = vadd.xlane.f32.xlu0 %v1873
        %v1875 = vpop.xlane.xlu0 %1874
        %v1876 = vsel %vm1833, %v1831, 0.0
        %1877 = vadd.xlane.f32.xlu0 %v1876
        %v1878 = vpop.xlane.xlu0 %1877
        %v1879 = vsel %vm1833, %v1832, 0.0
        %1880 = vadd.xlane.f32.xlu0 %v1879
        %v1881 = vpop.xlane.xlu0 %1880
        %v1882 = vmax.f32 %v1836, 1e-05
        %v1883 = vmax.f32 %v1839, 1e-05
        %v1884 = vmax.f32 %v1842, 1e-05
        %v1885 = vmax.f32 %v1845, 1e-05
        %v1886 = vmax.f32 %v1848, 1e-05
        %v1887 = vmax.f32 %v1851, 1e-05
        %v1888 = vmax.f32 %v1854, 1e-05
        %v1889 = vmax.f32 %v1857, 1e-05
        %v1890 = vmax.f32 %v1860, 1e-05
        %v1891 = vmax.f32 %v1863, 1e-05
        %v1892 = vmax.f32 %v1866, 1e-05
        %v1893 = vmax.f32 %v1869, 1e-05
        %v1894 = vmax.f32 %v1872, 1e-05
        %v1895 = vmax.f32 %v1875, 1e-05
        %v1896 = vmax.f32 %v1878, 1e-05
        %v1897 = vmax.f32 %v1881, 1e-05
        %v1898 = vrcp.pop %v1882
        %v1899 = vmul.f32 %v1817, %v1898
        %v1900 = vrcp.pop %v1883
        %v1901 = vmul.f32 %v1818, %v1900
        %v1902 = vrcp.pop %v1884
        %v1903 = vmul.f32 %v1819, %v1902
        %v1904 = vrcp.pop %v1885
        %v1905 = vmul.f32 %v1820, %v1904
        %v1906 = vrcp.pop %v1886
        %v1907 = vmul.f32 %v1821, %v1906
        %v1908 = vrcp.pop %v1887
        %v1909 = vmul.f32 %v1822, %v1908
        %v1910 = vrcp.pop %v1888
        %v1911 = vmul.f32 %v1823, %v1910
        %v1912 = vrcp.pop %v1889
        %v1913 = vmul.f32 %v1824, %v1912
        %v1914 = vrcp.pop %v1890
        %v1915 = vmul.f32 %v1825, %v1914
        %v1916 = vrcp.pop %v1891
        %v1917 = vmul.f32 %v1826, %v1916
        %v1918 = vrcp.pop %v1892
        %v1919 = vmul.f32 %v1827, %v1918
        %v1920 = vrcp.pop %v1893
        %v1921 = vmul.f32 %v1828, %v1920
        %v1922 = vrcp.pop %v1894
        %v1923 = vmul.f32 %v1829, %v1922
        %v1924 = vrcp.pop %v1895
        %v1925 = vmul.f32 %v1830, %v1924
        %v1926 = vrcp.pop %v1896
        %v1927 = vmul.f32 %v1831, %v1926
        %v1928 = vrcp.pop %v1897
        %v1929 = vmul.f32 %v1832, %v1928
        %1930 = vset.pattern.permute.xlu0 0
        %1931 = vperm.xlu0 %1930, %v1689
        %v1932 = vpop.permute.xlu0 %1931
        %1933 = vset.pattern.permute.xlu0 0
        %1934 = vperm.xlu0 %1933, %v1690
        %v1935 = vpop.permute.xlu0 %1934
        %1936 = vset.pattern.permute.xlu0 0
        %1937 = vperm.xlu0 %1936, %v1691
        %v1938 = vpop.permute.xlu0 %1937
        %1939 = vset.pattern.permute.xlu0 0
        %1940 = vperm.xlu0 %1939, %v1692
        %v1941 = vpop.permute.xlu0 %1940
        %1942 = vset.pattern.permute.xlu0 0
        %1943 = vperm.xlu0 %1942, %v1693
        %v1944 = vpop.permute.xlu0 %1943
        %1945 = vset.pattern.permute.xlu0 0
        %1946 = vperm.xlu0 %1945, %v1694
        %v1947 = vpop.permute.xlu0 %1946
        %1948 = vset.pattern.permute.xlu0 0
        %1949 = vperm.xlu0 %1948, %v1695
        %v1950 = vpop.permute.xlu0 %1949
        %1951 = vset.pattern.permute.xlu0 0
        %1952 = vperm.xlu0 %1951, %v1696
        %v1953 = vpop.permute.xlu0 %1952
        %1954 = vset.pattern.permute.xlu0 0
        %1955 = vperm.xlu0 %1954, %v1697
        %v1956 = vpop.permute.xlu0 %1955
        %1957 = vset.pattern.permute.xlu0 0
        %1958 = vperm.xlu0 %1957, %v1698
        %v1959 = vpop.permute.xlu0 %1958
        %1960 = vset.pattern.permute.xlu0 0
        %1961 = vperm.xlu0 %1960, %v1699
        %v1962 = vpop.permute.xlu0 %1961
        %1963 = vset.pattern.permute.xlu0 0
        %1964 = vperm.xlu0 %1963, %v1700
        %v1965 = vpop.permute.xlu0 %1964
        %1966 = vset.pattern.permute.xlu0 0
        %1967 = vperm.xlu0 %1966, %v1701
        %v1968 = vpop.permute.xlu0 %1967
        %1969 = vset.pattern.permute.xlu0 0
        %1970 = vperm.xlu0 %1969, %v1702
        %v1971 = vpop.permute.xlu0 %1970
        %1972 = vset.pattern.permute.xlu0 0
        %1973 = vperm.xlu0 %1972, %v1703
        %v1974 = vpop.permute.xlu0 %1973
        %1975 = vset.pattern.permute.xlu0 0
        %1976 = vperm.xlu0 %1975, %v1704
        %v1977 = vpop.permute.xlu0 %1976
        %vm1978 = vcmp.eq.s32.totalorder %v501, %v1932
        %vm1979 = vcmp.eq.s32.totalorder %v501, %v1935
        %vm1980 = vcmp.eq.s32.totalorder %v501, %v1938
        %vm1981 = vcmp.eq.s32.totalorder %v501, %v1941
        %vm1982 = vcmp.eq.s32.totalorder %v501, %v1944
        %vm1983 = vcmp.eq.s32.totalorder %v501, %v1947
        %vm1984 = vcmp.eq.s32.totalorder %v501, %v1950
        %vm1985 = vcmp.eq.s32.totalorder %v501, %v1953
        %vm1986 = vcmp.eq.s32.totalorder %v501, %v1956
        %vm1987 = vcmp.eq.s32.totalorder %v501, %v1959
        %vm1988 = vcmp.eq.s32.totalorder %v501, %v1962
        %vm1989 = vcmp.eq.s32.totalorder %v501, %v1965
        %vm1990 = vcmp.eq.s32.totalorder %v501, %v1968
        %vm1991 = vcmp.eq.s32.totalorder %v501, %v1971
        %vm1992 = vcmp.eq.s32.totalorder %v501, %v1974
        %vm1993 = vcmp.eq.s32.totalorder %v501, %v1977
        %1995 = vset.pattern.permute.xlu0 0
        %1996 = vperm.xlu0 %1995, %v1899
        %v1997 = vpop.permute.xlu0 %1996
        %2000 = vset.pattern.permute.xlu0 0
        %2001 = vperm.xlu0 %2000, %v1901
        %v2002 = vpop.permute.xlu0 %2001
        %2005 = vset.pattern.permute.xlu0 0
        %2006 = vperm.xlu0 %2005, %v1903
        %v2007 = vpop.permute.xlu0 %2006
        %2010 = vset.pattern.permute.xlu0 0
        %2011 = vperm.xlu0 %2010, %v1905
        %v2012 = vpop.permute.xlu0 %2011
        %2015 = vset.pattern.permute.xlu0 0
        %2016 = vperm.xlu0 %2015, %v1907
        %v2017 = vpop.permute.xlu0 %2016
        %2020 = vset.pattern.permute.xlu0 0
        %2021 = vperm.xlu0 %2020, %v1909
        %v2022 = vpop.permute.xlu0 %2021
        %2025 = vset.pattern.permute.xlu0 0
        %2026 = vperm.xlu0 %2025, %v1911
        %v2027 = vpop.permute.xlu0 %2026
        %2030 = vset.pattern.permute.xlu0 0
        %2031 = vperm.xlu0 %2030, %v1913
        %v2032 = vpop.permute.xlu0 %2031
        %2035 = vset.pattern.permute.xlu0 0
        %2036 = vperm.xlu0 %2035, %v1915
        %v2037 = vpop.permute.xlu0 %2036
        %2040 = vset.pattern.permute.xlu0 0
        %2041 = vperm.xlu0 %2040, %v1917
        %v2042 = vpop.permute.xlu0 %2041
        %2045 = vset.pattern.permute.xlu0 0
        %2046 = vperm.xlu0 %2045, %v1919
        %v2047 = vpop.permute.xlu0 %2046
        %2050 = vset.pattern.permute.xlu0 0
        %2051 = vperm.xlu0 %2050, %v1921
        %v2052 = vpop.permute.xlu0 %2051
        %2055 = vset.pattern.permute.xlu0 0
        %2056 = vperm.xlu0 %2055, %v1923
        %v2057 = vpop.permute.xlu0 %2056
        %2060 = vset.pattern.permute.xlu0 0
        %2061 = vperm.xlu0 %2060, %v1925
        %v2062 = vpop.permute.xlu0 %2061
        %2065 = vset.pattern.permute.xlu0 0
        %2066 = vperm.xlu0 %2065, %v1927
        %v2067 = vpop.permute.xlu0 %2066
        %2070 = vset.pattern.permute.xlu0 0
        %2071 = vperm.xlu0 %2070, %v1929
        %v2072 = vpop.permute.xlu0 %2071
        %v2074 = vsel %vm1978, %v1997, 0.0
        %v2075 = vsel %vm1979, %v2002, 0.0
        %v2076 = vsel %vm1980, %v2007, 0.0
        %v2077 = vsel %vm1981, %v2012, 0.0
        %v2078 = vsel %vm1982, %v2017, 0.0
        %v2079 = vsel %vm1983, %v2022, 0.0
        %v2080 = vsel %vm1984, %v2027, 0.0
        %v2081 = vsel %vm1985, %v2032, 0.0
        %v2082 = vsel %vm1986, %v2037, 0.0
        %v2083 = vsel %vm1987, %v2042, 0.0
        %v2084 = vsel %vm1988, %v2047, 0.0
        %v2085 = vsel %vm1989, %v2052, 0.0
        %v2086 = vsel %vm1990, %v2057, 0.0
        %v2087 = vsel %vm1991, %v2062, 0.0
        %v2088 = vsel %vm1992, %v2067, 0.0
        %v2089 = vsel %vm1993, %v2072, 0.0
        %v2090 = vadd.f32 %v2074, 0.0
        %v2091 = vadd.f32 %v2075, 0.0
        %v2092 = vadd.f32 %v2076, 0.0
        %v2093 = vadd.f32 %v2077, 0.0
        %v2094 = vadd.f32 %v2078, 0.0
        %v2095 = vadd.f32 %v2079, 0.0
        %v2096 = vadd.f32 %v2080, 0.0
        %v2097 = vadd.f32 %v2081, 0.0
        %v2098 = vadd.f32 %v2082, 0.0
        %v2099 = vadd.f32 %v2083, 0.0
        %v2100 = vadd.f32 %v2084, 0.0
        %v2101 = vadd.f32 %v2085, 0.0
        %v2102 = vadd.f32 %v2086, 0.0
        %v2103 = vadd.f32 %v2087, 0.0
        %v2104 = vadd.f32 %v2088, 0.0
        %v2105 = vadd.f32 %v2089, 0.0
        %2106 = vset.pattern.permute.xlu0 1
        %2107 = vperm.xlu0 %2106, %v1689
        %v2108 = vpop.permute.xlu0 %2107
        %2109 = vset.pattern.permute.xlu0 1
        %2110 = vperm.xlu0 %2109, %v1690
        %v2111 = vpop.permute.xlu0 %2110
        %2112 = vset.pattern.permute.xlu0 1
        %2113 = vperm.xlu0 %2112, %v1691
        %v2114 = vpop.permute.xlu0 %2113
        %2115 = vset.pattern.permute.xlu0 1
        %2116 = vperm.xlu0 %2115, %v1692
        %v2117 = vpop.permute.xlu0 %2116
        %2118 = vset.pattern.permute.xlu0 1
        %2119 = vperm.xlu0 %2118, %v1693
        %v2120 = vpop.permute.xlu0 %2119
        %2121 = vset.pattern.permute.xlu0 1
        %2122 = vperm.xlu0 %2121, %v1694
        %v2123 = vpop.permute.xlu0 %2122
        %2124 = vset.pattern.permute.xlu0 1
        %2125 = vperm.xlu0 %2124, %v1695
        %v2126 = vpop.permute.xlu0 %2125
        %2127 = vset.pattern.permute.xlu0 1
        %2128 = vperm.xlu0 %2127, %v1696
        %v2129 = vpop.permute.xlu0 %2128
        %2130 = vset.pattern.permute.xlu0 1
        %2131 = vperm.xlu0 %2130, %v1697
        %v2132 = vpop.permute.xlu0 %2131
        %2133 = vset.pattern.permute.xlu0 1
        %2134 = vperm.xlu0 %2133, %v1698
        %v2135 = vpop.permute.xlu0 %2134
        %2136 = vset.pattern.permute.xlu0 1
        %2137 = vperm.xlu0 %2136, %v1699
        %v2138 = vpop.permute.xlu0 %2137
        %2139 = vset.pattern.permute.xlu0 1
        %2140 = vperm.xlu0 %2139, %v1700
        %v2141 = vpop.permute.xlu0 %2140
        %2142 = vset.pattern.permute.xlu0 1
        %2143 = vperm.xlu0 %2142, %v1701
        %v2144 = vpop.permute.xlu0 %2143
        %2145 = vset.pattern.permute.xlu0 1
        %2146 = vperm.xlu0 %2145, %v1702
        %v2147 = vpop.permute.xlu0 %2146
        %2148 = vset.pattern.permute.xlu0 1
        %2149 = vperm.xlu0 %2148, %v1703
        %v2150 = vpop.permute.xlu0 %2149
        %2151 = vset.pattern.permute.xlu0 1
        %2152 = vperm.xlu0 %2151, %v1704
        %v2153 = vpop.permute.xlu0 %2152
        %vm2154 = vcmp.eq.s32.totalorder %v501, %v2108
        %vm2155 = vcmp.eq.s32.totalorder %v501, %v2111
        %vm2156 = vcmp.eq.s32.totalorder %v501, %v2114
        %vm2157 = vcmp.eq.s32.totalorder %v501, %v2117
        %vm2158 = vcmp.eq.s32.totalorder %v501, %v2120
        %vm2159 = vcmp.eq.s32.totalorder %v501, %v2123
        %vm2160 = vcmp.eq.s32.totalorder %v501, %v2126
        %vm2161 = vcmp.eq.s32.totalorder %v501, %v2129
        %vm2162 = vcmp.eq.s32.totalorder %v501, %v2132
        %vm2163 = vcmp.eq.s32.totalorder %v501, %v2135
        %vm2164 = vcmp.eq.s32.totalorder %v501, %v2138
        %vm2165 = vcmp.eq.s32.totalorder %v501, %v2141
        %vm2166 = vcmp.eq.s32.totalorder %v501, %v2144
        %vm2167 = vcmp.eq.s32.totalorder %v501, %v2147
        %vm2168 = vcmp.eq.s32.totalorder %v501, %v2150
        %vm2169 = vcmp.eq.s32.totalorder %v501, %v2153
        %2170 = vset.pattern.permute.xlu0 1
        %2171 = vperm.xlu0 %2170, %v1899
        %v2172 = vpop.permute.xlu0 %2171
        %2174 = vset.pattern.permute.xlu0 1
        %2175 = vperm.xlu0 %2174, %v1901
        %v2176 = vpop.permute.xlu0 %2175
        %2178 = vset.pattern.permute.xlu0 1
        %2179 = vperm.xlu0 %2178, %v1903
        %v2180 = vpop.permute.xlu0 %2179
        %2182 = vset.pattern.permute.xlu0 1
        %2183 = vperm.xlu0 %2182, %v1905
        %v2184 = vpop.permute.xlu0 %2183
        %2186 = vset.pattern.permute.xlu0 1
        %2187 = vperm.xlu0 %2186, %v1907
        %v2188 = vpop.permute.xlu0 %2187
        %2190 = vset.pattern.permute.xlu0 1
        %2191 = vperm.xlu0 %2190, %v1909
        %v2192 = vpop.permute.xlu0 %2191
        %2194 = vset.pattern.permute.xlu0 1
        %2195 = vperm.xlu0 %2194, %v1911
        %v2196 = vpop.permute.xlu0 %2195
        %2198 = vset.pattern.permute.xlu0 1
        %2199 = vperm.xlu0 %2198, %v1913
        %v2200 = vpop.permute.xlu0 %2199
        %2202 = vset.pattern.permute.xlu0 1
        %2203 = vperm.xlu0 %2202, %v1915
        %v2204 = vpop.permute.xlu0 %2203
        %2206 = vset.pattern.permute.xlu0 1
        %2207 = vperm.xlu0 %2206, %v1917
        %v2208 = vpop.permute.xlu0 %2207
        %2210 = vset.pattern.permute.xlu0 1
        %2211 = vperm.xlu0 %2210, %v1919
        %v2212 = vpop.permute.xlu0 %2211
        %2214 = vset.pattern.permute.xlu0 1
        %2215 = vperm.xlu0 %2214, %v1921
        %v2216 = vpop.permute.xlu0 %2215
        %2218 = vset.pattern.permute.xlu0 1
        %2219 = vperm.xlu0 %2218, %v1923
        %v2220 = vpop.permute.xlu0 %2219
        %2222 = vset.pattern.permute.xlu0 1
        %2223 = vperm.xlu0 %2222, %v1925
        %v2224 = vpop.permute.xlu0 %2223
        %2226 = vset.pattern.permute.xlu0 1
        %2227 = vperm.xlu0 %2226, %v1927
        %v2228 = vpop.permute.xlu0 %2227
        %2230 = vset.pattern.permute.xlu0 1
        %2231 = vperm.xlu0 %2230, %v1929
        %v2232 = vpop.permute.xlu0 %2231
        %v2234 = vsel %vm2154, %v2172, 0.0
        %v2235 = vsel %vm2155, %v2176, 0.0
        %v2236 = vsel %vm2156, %v2180, 0.0
        %v2237 = vsel %vm2157, %v2184, 0.0
        %v2238 = vsel %vm2158, %v2188, 0.0
        %v2239 = vsel %vm2159, %v2192, 0.0
        %v2240 = vsel %vm2160, %v2196, 0.0
        %v2241 = vsel %vm2161, %v2200, 0.0
        %v2242 = vsel %vm2162, %v2204, 0.0
        %v2243 = vsel %vm2163, %v2208, 0.0
        %v2244 = vsel %vm2164, %v2212, 0.0
        %v2245 = vsel %vm2165, %v2216, 0.0
        %v2246 = vsel %vm2166, %v2220, 0.0
        %v2247 = vsel %vm2167, %v2224, 0.0
        %v2248 = vsel %vm2168, %v2228, 0.0
        %v2249 = vsel %vm2169, %v2232, 0.0
        %v2250 = vadd.f32 %v2090, %v2234
        %v2251 = vadd.f32 %v2091, %v2235
        %v2252 = vadd.f32 %v2092, %v2236
        %v2253 = vadd.f32 %v2093, %v2237
        %v2254 = vadd.f32 %v2094, %v2238
        %v2255 = vadd.f32 %v2095, %v2239
        %v2256 = vadd.f32 %v2096, %v2240
        %v2257 = vadd.f32 %v2097, %v2241
        %v2258 = vadd.f32 %v2098, %v2242
        %v2259 = vadd.f32 %v2099, %v2243
        %v2260 = vadd.f32 %v2100, %v2244
        %v2261 = vadd.f32 %v2101, %v2245
        %v2262 = vadd.f32 %v2102, %v2246
        %v2263 = vadd.f32 %v2103, %v2247
        %v2264 = vadd.f32 %v2104, %v2248
        %v2265 = vadd.f32 %v2105, %v2249
        %2266 = vset.pattern.permute.xlu0 2
        %2267 = vperm.xlu0 %2266, %v1689
        %v2268 = vpop.permute.xlu0 %2267
        %2269 = vset.pattern.permute.xlu0 2
        %2270 = vperm.xlu0 %2269, %v1690
        %v2271 = vpop.permute.xlu0 %2270
        %2272 = vset.pattern.permute.xlu0 2
        %2273 = vperm.xlu0 %2272, %v1691
        %v2274 = vpop.permute.xlu0 %2273
        %2275 = vset.pattern.permute.xlu0 2
        %2276 = vperm.xlu0 %2275, %v1692
        %v2277 = vpop.permute.xlu0 %2276
        %2278 = vset.pattern.permute.xlu0 2
        %2279 = vperm.xlu0 %2278, %v1693
        %v2280 = vpop.permute.xlu0 %2279
        %2281 = vset.pattern.permute.xlu0 2
        %2282 = vperm.xlu0 %2281, %v1694
        %v2283 = vpop.permute.xlu0 %2282
        %2284 = vset.pattern.permute.xlu0 2
        %2285 = vperm.xlu0 %2284, %v1695
        %v2286 = vpop.permute.xlu0 %2285
        %2287 = vset.pattern.permute.xlu0 2
        %2288 = vperm.xlu0 %2287, %v1696
        %v2289 = vpop.permute.xlu0 %2288
        %2290 = vset.pattern.permute.xlu0 2
        %2291 = vperm.xlu0 %2290, %v1697
        %v2292 = vpop.permute.xlu0 %2291
        %2293 = vset.pattern.permute.xlu0 2
        %2294 = vperm.xlu0 %2293, %v1698
        %v2295 = vpop.permute.xlu0 %2294
        %2296 = vset.pattern.permute.xlu0 2
        %2297 = vperm.xlu0 %2296, %v1699
        %v2298 = vpop.permute.xlu0 %2297
        %2299 = vset.pattern.permute.xlu0 2
        %2300 = vperm.xlu0 %2299, %v1700
        %v2301 = vpop.permute.xlu0 %2300
        %2302 = vset.pattern.permute.xlu0 2
        %2303 = vperm.xlu0 %2302, %v1701
        %v2304 = vpop.permute.xlu0 %2303
        %2305 = vset.pattern.permute.xlu0 2
        %2306 = vperm.xlu0 %2305, %v1702
        %v2307 = vpop.permute.xlu0 %2306
        %2308 = vset.pattern.permute.xlu0 2
        %2309 = vperm.xlu0 %2308, %v1703
        %v2310 = vpop.permute.xlu0 %2309
        %2311 = vset.pattern.permute.xlu0 2
        %2312 = vperm.xlu0 %2311, %v1704
        %v2313 = vpop.permute.xlu0 %2312
        %vm2314 = vcmp.eq.s32.totalorder %v501, %v2268
        %vm2315 = vcmp.eq.s32.totalorder %v501, %v2271
        %vm2316 = vcmp.eq.s32.totalorder %v501, %v2274
        %vm2317 = vcmp.eq.s32.totalorder %v501, %v2277
        %vm2318 = vcmp.eq.s32.totalorder %v501, %v2280
        %vm2319 = vcmp.eq.s32.totalorder %v501, %v2283
        %vm2320 = vcmp.eq.s32.totalorder %v501, %v2286
        %vm2321 = vcmp.eq.s32.totalorder %v501, %v2289
        %vm2322 = vcmp.eq.s32.totalorder %v501, %v2292
        %vm2323 = vcmp.eq.s32.totalorder %v501, %v2295
        %vm2324 = vcmp.eq.s32.totalorder %v501, %v2298
        %vm2325 = vcmp.eq.s32.totalorder %v501, %v2301
        %vm2326 = vcmp.eq.s32.totalorder %v501, %v2304
        %vm2327 = vcmp.eq.s32.totalorder %v501, %v2307
        %vm2328 = vcmp.eq.s32.totalorder %v501, %v2310
        %vm2329 = vcmp.eq.s32.totalorder %v501, %v2313
        %2330 = vset.pattern.permute.xlu0 2
        %2331 = vperm.xlu0 %2330, %v1899
        %v2332 = vpop.permute.xlu0 %2331
        %2334 = vset.pattern.permute.xlu0 2
        %2335 = vperm.xlu0 %2334, %v1901
        %v2336 = vpop.permute.xlu0 %2335
        %2338 = vset.pattern.permute.xlu0 2
        %2339 = vperm.xlu0 %2338, %v1903
        %v2340 = vpop.permute.xlu0 %2339
        %2342 = vset.pattern.permute.xlu0 2
        %2343 = vperm.xlu0 %2342, %v1905
        %v2344 = vpop.permute.xlu0 %2343
        %2346 = vset.pattern.permute.xlu0 2
        %2347 = vperm.xlu0 %2346, %v1907
        %v2348 = vpop.permute.xlu0 %2347
        %2350 = vset.pattern.permute.xlu0 2
        %2351 = vperm.xlu0 %2350, %v1909
        %v2352 = vpop.permute.xlu0 %2351
        %2354 = vset.pattern.permute.xlu0 2
        %2355 = vperm.xlu0 %2354, %v1911
        %v2356 = vpop.permute.xlu0 %2355
        %2358 = vset.pattern.permute.xlu0 2
        %2359 = vperm.xlu0 %2358, %v1913
        %v2360 = vpop.permute.xlu0 %2359
        %2362 = vset.pattern.permute.xlu0 2
        %2363 = vperm.xlu0 %2362, %v1915
        %v2364 = vpop.permute.xlu0 %2363
        %2366 = vset.pattern.permute.xlu0 2
        %2367 = vperm.xlu0 %2366, %v1917
        %v2368 = vpop.permute.xlu0 %2367
        %2370 = vset.pattern.permute.xlu0 2
        %2371 = vperm.xlu0 %2370, %v1919
        %v2372 = vpop.permute.xlu0 %2371
        %2374 = vset.pattern.permute.xlu0 2
        %2375 = vperm.xlu0 %2374, %v1921
        %v2376 = vpop.permute.xlu0 %2375
        %2378 = vset.pattern.permute.xlu0 2
        %2379 = vperm.xlu0 %2378, %v1923
        %v2380 = vpop.permute.xlu0 %2379
        %2382 = vset.pattern.permute.xlu0 2
        %2383 = vperm.xlu0 %2382, %v1925
        %v2384 = vpop.permute.xlu0 %2383
        %2386 = vset.pattern.permute.xlu0 2
        %2387 = vperm.xlu0 %2386, %v1927
        %v2388 = vpop.permute.xlu0 %2387
        %2390 = vset.pattern.permute.xlu0 2
        %2391 = vperm.xlu0 %2390, %v1929
        %v2392 = vpop.permute.xlu0 %2391
        %v2394 = vsel %vm2314, %v2332, 0.0
        %v2395 = vsel %vm2315, %v2336, 0.0
        %v2396 = vsel %vm2316, %v2340, 0.0
        %v2397 = vsel %vm2317, %v2344, 0.0
        %v2398 = vsel %vm2318, %v2348, 0.0
        %v2399 = vsel %vm2319, %v2352, 0.0
        %v2400 = vsel %vm2320, %v2356, 0.0
        %v2401 = vsel %vm2321, %v2360, 0.0
        %v2402 = vsel %vm2322, %v2364, 0.0
        %v2403 = vsel %vm2323, %v2368, 0.0
        %v2404 = vsel %vm2324, %v2372, 0.0
        %v2405 = vsel %vm2325, %v2376, 0.0
        %v2406 = vsel %vm2326, %v2380, 0.0
        %v2407 = vsel %vm2327, %v2384, 0.0
        %v2408 = vsel %vm2328, %v2388, 0.0
        %v2409 = vsel %vm2329, %v2392, 0.0
        %v2410 = vadd.f32 %v2250, %v2394
        %v2411 = vadd.f32 %v2251, %v2395
        %v2412 = vadd.f32 %v2252, %v2396
        %v2413 = vadd.f32 %v2253, %v2397
        %v2414 = vadd.f32 %v2254, %v2398
        %v2415 = vadd.f32 %v2255, %v2399
        %v2416 = vadd.f32 %v2256, %v2400
        %v2417 = vadd.f32 %v2257, %v2401
        %v2418 = vadd.f32 %v2258, %v2402
        %v2419 = vadd.f32 %v2259, %v2403
        %v2420 = vadd.f32 %v2260, %v2404
        %v2421 = vadd.f32 %v2261, %v2405
        %v2422 = vadd.f32 %v2262, %v2406
        %v2423 = vadd.f32 %v2263, %v2407
        %v2424 = vadd.f32 %v2264, %v2408
        %v2425 = vadd.f32 %v2265, %v2409
        %2426 = vset.pattern.permute.xlu0 3
        %2427 = vperm.xlu0 %2426, %v1689
        %v2428 = vpop.permute.xlu0 %2427
        %2429 = vset.pattern.permute.xlu0 3
        %2430 = vperm.xlu0 %2429, %v1690
        %v2431 = vpop.permute.xlu0 %2430
        %2432 = vset.pattern.permute.xlu0 3
        %2433 = vperm.xlu0 %2432, %v1691
        %v2434 = vpop.permute.xlu0 %2433
        %2435 = vset.pattern.permute.xlu0 3
        %2436 = vperm.xlu0 %2435, %v1692
        %v2437 = vpop.permute.xlu0 %2436
        %2438 = vset.pattern.permute.xlu0 3
        %2439 = vperm.xlu0 %2438, %v1693
        %v2440 = vpop.permute.xlu0 %2439
        %2441 = vset.pattern.permute.xlu0 3
        %2442 = vperm.xlu0 %2441, %v1694
        %v2443 = vpop.permute.xlu0 %2442
        %2444 = vset.pattern.permute.xlu0 3
        %2445 = vperm.xlu0 %2444, %v1695
        %v2446 = vpop.permute.xlu0 %2445
        %2447 = vset.pattern.permute.xlu0 3
        %2448 = vperm.xlu0 %2447, %v1696
        %v2449 = vpop.permute.xlu0 %2448
        %2450 = vset.pattern.permute.xlu0 3
        %2451 = vperm.xlu0 %2450, %v1697
        %v2452 = vpop.permute.xlu0 %2451
        %2453 = vset.pattern.permute.xlu0 3
        %2454 = vperm.xlu0 %2453, %v1698
        %v2455 = vpop.permute.xlu0 %2454
        %2456 = vset.pattern.permute.xlu0 3
        %2457 = vperm.xlu0 %2456, %v1699
        %v2458 = vpop.permute.xlu0 %2457
        %2459 = vset.pattern.permute.xlu0 3
        %2460 = vperm.xlu0 %2459, %v1700
        %v2461 = vpop.permute.xlu0 %2460
        %2462 = vset.pattern.permute.xlu0 3
        %2463 = vperm.xlu0 %2462, %v1701
        %v2464 = vpop.permute.xlu0 %2463
        %2465 = vset.pattern.permute.xlu0 3
        %2466 = vperm.xlu0 %2465, %v1702
        %v2467 = vpop.permute.xlu0 %2466
        %2468 = vset.pattern.permute.xlu0 3
        %2469 = vperm.xlu0 %2468, %v1703
        %v2470 = vpop.permute.xlu0 %2469
        %2471 = vset.pattern.permute.xlu0 3
        %2472 = vperm.xlu0 %2471, %v1704
        %v2473 = vpop.permute.xlu0 %2472
        %vm2474 = vcmp.eq.s32.totalorder %v501, %v2428
        %vm2475 = vcmp.eq.s32.totalorder %v501, %v2431
        %vm2476 = vcmp.eq.s32.totalorder %v501, %v2434
        %vm2477 = vcmp.eq.s32.totalorder %v501, %v2437
        %vm2478 = vcmp.eq.s32.totalorder %v501, %v2440
        %vm2479 = vcmp.eq.s32.totalorder %v501, %v2443
        %vm2480 = vcmp.eq.s32.totalorder %v501, %v2446
        %vm2481 = vcmp.eq.s32.totalorder %v501, %v2449
        %vm2482 = vcmp.eq.s32.totalorder %v501, %v2452
        %vm2483 = vcmp.eq.s32.totalorder %v501, %v2455
        %vm2484 = vcmp.eq.s32.totalorder %v501, %v2458
        %vm2485 = vcmp.eq.s32.totalorder %v501, %v2461
        %vm2486 = vcmp.eq.s32.totalorder %v501, %v2464
        %vm2487 = vcmp.eq.s32.totalorder %v501, %v2467
        %vm2488 = vcmp.eq.s32.totalorder %v501, %v2470
        %vm2489 = vcmp.eq.s32.totalorder %v501, %v2473
        %2490 = vset.pattern.permute.xlu0 3
        %2491 = vperm.xlu0 %2490, %v1899
        %v2492 = vpop.permute.xlu0 %2491
        %2494 = vset.pattern.permute.xlu0 3
        %2495 = vperm.xlu0 %2494, %v1901
        %v2496 = vpop.permute.xlu0 %2495
        %2498 = vset.pattern.permute.xlu0 3
        %2499 = vperm.xlu0 %2498, %v1903
        %v2500 = vpop.permute.xlu0 %2499
        %2502 = vset.pattern.permute.xlu0 3
        %2503 = vperm.xlu0 %2502, %v1905
        %v2504 = vpop.permute.xlu0 %2503
        %2506 = vset.pattern.permute.xlu0 3
        %2507 = vperm.xlu0 %2506, %v1907
        %v2508 = vpop.permute.xlu0 %2507
        %2510 = vset.pattern.permute.xlu0 3
        %2511 = vperm.xlu0 %2510, %v1909
        %v2512 = vpop.permute.xlu0 %2511
        %2514 = vset.pattern.permute.xlu0 3
        %2515 = vperm.xlu0 %2514, %v1911
        %v2516 = vpop.permute.xlu0 %2515
        %2518 = vset.pattern.permute.xlu0 3
        %2519 = vperm.xlu0 %2518, %v1913
        %v2520 = vpop.permute.xlu0 %2519
        %2522 = vset.pattern.permute.xlu0 3
        %2523 = vperm.xlu0 %2522, %v1915
        %v2524 = vpop.permute.xlu0 %2523
        %2526 = vset.pattern.permute.xlu0 3
        %2527 = vperm.xlu0 %2526, %v1917
        %v2528 = vpop.permute.xlu0 %2527
        %2530 = vset.pattern.permute.xlu0 3
        %2531 = vperm.xlu0 %2530, %v1919
        %v2532 = vpop.permute.xlu0 %2531
        %2534 = vset.pattern.permute.xlu0 3
        %2535 = vperm.xlu0 %2534, %v1921
        %v2536 = vpop.permute.xlu0 %2535
        %2538 = vset.pattern.permute.xlu0 3
        %2539 = vperm.xlu0 %2538, %v1923
        %v2540 = vpop.permute.xlu0 %2539
        %2542 = vset.pattern.permute.xlu0 3
        %2543 = vperm.xlu0 %2542, %v1925
        %v2544 = vpop.permute.xlu0 %2543
        %2546 = vset.pattern.permute.xlu0 3
        %2547 = vperm.xlu0 %2546, %v1927
        %v2548 = vpop.permute.xlu0 %2547
        %2550 = vset.pattern.permute.xlu0 3
        %2551 = vperm.xlu0 %2550, %v1929
        %v2552 = vpop.permute.xlu0 %2551
        %v2554 = vsel %vm2474, %v2492, 0.0
        %v2555 = vsel %vm2475, %v2496, 0.0
        %v2556 = vsel %vm2476, %v2500, 0.0
        %v2557 = vsel %vm2477, %v2504, 0.0
        %v2558 = vsel %vm2478, %v2508, 0.0
        %v2559 = vsel %vm2479, %v2512, 0.0
        %v2560 = vsel %vm2480, %v2516, 0.0
        %v2561 = vsel %vm2481, %v2520, 0.0
        %v2562 = vsel %vm2482, %v2524, 0.0
        %v2563 = vsel %vm2483, %v2528, 0.0
        %v2564 = vsel %vm2484, %v2532, 0.0
        %v2565 = vsel %vm2485, %v2536, 0.0
        %v2566 = vsel %vm2486, %v2540, 0.0
        %v2567 = vsel %vm2487, %v2544, 0.0
        %v2568 = vsel %vm2488, %v2548, 0.0
        %v2569 = vsel %vm2489, %v2552, 0.0
        %v2570 = vadd.f32 %v2410, %v2554
        %v2571 = vadd.f32 %v2411, %v2555
        %v2572 = vadd.f32 %v2412, %v2556
        %v2573 = vadd.f32 %v2413, %v2557
        %v2574 = vadd.f32 %v2414, %v2558
        %v2575 = vadd.f32 %v2415, %v2559
        %v2576 = vadd.f32 %v2416, %v2560
        %v2577 = vadd.f32 %v2417, %v2561
        %v2578 = vadd.f32 %v2418, %v2562
        %v2579 = vadd.f32 %v2419, %v2563
        %v2580 = vadd.f32 %v2420, %v2564
        %v2581 = vadd.f32 %v2421, %v2565
        %v2582 = vadd.f32 %v2422, %v2566
        %v2583 = vadd.f32 %v2423, %v2567
        %v2584 = vadd.f32 %v2424, %v2568
        %v2585 = vadd.f32 %v2425, %v2569
        %2586 = vset.pattern.permute.xlu0 4
        %2587 = vperm.xlu0 %2586, %v1689
        %v2588 = vpop.permute.xlu0 %2587
        %2589 = vset.pattern.permute.xlu0 4
        %2590 = vperm.xlu0 %2589, %v1690
        %v2591 = vpop.permute.xlu0 %2590
        %2592 = vset.pattern.permute.xlu0 4
        %2593 = vperm.xlu0 %2592, %v1691
        %v2594 = vpop.permute.xlu0 %2593
        %2595 = vset.pattern.permute.xlu0 4
        %2596 = vperm.xlu0 %2595, %v1692
        %v2597 = vpop.permute.xlu0 %2596
        %2598 = vset.pattern.permute.xlu0 4
        %2599 = vperm.xlu0 %2598, %v1693
        %v2600 = vpop.permute.xlu0 %2599
        %2601 = vset.pattern.permute.xlu0 4
        %2602 = vperm.xlu0 %2601, %v1694
        %v2603 = vpop.permute.xlu0 %2602
        %2604 = vset.pattern.permute.xlu0 4
        %2605 = vperm.xlu0 %2604, %v1695
        %v2606 = vpop.permute.xlu0 %2605
        %2607 = vset.pattern.permute.xlu0 4
        %2608 = vperm.xlu0 %2607, %v1696
        %v2609 = vpop.permute.xlu0 %2608
        %2610 = vset.pattern.permute.xlu0 4
        %2611 = vperm.xlu0 %2610, %v1697
        %v2612 = vpop.permute.xlu0 %2611
        %2613 = vset.pattern.permute.xlu0 4
        %2614 = vperm.xlu0 %2613, %v1698
        %v2615 = vpop.permute.xlu0 %2614
        %2616 = vset.pattern.permute.xlu0 4
        %2617 = vperm.xlu0 %2616, %v1699
        %v2618 = vpop.permute.xlu0 %2617
        %2619 = vset.pattern.permute.xlu0 4
        %2620 = vperm.xlu0 %2619, %v1700
        %v2621 = vpop.permute.xlu0 %2620
        %2622 = vset.pattern.permute.xlu0 4
        %2623 = vperm.xlu0 %2622, %v1701
        %v2624 = vpop.permute.xlu0 %2623
        %2625 = vset.pattern.permute.xlu0 4
        %2626 = vperm.xlu0 %2625, %v1702
        %v2627 = vpop.permute.xlu0 %2626
        %2628 = vset.pattern.permute.xlu0 4
        %2629 = vperm.xlu0 %2628, %v1703
        %v2630 = vpop.permute.xlu0 %2629
        %2631 = vset.pattern.permute.xlu0 4
        %2632 = vperm.xlu0 %2631, %v1704
        %v2633 = vpop.permute.xlu0 %2632
        %vm2634 = vcmp.eq.s32.totalorder %v501, %v2588
        %vm2635 = vcmp.eq.s32.totalorder %v501, %v2591
        %vm2636 = vcmp.eq.s32.totalorder %v501, %v2594
        %vm2637 = vcmp.eq.s32.totalorder %v501, %v2597
        %vm2638 = vcmp.eq.s32.totalorder %v501, %v2600
        %vm2639 = vcmp.eq.s32.totalorder %v501, %v2603
        %vm2640 = vcmp.eq.s32.totalorder %v501, %v2606
        %vm2641 = vcmp.eq.s32.totalorder %v501, %v2609
        %vm2642 = vcmp.eq.s32.totalorder %v501, %v2612
        %vm2643 = vcmp.eq.s32.totalorder %v501, %v2615
        %vm2644 = vcmp.eq.s32.totalorder %v501, %v2618
        %vm2645 = vcmp.eq.s32.totalorder %v501, %v2621
        %vm2646 = vcmp.eq.s32.totalorder %v501, %v2624
        %vm2647 = vcmp.eq.s32.totalorder %v501, %v2627
        %vm2648 = vcmp.eq.s32.totalorder %v501, %v2630
        %vm2649 = vcmp.eq.s32.totalorder %v501, %v2633
        %2650 = vset.pattern.permute.xlu0 4
        %2651 = vperm.xlu0 %2650, %v1899
        %v2652 = vpop.permute.xlu0 %2651
        %2654 = vset.pattern.permute.xlu0 4
        %2655 = vperm.xlu0 %2654, %v1901
        %v2656 = vpop.permute.xlu0 %2655
        %2658 = vset.pattern.permute.xlu0 4
        %2659 = vperm.xlu0 %2658, %v1903
        %v2660 = vpop.permute.xlu0 %2659
        %2662 = vset.pattern.permute.xlu0 4
        %2663 = vperm.xlu0 %2662, %v1905
        %v2664 = vpop.permute.xlu0 %2663
        %2666 = vset.pattern.permute.xlu0 4
        %2667 = vperm.xlu0 %2666, %v1907
        %v2668 = vpop.permute.xlu0 %2667
        %2670 = vset.pattern.permute.xlu0 4
        %2671 = vperm.xlu0 %2670, %v1909
        %v2672 = vpop.permute.xlu0 %2671
        %2674 = vset.pattern.permute.xlu0 4
        %2675 = vperm.xlu0 %2674, %v1911
        %v2676 = vpop.permute.xlu0 %2675
        %2678 = vset.pattern.permute.xlu0 4
        %2679 = vperm.xlu0 %2678, %v1913
        %v2680 = vpop.permute.xlu0 %2679
        %2682 = vset.pattern.permute.xlu0 4
        %2683 = vperm.xlu0 %2682, %v1915
        %v2684 = vpop.permute.xlu0 %2683
        %2686 = vset.pattern.permute.xlu0 4
        %2687 = vperm.xlu0 %2686, %v1917
        %v2688 = vpop.permute.xlu0 %2687
        %2690 = vset.pattern.permute.xlu0 4
        %2691 = vperm.xlu0 %2690, %v1919
        %v2692 = vpop.permute.xlu0 %2691
        %2694 = vset.pattern.permute.xlu0 4
        %2695 = vperm.xlu0 %2694, %v1921
        %v2696 = vpop.permute.xlu0 %2695
        %2698 = vset.pattern.permute.xlu0 4
        %2699 = vperm.xlu0 %2698, %v1923
        %v2700 = vpop.permute.xlu0 %2699
        %2702 = vset.pattern.permute.xlu0 4
        %2703 = vperm.xlu0 %2702, %v1925
        %v2704 = vpop.permute.xlu0 %2703
        %2706 = vset.pattern.permute.xlu0 4
        %2707 = vperm.xlu0 %2706, %v1927
        %v2708 = vpop.permute.xlu0 %2707
        %2710 = vset.pattern.permute.xlu0 4
        %2711 = vperm.xlu0 %2710, %v1929
        %v2712 = vpop.permute.xlu0 %2711
        %v2714 = vsel %vm2634, %v2652, 0.0
        %v2715 = vsel %vm2635, %v2656, 0.0
        %v2716 = vsel %vm2636, %v2660, 0.0
        %v2717 = vsel %vm2637, %v2664, 0.0
        %v2718 = vsel %vm2638, %v2668, 0.0
        %v2719 = vsel %vm2639, %v2672, 0.0
        %v2720 = vsel %vm2640, %v2676, 0.0
        %v2721 = vsel %vm2641, %v2680, 0.0
        %v2722 = vsel %vm2642, %v2684, 0.0
        %v2723 = vsel %vm2643, %v2688, 0.0
        %v2724 = vsel %vm2644, %v2692, 0.0
        %v2725 = vsel %vm2645, %v2696, 0.0
        %v2726 = vsel %vm2646, %v2700, 0.0
        %v2727 = vsel %vm2647, %v2704, 0.0
        %v2728 = vsel %vm2648, %v2708, 0.0
        %v2729 = vsel %vm2649, %v2712, 0.0
        %v2730 = vadd.f32 %v2570, %v2714
        %v2731 = vadd.f32 %v2571, %v2715
        %v2732 = vadd.f32 %v2572, %v2716
        %v2733 = vadd.f32 %v2573, %v2717
        %v2734 = vadd.f32 %v2574, %v2718
        %v2735 = vadd.f32 %v2575, %v2719
        %v2736 = vadd.f32 %v2576, %v2720
        %v2737 = vadd.f32 %v2577, %v2721
        %v2738 = vadd.f32 %v2578, %v2722
        %v2739 = vadd.f32 %v2579, %v2723
        %v2740 = vadd.f32 %v2580, %v2724
        %v2741 = vadd.f32 %v2581, %v2725
        %v2742 = vadd.f32 %v2582, %v2726
        %v2743 = vadd.f32 %v2583, %v2727
        %v2744 = vadd.f32 %v2584, %v2728
        %v2745 = vadd.f32 %v2585, %v2729
        %2746 = vset.pattern.permute.xlu0 5
        %2747 = vperm.xlu0 %2746, %v1689
        %v2748 = vpop.permute.xlu0 %2747
        %2749 = vset.pattern.permute.xlu0 5
        %2750 = vperm.xlu0 %2749, %v1690
        %v2751 = vpop.permute.xlu0 %2750
        %2752 = vset.pattern.permute.xlu0 5
        %2753 = vperm.xlu0 %2752, %v1691
        %v2754 = vpop.permute.xlu0 %2753
        %2755 = vset.pattern.permute.xlu0 5
        %2756 = vperm.xlu0 %2755, %v1692
        %v2757 = vpop.permute.xlu0 %2756
        %2758 = vset.pattern.permute.xlu0 5
        %2759 = vperm.xlu0 %2758, %v1693
        %v2760 = vpop.permute.xlu0 %2759
        %2761 = vset.pattern.permute.xlu0 5
        %2762 = vperm.xlu0 %2761, %v1694
        %v2763 = vpop.permute.xlu0 %2762
        %2764 = vset.pattern.permute.xlu0 5
        %2765 = vperm.xlu0 %2764, %v1695
        %v2766 = vpop.permute.xlu0 %2765
        %2767 = vset.pattern.permute.xlu0 5
        %2768 = vperm.xlu0 %2767, %v1696
        %v2769 = vpop.permute.xlu0 %2768
        %2770 = vset.pattern.permute.xlu0 5
        %2771 = vperm.xlu0 %2770, %v1697
        %v2772 = vpop.permute.xlu0 %2771
        %2773 = vset.pattern.permute.xlu0 5
        %2774 = vperm.xlu0 %2773, %v1698
        %v2775 = vpop.permute.xlu0 %2774
        %2776 = vset.pattern.permute.xlu0 5
        %2777 = vperm.xlu0 %2776, %v1699
        %v2778 = vpop.permute.xlu0 %2777
        %2779 = vset.pattern.permute.xlu0 5
        %2780 = vperm.xlu0 %2779, %v1700
        %v2781 = vpop.permute.xlu0 %2780
        %2782 = vset.pattern.permute.xlu0 5
        %2783 = vperm.xlu0 %2782, %v1701
        %v2784 = vpop.permute.xlu0 %2783
        %2785 = vset.pattern.permute.xlu0 5
        %2786 = vperm.xlu0 %2785, %v1702
        %v2787 = vpop.permute.xlu0 %2786
        %2788 = vset.pattern.permute.xlu0 5
        %2789 = vperm.xlu0 %2788, %v1703
        %v2790 = vpop.permute.xlu0 %2789
        %2791 = vset.pattern.permute.xlu0 5
        %2792 = vperm.xlu0 %2791, %v1704
        %v2793 = vpop.permute.xlu0 %2792
        %vm2794 = vcmp.eq.s32.totalorder %v501, %v2748
        %vm2795 = vcmp.eq.s32.totalorder %v501, %v2751
        %vm2796 = vcmp.eq.s32.totalorder %v501, %v2754
        %vm2797 = vcmp.eq.s32.totalorder %v501, %v2757
        %vm2798 = vcmp.eq.s32.totalorder %v501, %v2760
        %vm2799 = vcmp.eq.s32.totalorder %v501, %v2763
        %vm2800 = vcmp.eq.s32.totalorder %v501, %v2766
        %vm2801 = vcmp.eq.s32.totalorder %v501, %v2769
        %vm2802 = vcmp.eq.s32.totalorder %v501, %v2772
        %vm2803 = vcmp.eq.s32.totalorder %v501, %v2775
        %vm2804 = vcmp.eq.s32.totalorder %v501, %v2778
        %vm2805 = vcmp.eq.s32.totalorder %v501, %v2781
        %vm2806 = vcmp.eq.s32.totalorder %v501, %v2784
        %vm2807 = vcmp.eq.s32.totalorder %v501, %v2787
        %vm2808 = vcmp.eq.s32.totalorder %v501, %v2790
        %vm2809 = vcmp.eq.s32.totalorder %v501, %v2793
        %2810 = vset.pattern.permute.xlu0 5
        %2811 = vperm.xlu0 %2810, %v1899
        %v2812 = vpop.permute.xlu0 %2811
        %2814 = vset.pattern.permute.xlu0 5
        %2815 = vperm.xlu0 %2814, %v1901
        %v2816 = vpop.permute.xlu0 %2815
        %2818 = vset.pattern.permute.xlu0 5
        %2819 = vperm.xlu0 %2818, %v1903
        %v2820 = vpop.permute.xlu0 %2819
        %2822 = vset.pattern.permute.xlu0 5
        %2823 = vperm.xlu0 %2822, %v1905
        %v2824 = vpop.permute.xlu0 %2823
        %2826 = vset.pattern.permute.xlu0 5
        %2827 = vperm.xlu0 %2826, %v1907
        %v2828 = vpop.permute.xlu0 %2827
        %2830 = vset.pattern.permute.xlu0 5
        %2831 = vperm.xlu0 %2830, %v1909
        %v2832 = vpop.permute.xlu0 %2831
        %2834 = vset.pattern.permute.xlu0 5
        %2835 = vperm.xlu0 %2834, %v1911
        %v2836 = vpop.permute.xlu0 %2835
        %2838 = vset.pattern.permute.xlu0 5
        %2839 = vperm.xlu0 %2838, %v1913
        %v2840 = vpop.permute.xlu0 %2839
        %2842 = vset.pattern.permute.xlu0 5
        %2843 = vperm.xlu0 %2842, %v1915
        %v2844 = vpop.permute.xlu0 %2843
        %2846 = vset.pattern.permute.xlu0 5
        %2847 = vperm.xlu0 %2846, %v1917
        %v2848 = vpop.permute.xlu0 %2847
        %2850 = vset.pattern.permute.xlu0 5
        %2851 = vperm.xlu0 %2850, %v1919
        %v2852 = vpop.permute.xlu0 %2851
        %2854 = vset.pattern.permute.xlu0 5
        %2855 = vperm.xlu0 %2854, %v1921
        %v2856 = vpop.permute.xlu0 %2855
        %2858 = vset.pattern.permute.xlu0 5
        %2859 = vperm.xlu0 %2858, %v1923
        %v2860 = vpop.permute.xlu0 %2859
        %2862 = vset.pattern.permute.xlu0 5
        %2863 = vperm.xlu0 %2862, %v1925
        %v2864 = vpop.permute.xlu0 %2863
        %2866 = vset.pattern.permute.xlu0 5
        %2867 = vperm.xlu0 %2866, %v1927
        %v2868 = vpop.permute.xlu0 %2867
        %2870 = vset.pattern.permute.xlu0 5
        %2871 = vperm.xlu0 %2870, %v1929
        %v2872 = vpop.permute.xlu0 %2871
        %v2874 = vsel %vm2794, %v2812, 0.0
        %v2875 = vsel %vm2795, %v2816, 0.0
        %v2876 = vsel %vm2796, %v2820, 0.0
        %v2877 = vsel %vm2797, %v2824, 0.0
        %v2878 = vsel %vm2798, %v2828, 0.0
        %v2879 = vsel %vm2799, %v2832, 0.0
        %v2880 = vsel %vm2800, %v2836, 0.0
        %v2881 = vsel %vm2801, %v2840, 0.0
        %v2882 = vsel %vm2802, %v2844, 0.0
        %v2883 = vsel %vm2803, %v2848, 0.0
        %v2884 = vsel %vm2804, %v2852, 0.0
        %v2885 = vsel %vm2805, %v2856, 0.0
        %v2886 = vsel %vm2806, %v2860, 0.0
        %v2887 = vsel %vm2807, %v2864, 0.0
        %v2888 = vsel %vm2808, %v2868, 0.0
        %v2889 = vsel %vm2809, %v2872, 0.0
        %v2890 = vadd.f32 %v2730, %v2874
        %v2891 = vadd.f32 %v2731, %v2875
        %v2892 = vadd.f32 %v2732, %v2876
        %v2893 = vadd.f32 %v2733, %v2877
        %v2894 = vadd.f32 %v2734, %v2878
        %v2895 = vadd.f32 %v2735, %v2879
        %v2896 = vadd.f32 %v2736, %v2880
        %v2897 = vadd.f32 %v2737, %v2881
        %v2898 = vadd.f32 %v2738, %v2882
        %v2899 = vadd.f32 %v2739, %v2883
        %v2900 = vadd.f32 %v2740, %v2884
        %v2901 = vadd.f32 %v2741, %v2885
        %v2902 = vadd.f32 %v2742, %v2886
        %v2903 = vadd.f32 %v2743, %v2887
        %v2904 = vadd.f32 %v2744, %v2888
        %v2905 = vadd.f32 %v2745, %v2889
        %2906 = vset.pattern.permute.xlu0 6
        %2907 = vperm.xlu0 %2906, %v1689
        %v2908 = vpop.permute.xlu0 %2907
        %2909 = vset.pattern.permute.xlu0 6
        %2910 = vperm.xlu0 %2909, %v1690
        %v2911 = vpop.permute.xlu0 %2910
        %2912 = vset.pattern.permute.xlu0 6
        %2913 = vperm.xlu0 %2912, %v1691
        %v2914 = vpop.permute.xlu0 %2913
        %2915 = vset.pattern.permute.xlu0 6
        %2916 = vperm.xlu0 %2915, %v1692
        %v2917 = vpop.permute.xlu0 %2916
        %2918 = vset.pattern.permute.xlu0 6
        %2919 = vperm.xlu0 %2918, %v1693
        %v2920 = vpop.permute.xlu0 %2919
        %2921 = vset.pattern.permute.xlu0 6
        %2922 = vperm.xlu0 %2921, %v1694
        %v2923 = vpop.permute.xlu0 %2922
        %2924 = vset.pattern.permute.xlu0 6
        %2925 = vperm.xlu0 %2924, %v1695
        %v2926 = vpop.permute.xlu0 %2925
        %2927 = vset.pattern.permute.xlu0 6
        %2928 = vperm.xlu0 %2927, %v1696
        %v2929 = vpop.permute.xlu0 %2928
        %2930 = vset.pattern.permute.xlu0 6
        %2931 = vperm.xlu0 %2930, %v1697
        %v2932 = vpop.permute.xlu0 %2931
        %2933 = vset.pattern.permute.xlu0 6
        %2934 = vperm.xlu0 %2933, %v1698
        %v2935 = vpop.permute.xlu0 %2934
        %2936 = vset.pattern.permute.xlu0 6
        %2937 = vperm.xlu0 %2936, %v1699
        %v2938 = vpop.permute.xlu0 %2937
        %2939 = vset.pattern.permute.xlu0 6
        %2940 = vperm.xlu0 %2939, %v1700
        %v2941 = vpop.permute.xlu0 %2940
        %2942 = vset.pattern.permute.xlu0 6
        %2943 = vperm.xlu0 %2942, %v1701
        %v2944 = vpop.permute.xlu0 %2943
        %2945 = vset.pattern.permute.xlu0 6
        %2946 = vperm.xlu0 %2945, %v1702
        %v2947 = vpop.permute.xlu0 %2946
        %2948 = vset.pattern.permute.xlu0 6
        %2949 = vperm.xlu0 %2948, %v1703
        %v2950 = vpop.permute.xlu0 %2949
        %2951 = vset.pattern.permute.xlu0 6
        %2952 = vperm.xlu0 %2951, %v1704
        %v2953 = vpop.permute.xlu0 %2952
        %vm2954 = vcmp.eq.s32.totalorder %v501, %v2908
        %vm2955 = vcmp.eq.s32.totalorder %v501, %v2911
        %vm2956 = vcmp.eq.s32.totalorder %v501, %v2914
        %vm2957 = vcmp.eq.s32.totalorder %v501, %v2917
        %vm2958 = vcmp.eq.s32.totalorder %v501, %v2920
        %vm2959 = vcmp.eq.s32.totalorder %v501, %v2923
        %vm2960 = vcmp.eq.s32.totalorder %v501, %v2926
        %vm2961 = vcmp.eq.s32.totalorder %v501, %v2929
        %vm2962 = vcmp.eq.s32.totalorder %v501, %v2932
        %vm2963 = vcmp.eq.s32.totalorder %v501, %v2935
        %vm2964 = vcmp.eq.s32.totalorder %v501, %v2938
        %vm2965 = vcmp.eq.s32.totalorder %v501, %v2941
        %vm2966 = vcmp.eq.s32.totalorder %v501, %v2944
        %vm2967 = vcmp.eq.s32.totalorder %v501, %v2947
        %vm2968 = vcmp.eq.s32.totalorder %v501, %v2950
        %vm2969 = vcmp.eq.s32.totalorder %v501, %v2953
        %2970 = vset.pattern.permute.xlu0 6
        %2971 = vperm.xlu0 %2970, %v1899
        %v2972 = vpop.permute.xlu0 %2971
        %2974 = vset.pattern.permute.xlu0 6
        %2975 = vperm.xlu0 %2974, %v1901
        %v2976 = vpop.permute.xlu0 %2975
        %2978 = vset.pattern.permute.xlu0 6
        %2979 = vperm.xlu0 %2978, %v1903
        %v2980 = vpop.permute.xlu0 %2979
        %2982 = vset.pattern.permute.xlu0 6
        %2983 = vperm.xlu0 %2982, %v1905
        %v2984 = vpop.permute.xlu0 %2983
        %2986 = vset.pattern.permute.xlu0 6
        %2987 = vperm.xlu0 %2986, %v1907
        %v2988 = vpop.permute.xlu0 %2987
        %2990 = vset.pattern.permute.xlu0 6
        %2991 = vperm.xlu0 %2990, %v1909
        %v2992 = vpop.permute.xlu0 %2991
        %2994 = vset.pattern.permute.xlu0 6
        %2995 = vperm.xlu0 %2994, %v1911
        %v2996 = vpop.permute.xlu0 %2995
        %2998 = vset.pattern.permute.xlu0 6
        %2999 = vperm.xlu0 %2998, %v1913
        %v3000 = vpop.permute.xlu0 %2999
        %3002 = vset.pattern.permute.xlu0 6
        %3003 = vperm.xlu0 %3002, %v1915
        %v3004 = vpop.permute.xlu0 %3003
        %3006 = vset.pattern.permute.xlu0 6
        %3007 = vperm.xlu0 %3006, %v1917
        %v3008 = vpop.permute.xlu0 %3007
        %3010 = vset.pattern.permute.xlu0 6
        %3011 = vperm.xlu0 %3010, %v1919
        %v3012 = vpop.permute.xlu0 %3011
        %3014 = vset.pattern.permute.xlu0 6
        %3015 = vperm.xlu0 %3014, %v1921
        %v3016 = vpop.permute.xlu0 %3015
        %3018 = vset.pattern.permute.xlu0 6
        %3019 = vperm.xlu0 %3018, %v1923
        %v3020 = vpop.permute.xlu0 %3019
        %3022 = vset.pattern.permute.xlu0 6
        %3023 = vperm.xlu0 %3022, %v1925
        %v3024 = vpop.permute.xlu0 %3023
        %3026 = vset.pattern.permute.xlu0 6
        %3027 = vperm.xlu0 %3026, %v1927
        %v3028 = vpop.permute.xlu0 %3027
        %3030 = vset.pattern.permute.xlu0 6
        %3031 = vperm.xlu0 %3030, %v1929
        %v3032 = vpop.permute.xlu0 %3031
        %v3034 = vsel %vm2954, %v2972, 0.0
        %v3035 = vsel %vm2955, %v2976, 0.0
        %v3036 = vsel %vm2956, %v2980, 0.0
        %v3037 = vsel %vm2957, %v2984, 0.0
        %v3038 = vsel %vm2958, %v2988, 0.0
        %v3039 = vsel %vm2959, %v2992, 0.0
        %v3040 = vsel %vm2960, %v2996, 0.0
        %v3041 = vsel %vm2961, %v3000, 0.0
        %v3042 = vsel %vm2962, %v3004, 0.0
        %v3043 = vsel %vm2963, %v3008, 0.0
        %v3044 = vsel %vm2964, %v3012, 0.0
        %v3045 = vsel %vm2965, %v3016, 0.0
        %v3046 = vsel %vm2966, %v3020, 0.0
        %v3047 = vsel %vm2967, %v3024, 0.0
        %v3048 = vsel %vm2968, %v3028, 0.0
        %v3049 = vsel %vm2969, %v3032, 0.0
        %v3050 = vadd.f32 %v2890, %v3034
        %v3051 = vadd.f32 %v2891, %v3035
        %v3052 = vadd.f32 %v2892, %v3036
        %v3053 = vadd.f32 %v2893, %v3037
        %v3054 = vadd.f32 %v2894, %v3038
        %v3055 = vadd.f32 %v2895, %v3039
        %v3056 = vadd.f32 %v2896, %v3040
        %v3057 = vadd.f32 %v2897, %v3041
        %v3058 = vadd.f32 %v2898, %v3042
        %v3059 = vadd.f32 %v2899, %v3043
        %v3060 = vadd.f32 %v2900, %v3044
        %v3061 = vadd.f32 %v2901, %v3045
        %v3062 = vadd.f32 %v2902, %v3046
        %v3063 = vadd.f32 %v2903, %v3047
        %v3064 = vadd.f32 %v2904, %v3048
        %v3065 = vadd.f32 %v2905, %v3049
        %3066 = vset.pattern.permute.xlu0 7
        %3067 = vperm.xlu0 %3066, %v1689
        %v3068 = vpop.permute.xlu0 %3067
        %3069 = vset.pattern.permute.xlu0 7
        %3070 = vperm.xlu0 %3069, %v1690
        %v3071 = vpop.permute.xlu0 %3070
        %3072 = vset.pattern.permute.xlu0 7
        %3073 = vperm.xlu0 %3072, %v1691
        %v3074 = vpop.permute.xlu0 %3073
        %3075 = vset.pattern.permute.xlu0 7
        %3076 = vperm.xlu0 %3075, %v1692
        %v3077 = vpop.permute.xlu0 %3076
        %3078 = vset.pattern.permute.xlu0 7
        %3079 = vperm.xlu0 %3078, %v1693
        %v3080 = vpop.permute.xlu0 %3079
        %3081 = vset.pattern.permute.xlu0 7
        %3082 = vperm.xlu0 %3081, %v1694
        %v3083 = vpop.permute.xlu0 %3082
        %3084 = vset.pattern.permute.xlu0 7
        %3085 = vperm.xlu0 %3084, %v1695
        %v3086 = vpop.permute.xlu0 %3085
        %3087 = vset.pattern.permute.xlu0 7
        %3088 = vperm.xlu0 %3087, %v1696
        %v3089 = vpop.permute.xlu0 %3088
        %3090 = vset.pattern.permute.xlu0 7
        %3091 = vperm.xlu0 %3090, %v1697
        %v3092 = vpop.permute.xlu0 %3091
        %3093 = vset.pattern.permute.xlu0 7
        %3094 = vperm.xlu0 %3093, %v1698
        %v3095 = vpop.permute.xlu0 %3094
        %3096 = vset.pattern.permute.xlu0 7
        %3097 = vperm.xlu0 %3096, %v1699
        %v3098 = vpop.permute.xlu0 %3097
        %3099 = vset.pattern.permute.xlu0 7
        %3100 = vperm.xlu0 %3099, %v1700
        %v3101 = vpop.permute.xlu0 %3100
        %3102 = vset.pattern.permute.xlu0 7
        %3103 = vperm.xlu0 %3102, %v1701
        %v3104 = vpop.permute.xlu0 %3103
        %3105 = vset.pattern.permute.xlu0 7
        %3106 = vperm.xlu0 %3105, %v1702
        %v3107 = vpop.permute.xlu0 %3106
        %3108 = vset.pattern.permute.xlu0 7
        %3109 = vperm.xlu0 %3108, %v1703
        %v3110 = vpop.permute.xlu0 %3109
        %3111 = vset.pattern.permute.xlu0 7
        %3112 = vperm.xlu0 %3111, %v1704
        %v3113 = vpop.permute.xlu0 %3112
        %vm3114 = vcmp.eq.s32.totalorder %v501, %v3068
        %vm3115 = vcmp.eq.s32.totalorder %v501, %v3071
        %vm3116 = vcmp.eq.s32.totalorder %v501, %v3074
        %vm3117 = vcmp.eq.s32.totalorder %v501, %v3077
        %vm3118 = vcmp.eq.s32.totalorder %v501, %v3080
        %vm3119 = vcmp.eq.s32.totalorder %v501, %v3083
        %vm3120 = vcmp.eq.s32.totalorder %v501, %v3086
        %vm3121 = vcmp.eq.s32.totalorder %v501, %v3089
        %vm3122 = vcmp.eq.s32.totalorder %v501, %v3092
        %vm3123 = vcmp.eq.s32.totalorder %v501, %v3095
        %vm3124 = vcmp.eq.s32.totalorder %v501, %v3098
        %vm3125 = vcmp.eq.s32.totalorder %v501, %v3101
        %vm3126 = vcmp.eq.s32.totalorder %v501, %v3104
        %vm3127 = vcmp.eq.s32.totalorder %v501, %v3107
        %vm3128 = vcmp.eq.s32.totalorder %v501, %v3110
        %vm3129 = vcmp.eq.s32.totalorder %v501, %v3113
        %3130 = vset.pattern.permute.xlu0 7
        %3131 = vperm.xlu0 %3130, %v1899
        %v3132 = vpop.permute.xlu0 %3131
        %3134 = vset.pattern.permute.xlu0 7
        %3135 = vperm.xlu0 %3134, %v1901
        %v3136 = vpop.permute.xlu0 %3135
        %3138 = vset.pattern.permute.xlu0 7
        %3139 = vperm.xlu0 %3138, %v1903
        %v3140 = vpop.permute.xlu0 %3139
        %3142 = vset.pattern.permute.xlu0 7
        %3143 = vperm.xlu0 %3142, %v1905
        %v3144 = vpop.permute.xlu0 %3143
        %3146 = vset.pattern.permute.xlu0 7
        %3147 = vperm.xlu0 %3146, %v1907
        %v3148 = vpop.permute.xlu0 %3147
        %3150 = vset.pattern.permute.xlu0 7
        %3151 = vperm.xlu0 %3150, %v1909
        %v3152 = vpop.permute.xlu0 %3151
        %3154 = vset.pattern.permute.xlu0 7
        %3155 = vperm.xlu0 %3154, %v1911
        %v3156 = vpop.permute.xlu0 %3155
        %3158 = vset.pattern.permute.xlu0 7
        %3159 = vperm.xlu0 %3158, %v1913
        %v3160 = vpop.permute.xlu0 %3159
        %3162 = vset.pattern.permute.xlu0 7
        %3163 = vperm.xlu0 %3162, %v1915
        %v3164 = vpop.permute.xlu0 %3163
        %3166 = vset.pattern.permute.xlu0 7
        %3167 = vperm.xlu0 %3166, %v1917
        %v3168 = vpop.permute.xlu0 %3167
        %3170 = vset.pattern.permute.xlu0 7
        %3171 = vperm.xlu0 %3170, %v1919
        %v3172 = vpop.permute.xlu0 %3171
        %3174 = vset.pattern.permute.xlu0 7
        %3175 = vperm.xlu0 %3174, %v1921
        %v3176 = vpop.permute.xlu0 %3175
        %3178 = vset.pattern.permute.xlu0 7
        %3179 = vperm.xlu0 %3178, %v1923
        %v3180 = vpop.permute.xlu0 %3179
        %3182 = vset.pattern.permute.xlu0 7
        %3183 = vperm.xlu0 %3182, %v1925
        %v3184 = vpop.permute.xlu0 %3183
        %3186 = vset.pattern.permute.xlu0 7
        %3187 = vperm.xlu0 %3186, %v1927
        %v3188 = vpop.permute.xlu0 %3187
        %3190 = vset.pattern.permute.xlu0 7
        %3191 = vperm.xlu0 %3190, %v1929
        %v3192 = vpop.permute.xlu0 %3191
        %v3194 = vsel %vm3114, %v3132, 0.0
        %v3195 = vsel %vm3115, %v3136, 0.0
        %v3196 = vsel %vm3116, %v3140, 0.0
        %v3197 = vsel %vm3117, %v3144, 0.0
        %v3198 = vsel %vm3118, %v3148, 0.0
        %v3199 = vsel %vm3119, %v3152, 0.0
        %v3200 = vsel %vm3120, %v3156, 0.0
        %v3201 = vsel %vm3121, %v3160, 0.0
        %v3202 = vsel %vm3122, %v3164, 0.0
        %v3203 = vsel %vm3123, %v3168, 0.0
        %v3204 = vsel %vm3124, %v3172, 0.0
        %v3205 = vsel %vm3125, %v3176, 0.0
        %v3206 = vsel %vm3126, %v3180, 0.0
        %v3207 = vsel %vm3127, %v3184, 0.0
        %v3208 = vsel %vm3128, %v3188, 0.0
        %v3209 = vsel %vm3129, %v3192, 0.0
        %v3210 = vadd.f32 %v3050, %v3194
        %v3211 = vadd.f32 %v3051, %v3195
        %v3212 = vadd.f32 %v3052, %v3196
        %v3213 = vadd.f32 %v3053, %v3197
        %v3214 = vadd.f32 %v3054, %v3198
        %v3215 = vadd.f32 %v3055, %v3199
        %v3216 = vadd.f32 %v3056, %v3200
        %v3217 = vadd.f32 %v3057, %v3201
        %v3218 = vadd.f32 %v3058, %v3202
        %v3219 = vadd.f32 %v3059, %v3203
        %v3220 = vadd.f32 %v3060, %v3204
        %v3221 = vadd.f32 %v3061, %v3205
        %v3222 = vadd.f32 %v3062, %v3206
        %v3223 = vadd.f32 %v3063, %v3207
        %v3224 = vadd.f32 %v3064, %v3208
        %v3225 = vadd.f32 %v3065, %v3209
        %v3226 = vld [vmem:[%s7] sm:$0xff]
        %v3227 = vld [vmem:[%s7 + $0x8] sm:$0xff]
        %vm3228 = vcmask 130048
        %v3230 = vsel %vm3228, %v3210, 0
        %v3233 = vsel %vm3228, %v3211, 0
        %v3236 = vsel %vm3228, %v3212, 0
        %v3239 = vsel %vm3228, %v3213, 0
        %v3242 = vsel %vm3228, %v3214, 0
        %v3245 = vsel %vm3228, %v3215, 0
        %v3248 = vsel %vm3228, %v3216, 0
        %v3251 = vsel %vm3228, %v3217, 0
        %v3254 = vsel %vm3228, %v3218, 0
        %v3257 = vsel %vm3228, %v3219, 0
        %v3260 = vsel %vm3228, %v3220, 0
        %v3263 = vsel %vm3228, %v3221, 0
        %v3266 = vsel %vm3228, %v3222, 0
        %v3269 = vsel %vm3228, %v3223, 0
        %v3272 = vsel %vm3228, %v3224, 0
        %v3275 = vsel %vm3228, %v3225, 0
        %3277 = vmatprep.subr.mxu0 0.0
        %3278 = vmatpush1.msra.mxu0 0.0
        %3279 = vmatprep.subr.mxu0 0.0
        %3280 = vmatpush1.msra.mxu0 0.0
        %3281 = vmatprep.subr.mxu0 0.0
        %3282 = vmatpush1.msra.mxu0 0.0
        %3283 = vmatprep.subr.mxu0 0.0
        %3284 = vmatpush1.msra.mxu0 0.0
        %3285 = vmatprep.subr.mxu0 0.0
        %3286 = vmatpush1.msra.mxu0 0.0
        %3287 = vmatprep.subr.mxu0 0.0
        %3288 = vmatpush1.msra.mxu0 0.0
        %3289 = vmatprep.subr.mxu0 0.0
        %3290 = vmatpush1.msra.mxu0 0.0
        %3291 = vmatprep.subr.mxu0 0.0
        %3292 = vmatpush1.msra.mxu0 0.0
        %3293 = vmatprep.subr.mxu0 0.0
        %3294 = vmatpush1.msra.mxu0 0.0
        %3295 = vmatprep.subr.mxu0 0.0
        %3296 = vmatpush1.msra.mxu0 0.0
        %3297 = vmatprep.subr.mxu0 0.0
        %3298 = vmatpush1.msra.mxu0 0.0
        %3299 = vmatprep.subr.mxu0 0.0
        %3300 = vmatpush1.msra.mxu0 0.0
        %3301 = vmatprep.subr.mxu0 0.0
        %3302 = vmatpush1.msra.mxu0 0.0
        %3303 = vmatprep.subr.mxu0 0.0
        %3304 = vmatpush1.msra.mxu0 0.0
        %3305 = vmatprep.subr.mxu0 0.0
        %3306 = vmatpush1.msra.mxu0 %v3227
        %3307 = vmatprep.subr.mxu0 0.0
        %3308 = vmatpush1.msra.mxu0 %v3226
        %3309 = vmatprep.subr.mxu0 0.0
        %3310 = vmatpush2.msra.mxu0 0.0
        %3311 = vmatprep.subr.mxu0 0.0
        %3312 = vmatpush2.msra.mxu0 0.0
        %3313 = vmatprep.subr.mxu0 0.0
        %3314 = vmatpush2.msra.mxu0 0.0
        %3315 = vmatprep.subr.mxu0 0.0
        %3316 = vmatpush2.msra.mxu0 0.0
        %3317 = vmatprep.subr.mxu0 0.0
        %3318 = vmatpush2.msra.mxu0 0.0
        %3319 = vmatprep.subr.mxu0 0.0
        %3320 = vmatpush2.msra.mxu0 0.0
        %3321 = vmatprep.subr.mxu0 0.0
        %3322 = vmatpush2.msra.mxu0 0.0
        %3323 = vmatprep.subr.mxu0 0.0
        %3324 = vmatpush2.msra.mxu0 0.0
        %3325 = vmatprep.subr.mxu0 0.0
        %3326 = vmatpush2.msra.mxu0 0.0
        %3327 = vmatprep.subr.mxu0 0.0
        %3328 = vmatpush2.msra.mxu0 0.0
        %3329 = vmatprep.subr.mxu0 0.0
        %3330 = vmatpush2.msra.mxu0 0.0
        %3331 = vmatprep.subr.mxu0 0.0
        %3332 = vmatpush2.msra.mxu0 0.0
        %3333 = vmatprep.subr.mxu0 0.0
        %3334 = vmatpush2.msra.mxu0 0.0
        %3335 = vmatprep.subr.mxu0 0.0
        %3336 = vmatpush2.msra.mxu0 0.0
        %3337 = vmatprep.subr.mxu0 0.0
        %3338 = vmatpush2.msra.mxu0 0.0
        %3339 = vmatprep.subr.mxu0 0.0
        %3340 = vmatpush2.msra.mxu0 0.0
        %3341 = vmatprep.mubr.f32.mxu0 0.0
        %3342 = vmatmul.mubr.f32.gmra.mxu0 %v3230
        %v3343 = vpop.f32.mrf.mxu0
        %v3344 = vadd.f32 0.0, %v3343
        %v3345 = vpop.f32.mrf.mxu0
        %3346 = vmatprep.mubr.f32.mxu0 0.0
        %3347 = vmatmul.mubr.f32.gmra.mxu0 %v3233
        %v3348 = vpop.f32.mrf.mxu0
        %v3349 = vadd.f32 0.0, %v3348
        %v3350 = vpop.f32.mrf.mxu0
        %3351 = vmatprep.mubr.f32.mxu0 0.0
        %3352 = vmatmul.mubr.f32.gmra.mxu0 %v3236
        %v3353 = vpop.f32.mrf.mxu0
        %v3354 = vadd.f32 0.0, %v3353
        %v3355 = vpop.f32.mrf.mxu0
        %3356 = vmatprep.mubr.f32.mxu0 0.0
        %3357 = vmatmul.mubr.f32.gmra.mxu0 %v3239
        %v3358 = vpop.f32.mrf.mxu0
        %v3359 = vadd.f32 0.0, %v3358
        %v3360 = vpop.f32.mrf.mxu0
        %3361 = vmatprep.mubr.f32.mxu0 0.0
        %3362 = vmatmul.mubr.f32.gmra.mxu0 %v3242
        %v3363 = vpop.f32.mrf.mxu0
        %v3364 = vadd.f32 0.0, %v3363
        %v3365 = vpop.f32.mrf.mxu0
        %3366 = vmatprep.mubr.f32.mxu0 0.0
        %3367 = vmatmul.mubr.f32.gmra.mxu0 %v3245
        %v3368 = vpop.f32.mrf.mxu0
        %v3369 = vadd.f32 0.0, %v3368
        %v3370 = vpop.f32.mrf.mxu0
        %3371 = vmatprep.mubr.f32.mxu0 0.0
        %3372 = vmatmul.mubr.f32.gmra.mxu0 %v3248
        %v3373 = vpop.f32.mrf.mxu0
        %v3374 = vadd.f32 0.0, %v3373
        %v3375 = vpop.f32.mrf.mxu0
        %3376 = vmatprep.mubr.f32.mxu0 0.0
        %3377 = vmatmul.mubr.f32.gmra.mxu0 %v3251
        %v3378 = vpop.f32.mrf.mxu0
        %v3379 = vadd.f32 0.0, %v3378
        %v3380 = vpop.f32.mrf.mxu0
        %3381 = vmatprep.mubr.f32.mxu0 0.0
        %3382 = vmatmul.mubr.f32.gmra.mxu0 %v3254
        %v3383 = vpop.f32.mrf.mxu0
        %v3384 = vadd.f32 0.0, %v3383
        %v3385 = vpop.f32.mrf.mxu0
        %3386 = vmatprep.mubr.f32.mxu0 0.0
        %3387 = vmatmul.mubr.f32.gmra.mxu0 %v3257
        %v3388 = vpop.f32.mrf.mxu0
        %v3389 = vadd.f32 0.0, %v3388
        %v3390 = vpop.f32.mrf.mxu0
        %3391 = vmatprep.mubr.f32.mxu0 0.0
        %3392 = vmatmul.mubr.f32.gmra.mxu0 %v3260
        %v3393 = vpop.f32.mrf.mxu0
        %v3394 = vadd.f32 0.0, %v3393
        %v3395 = vpop.f32.mrf.mxu0
        %3396 = vmatprep.mubr.f32.mxu0 0.0
        %3397 = vmatmul.mubr.f32.gmra.mxu0 %v3263
        %v3398 = vpop.f32.mrf.mxu0
        %v3399 = vadd.f32 0.0, %v3398
        %v3400 = vpop.f32.mrf.mxu0
        %3401 = vmatprep.mubr.f32.mxu0 0.0
        %3402 = vmatmul.mubr.f32.gmra.mxu0 %v3266
        %v3403 = vpop.f32.mrf.mxu0
        %v3404 = vadd.f32 0.0, %v3403
        %v3405 = vpop.f32.mrf.mxu0
        %3406 = vmatprep.mubr.f32.mxu0 0.0
        %3407 = vmatmul.mubr.f32.gmra.mxu0 %v3269
        %v3408 = vpop.f32.mrf.mxu0
        %v3409 = vadd.f32 0.0, %v3408
        %v3410 = vpop.f32.mrf.mxu0
        %3411 = vmatprep.mubr.f32.mxu0 0.0
        %3412 = vmatmul.mubr.f32.gmra.mxu0 %v3272
        %v3413 = vpop.f32.mrf.mxu0
        %v3414 = vadd.f32 0.0, %v3413
        %v3415 = vpop.f32.mrf.mxu0
        %3416 = vmatprep.mubr.f32.mxu0 0.0
        %3417 = vmatmul.mubr.f32.gmra.mxu0 %v3275
        %v3418 = vpop.f32.mrf.mxu0
        %v3419 = vadd.f32 0.0, %v3418
        %v3420 = vpop.f32.mrf.mxu0
        %3421 = vdwg.mxu0
        %v3422 = vld [vmem:[%s9] sm:$0x1]
        %v3423 = vld [vmem:[%s10] sm:$0x1]
        %v3424 = vld [vmem:[%s469] sm:$0xff]
        %v3425 = vld [vmem:[%s469 + $0x8] sm:$0xff]
        %v3426 = vld [vmem:[%s469 + $0x10] sm:$0xff]
        %v3427 = vld [vmem:[%s469 + $0x18] sm:$0xff]
        %v3428 = vld [vmem:[%s469 + $0x20] sm:$0xff]
        %v3429 = vld [vmem:[%s469 + $0x28] sm:$0xff]
        %v3430 = vld [vmem:[%s469 + $0x30] sm:$0xff]
        %v3431 = vld [vmem:[%s469 + $0x38] sm:$0xff]
        %v3432 = vld [vmem:[%s469 + $0x40] sm:$0xff]
        %v3433 = vld [vmem:[%s469 + $0x48] sm:$0xff]
        %v3434 = vld [vmem:[%s469 + $0x50] sm:$0xff]
        %v3435 = vld [vmem:[%s469 + $0x58] sm:$0xff]
        %v3436 = vld [vmem:[%s469 + $0x60] sm:$0xff]
        %v3437 = vld [vmem:[%s469 + $0x68] sm:$0xff]
        %v3438 = vld [vmem:[%s469 + $0x70] sm:$0xff]
        %v3439 = vld [vmem:[%s469 + $0x78] sm:$0xff]
        %vm3440 = vcmp.lt.s32.totalorder %v3424, 1
        %v3441 = vsel %vm3440, %v3424, 1
        %vm3442 = vcmp.lt.s32.totalorder %v3425, 1
        %v3443 = vsel %vm3442, %v3425, 1
        %vm3444 = vcmp.lt.s32.totalorder %v3426, 1
        %v3445 = vsel %vm3444, %v3426, 1
        %vm3446 = vcmp.lt.s32.totalorder %v3427, 1
        %v3447 = vsel %vm3446, %v3427, 1
        %vm3448 = vcmp.lt.s32.totalorder %v3428, 1
        %v3449 = vsel %vm3448, %v3428, 1
        %vm3450 = vcmp.lt.s32.totalorder %v3429, 1
        %v3451 = vsel %vm3450, %v3429, 1
        %vm3452 = vcmp.lt.s32.totalorder %v3430, 1
        %v3453 = vsel %vm3452, %v3430, 1
        %vm3454 = vcmp.lt.s32.totalorder %v3431, 1
        %v3455 = vsel %vm3454, %v3431, 1
        %vm3456 = vcmp.lt.s32.totalorder %v3432, 1
        %v3457 = vsel %vm3456, %v3432, 1
        %vm3458 = vcmp.lt.s32.totalorder %v3433, 1
        %v3459 = vsel %vm3458, %v3433, 1
        %vm3460 = vcmp.lt.s32.totalorder %v3434, 1
        %v3461 = vsel %vm3460, %v3434, 1
        %vm3462 = vcmp.lt.s32.totalorder %v3435, 1
        %v3463 = vsel %vm3462, %v3435, 1
        %vm3464 = vcmp.lt.s32.totalorder %v3436, 1
        %v3465 = vsel %vm3464, %v3436, 1
        %vm3466 = vcmp.lt.s32.totalorder %v3437, 1
        %v3467 = vsel %vm3466, %v3437, 1
        %vm3468 = vcmp.lt.s32.totalorder %v3438, 1
        %v3469 = vsel %vm3468, %v3438, 1
        %vm3470 = vcmp.lt.s32.totalorder %v3439, 1
        %v3471 = vsel %vm3470, %v3439, 1
        %v3472 = vcvt.s32.f32 %v3441
        %v3473 = vcvt.s32.f32 %v3443
        %v3474 = vcvt.s32.f32 %v3445
        %v3475 = vcvt.s32.f32 %v3447
        %v3476 = vcvt.s32.f32 %v3449
        %v3477 = vcvt.s32.f32 %v3451
        %v3478 = vcvt.s32.f32 %v3453
        %v3479 = vcvt.s32.f32 %v3455
        %v3480 = vcvt.s32.f32 %v3457
        %v3481 = vcvt.s32.f32 %v3459
        %v3482 = vcvt.s32.f32 %v3461
        %v3483 = vcvt.s32.f32 %v3463
        %v3484 = vcvt.s32.f32 %v3465
        %v3485 = vcvt.s32.f32 %v3467
        %v3486 = vcvt.s32.f32 %v3469
        %v3487 = vcvt.s32.f32 %v3471
        %vm3488 = vcmp.lt.s32.totalorder %v1705, 1
        %v3489 = vsel %vm3488, %v1705, 1
        %vm3490 = vcmp.lt.s32.totalorder %v1706, 1
        %v3491 = vsel %vm3490, %v1706, 1
        %vm3492 = vcmp.lt.s32.totalorder %v1707, 1
        %v3493 = vsel %vm3492, %v1707, 1
        %vm3494 = vcmp.lt.s32.totalorder %v1708, 1
        %v3495 = vsel %vm3494, %v1708, 1
        %vm3496 = vcmp.lt.s32.totalorder %v1709, 1
        %v3497 = vsel %vm3496, %v1709, 1
        %vm3498 = vcmp.lt.s32.totalorder %v1710, 1
        %v3499 = vsel %vm3498, %v1710, 1
        %vm3500 = vcmp.lt.s32.totalorder %v1711, 1
        %v3501 = vsel %vm3500, %v1711, 1
        %vm3502 = vcmp.lt.s32.totalorder %v1712, 1
        %v3503 = vsel %vm3502, %v1712, 1
        %vm3504 = vcmp.lt.s32.totalorder %v1713, 1
        %v3505 = vsel %vm3504, %v1713, 1
        %vm3506 = vcmp.lt.s32.totalorder %v1714, 1
        %v3507 = vsel %vm3506, %v1714, 1
        %vm3508 = vcmp.lt.s32.totalorder %v1715, 1
        %v3509 = vsel %vm3508, %v1715, 1
        %vm3510 = vcmp.lt.s32.totalorder %v1716, 1
        %v3511 = vsel %vm3510, %v1716, 1
        %vm3512 = vcmp.lt.s32.totalorder %v1717, 1
        %v3513 = vsel %vm3512, %v1717, 1
        %vm3514 = vcmp.lt.s32.totalorder %v1718, 1
        %v3515 = vsel %vm3514, %v1718, 1
        %vm3516 = vcmp.lt.s32.totalorder %v1719, 1
        %v3517 = vsel %vm3516, %v1719, 1
        %vm3518 = vcmp.lt.s32.totalorder %v1720, 1
        %v3519 = vsel %vm3518, %v1720, 1
        %v3520 = vcvt.s32.f32 %v3489
        %v3521 = vcvt.s32.f32 %v3491
        %v3522 = vcvt.s32.f32 %v3493
        %v3523 = vcvt.s32.f32 %v3495
        %v3524 = vcvt.s32.f32 %v3497
        %v3525 = vcvt.s32.f32 %v3499
        %v3526 = vcvt.s32.f32 %v3501
        %v3527 = vcvt.s32.f32 %v3503
        %v3528 = vcvt.s32.f32 %v3505
        %v3529 = vcvt.s32.f32 %v3507
        %v3530 = vcvt.s32.f32 %v3509
        %v3531 = vcvt.s32.f32 %v3511
        %v3532 = vcvt.s32.f32 %v3513
        %v3533 = vcvt.s32.f32 %v3515
        %v3534 = vcvt.s32.f32 %v3517
        %v3535 = vcvt.s32.f32 %v3519
        %s3536 = sld [smem:[#allocation4]]
        %3538 = vset.pattern.permute.xlu0 0
        %3539 = vperm.xlu0 %3538, %v3472
        %v3540 = vpop.permute.xlu0 %3539
        %3543 = vset.pattern.permute.xlu0 0
        %3544 = vperm.xlu0 %3543, %v3473
        %v3545 = vpop.permute.xlu0 %3544
        %3548 = vset.pattern.permute.xlu0 0
        %3549 = vperm.xlu0 %3548, %v3474
        %v3550 = vpop.permute.xlu0 %3549
        %3553 = vset.pattern.permute.xlu0 0
        %3554 = vperm.xlu0 %3553, %v3475
        %v3555 = vpop.permute.xlu0 %3554
        %3558 = vset.pattern.permute.xlu0 0
        %3559 = vperm.xlu0 %3558, %v3476
        %v3560 = vpop.permute.xlu0 %3559
        %3563 = vset.pattern.permute.xlu0 0
        %3564 = vperm.xlu0 %3563, %v3477
        %v3565 = vpop.permute.xlu0 %3564
        %3568 = vset.pattern.permute.xlu0 0
        %3569 = vperm.xlu0 %3568, %v3478
        %v3570 = vpop.permute.xlu0 %3569
        %3573 = vset.pattern.permute.xlu0 0
        %3574 = vperm.xlu0 %3573, %v3479
        %v3575 = vpop.permute.xlu0 %3574
        %3578 = vset.pattern.permute.xlu0 0
        %3579 = vperm.xlu0 %3578, %v3480
        %v3580 = vpop.permute.xlu0 %3579
        %3583 = vset.pattern.permute.xlu0 0
        %3584 = vperm.xlu0 %3583, %v3481
        %v3585 = vpop.permute.xlu0 %3584
        %3588 = vset.pattern.permute.xlu0 0
        %3589 = vperm.xlu0 %3588, %v3482
        %v3590 = vpop.permute.xlu0 %3589
        %3593 = vset.pattern.permute.xlu0 0
        %3594 = vperm.xlu0 %3593, %v3483
        %v3595 = vpop.permute.xlu0 %3594
        %3598 = vset.pattern.permute.xlu0 0
        %3599 = vperm.xlu0 %3598, %v3484
        %v3600 = vpop.permute.xlu0 %3599
        %3603 = vset.pattern.permute.xlu0 0
        %3604 = vperm.xlu0 %3603, %v3485
        %v3605 = vpop.permute.xlu0 %3604
        %3608 = vset.pattern.permute.xlu0 0
        %3609 = vperm.xlu0 %3608, %v3486
        %v3610 = vpop.permute.xlu0 %3609
        %3613 = vset.pattern.permute.xlu0 0
        %3614 = vperm.xlu0 %3613, %v3487
        %v3615 = vpop.permute.xlu0 %3614
        %v3617 = vmul.f32 %v1627, %v3540
        %v3618 = vmul.f32 %v1630, %v3545
        %v3619 = vmul.f32 %v1635, %v3550
        %v3620 = vmul.f32 %v1638, %v3555
        %v3621 = vmul.f32 %v1643, %v3560
        %v3622 = vmul.f32 %v1646, %v3565
        %v3623 = vmul.f32 %v1651, %v3570
        %v3624 = vmul.f32 %v1654, %v3575
        %v3625 = vmul.f32 %v1659, %v3580
        %v3626 = vmul.f32 %v1662, %v3585
        %v3627 = vmul.f32 %v1667, %v3590
        %v3628 = vmul.f32 %v1670, %v3595
        %v3629 = vmul.f32 %v1675, %v3600
        %v3630 = vmul.f32 %v1678, %v3605
        %v3631 = vmul.f32 %v1683, %v3610
        %v3632 = vmul.f32 %v1686, %v3615
        %vm3633 = vcmask 261120
        %v3634 = vsel %vm3633, %v3617, 0.0
        %3635 = vadd.xlane.f32.xlu0 %v3634
        %v3636 = vpop.xlane.xlu0 %3635
        %v3637 = vsel %vm3633, %v3618, 0.0
        %3638 = vadd.xlane.f32.xlu0 %v3637
        %v3639 = vpop.xlane.xlu0 %3638
        %v3640 = vsel %vm3633, %v3619, 0.0
        %3641 = vadd.xlane.f32.xlu0 %v3640
        %v3642 = vpop.xlane.xlu0 %3641
        %v3643 = vsel %vm3633, %v3620, 0.0
        %3644 = vadd.xlane.f32.xlu0 %v3643
        %v3645 = vpop.xlane.xlu0 %3644
        %v3646 = vsel %vm3633, %v3621, 0.0
        %3647 = vadd.xlane.f32.xlu0 %v3646
        %v3648 = vpop.xlane.xlu0 %3647
        %v3649 = vsel %vm3633, %v3622, 0.0
        %3650 = vadd.xlane.f32.xlu0 %v3649
        %v3651 = vpop.xlane.xlu0 %3650
        %v3652 = vsel %vm3633, %v3623, 0.0
        %3653 = vadd.xlane.f32.xlu0 %v3652
        %v3654 = vpop.xlane.xlu0 %3653
        %v3655 = vsel %vm3633, %v3624, 0.0
        %3656 = vadd.xlane.f32.xlu0 %v3655
        %v3657 = vpop.xlane.xlu0 %3656
        %v3658 = vsel %vm3633, %v3625, 0.0
        %3659 = vadd.xlane.f32.xlu0 %v3658
        %v3660 = vpop.xlane.xlu0 %3659
        %v3661 = vsel %vm3633, %v3626, 0.0
        %3662 = vadd.xlane.f32.xlu0 %v3661
        %v3663 = vpop.xlane.xlu0 %3662
        %v3664 = vsel %vm3633, %v3627, 0.0
        %3665 = vadd.xlane.f32.xlu0 %v3664
        %v3666 = vpop.xlane.xlu0 %3665
        %v3667 = vsel %vm3633, %v3628, 0.0
        %3668 = vadd.xlane.f32.xlu0 %v3667
        %v3669 = vpop.xlane.xlu0 %3668
        %v3670 = vsel %vm3633, %v3629, 0.0
        %3671 = vadd.xlane.f32.xlu0 %v3670
        %v3672 = vpop.xlane.xlu0 %3671
        %v3673 = vsel %vm3633, %v3630, 0.0
        %3674 = vadd.xlane.f32.xlu0 %v3673
        %v3675 = vpop.xlane.xlu0 %3674
        %v3676 = vsel %vm3633, %v3631, 0.0
        %3677 = vadd.xlane.f32.xlu0 %v3676
        %v3678 = vpop.xlane.xlu0 %3677
        %v3679 = vsel %vm3633, %v3632, 0.0
        %3680 = vadd.xlane.f32.xlu0 %v3679
        %v3681 = vpop.xlane.xlu0 %3680
        %v3682 = vrcp.pop 32.0
        %v3683 = vmul.f32 %v3636, %v3682
        %v3684 = vmul.f32 %v3639, %v3682
        %v3685 = vmul.f32 %v3642, %v3682
        %v3686 = vmul.f32 %v3645, %v3682
        %v3687 = vmul.f32 %v3648, %v3682
        %v3688 = vmul.f32 %v3651, %v3682
        %v3689 = vmul.f32 %v3654, %v3682
        %v3690 = vmul.f32 %v3657, %v3682
        %v3691 = vmul.f32 %v3660, %v3682
        %v3692 = vmul.f32 %v3663, %v3682
        %v3693 = vmul.f32 %v3666, %v3682
        %v3694 = vmul.f32 %v3669, %v3682
        %v3695 = vmul.f32 %v3672, %v3682
        %v3696 = vmul.f32 %v3675, %v3682
        %v3697 = vmul.f32 %v3678, %v3682
        %v3698 = vmul.f32 %v3681, %v3682
        %v3699 = vsub.f32 %v3617, %v3683
        %v3700 = vsub.f32 %v3618, %v3684
        %v3701 = vsub.f32 %v3619, %v3685
        %v3702 = vsub.f32 %v3620, %v3686
        %v3703 = vsub.f32 %v3621, %v3687
        %v3704 = vsub.f32 %v3622, %v3688
        %v3705 = vsub.f32 %v3623, %v3689
        %v3706 = vsub.f32 %v3624, %v3690
        %v3707 = vsub.f32 %v3625, %v3691
        %v3708 = vsub.f32 %v3626, %v3692
        %v3709 = vsub.f32 %v3627, %v3693
        %v3710 = vsub.f32 %v3628, %v3694
        %v3711 = vsub.f32 %v3629, %v3695
        %v3712 = vsub.f32 %v3630, %v3696
        %v3713 = vsub.f32 %v3631, %v3697
        %v3714 = vsub.f32 %v3632, %v3698
        %v3715 = vmul.f32 %v3699, %v3699
        %v3716 = vmul.f32 %v3700, %v3700
        %v3717 = vmul.f32 %v3701, %v3701
        %v3718 = vmul.f32 %v3702, %v3702
        %v3719 = vmul.f32 %v3703, %v3703
        %v3720 = vmul.f32 %v3704, %v3704
        %v3721 = vmul.f32 %v3705, %v3705
        %v3722 = vmul.f32 %v3706, %v3706
        %v3723 = vmul.f32 %v3707, %v3707
        %v3724 = vmul.f32 %v3708, %v3708
        %v3725 = vmul.f32 %v3709, %v3709
        %v3726 = vmul.f32 %v3710, %v3710
        %v3727 = vmul.f32 %v3711, %v3711
        %v3728 = vmul.f32 %v3712, %v3712
        %v3729 = vmul.f32 %v3713, %v3713
        %v3730 = vmul.f32 %v3714, %v3714
        %v3731 = vsel %vm3633, %v3715, 0.0
        %3732 = vadd.xlane.f32.xlu0 %v3731
        %v3733 = vpop.xlane.xlu0 %3732
        %v3734 = vsel %vm3633, %v3716, 0.0
        %3735 = vadd.xlane.f32.xlu0 %v3734
        %v3736 = vpop.xlane.xlu0 %3735
        %v3737 = vsel %vm3633, %v3717, 0.0
        %3738 = vadd.xlane.f32.xlu0 %v3737
        %v3739 = vpop.xlane.xlu0 %3738
        %v3740 = vsel %vm3633, %v3718, 0.0
        %3741 = vadd.xlane.f32.xlu0 %v3740
        %v3742 = vpop.xlane.xlu0 %3741
        %v3743 = vsel %vm3633, %v3719, 0.0
        %3744 = vadd.xlane.f32.xlu0 %v3743
        %v3745 = vpop.xlane.xlu0 %3744
        %v3746 = vsel %vm3633, %v3720, 0.0
        %3747 = vadd.xlane.f32.xlu0 %v3746
        %v3748 = vpop.xlane.xlu0 %3747
        %v3749 = vsel %vm3633, %v3721, 0.0
        %3750 = vadd.xlane.f32.xlu0 %v3749
        %v3751 = vpop.xlane.xlu0 %3750
        %v3752 = vsel %vm3633, %v3722, 0.0
        %3753 = vadd.xlane.f32.xlu0 %v3752
        %v3754 = vpop.xlane.xlu0 %3753
        %v3755 = vsel %vm3633, %v3723, 0.0
        %3756 = vadd.xlane.f32.xlu0 %v3755
        %v3757 = vpop.xlane.xlu0 %3756
        %v3758 = vsel %vm3633, %v3724, 0.0
        %3759 = vadd.xlane.f32.xlu0 %v3758
        %v3760 = vpop.xlane.xlu0 %3759
        %v3761 = vsel %vm3633, %v3725, 0.0
        %3762 = vadd.xlane.f32.xlu0 %v3761
        %v3763 = vpop.xlane.xlu0 %3762
        %v3764 = vsel %vm3633, %v3726, 0.0
        %3765 = vadd.xlane.f32.xlu0 %v3764
        %v3766 = vpop.xlane.xlu0 %3765
        %v3767 = vsel %vm3633, %v3727, 0.0
        %3768 = vadd.xlane.f32.xlu0 %v3767
        %v3769 = vpop.xlane.xlu0 %3768
        %v3770 = vsel %vm3633, %v3728, 0.0
        %3771 = vadd.xlane.f32.xlu0 %v3770
        %v3772 = vpop.xlane.xlu0 %3771
        %v3773 = vsel %vm3633, %v3729, 0.0
        %3774 = vadd.xlane.f32.xlu0 %v3773
        %v3775 = vpop.xlane.xlu0 %3774
        %v3776 = vsel %vm3633, %v3730, 0.0
        %3777 = vadd.xlane.f32.xlu0 %v3776
        %v3778 = vpop.xlane.xlu0 %3777
        %v3779 = vmul.f32 %v3733, %v3682
        %v3780 = vmul.f32 %v3736, %v3682
        %v3781 = vmul.f32 %v3739, %v3682
        %v3782 = vmul.f32 %v3742, %v3682
        %v3783 = vmul.f32 %v3745, %v3682
        %v3784 = vmul.f32 %v3748, %v3682
        %v3785 = vmul.f32 %v3751, %v3682
        %v3786 = vmul.f32 %v3754, %v3682
        %v3787 = vmul.f32 %v3757, %v3682
        %v3788 = vmul.f32 %v3760, %v3682
        %v3789 = vmul.f32 %v3763, %v3682
        %v3790 = vmul.f32 %v3766, %v3682
        %v3791 = vmul.f32 %v3769, %v3682
        %v3792 = vmul.f32 %v3772, %v3682
        %v3793 = vmul.f32 %v3775, %v3682
        %v3794 = vmul.f32 %v3778, %v3682
        %v3795 = vadd.f32 %v3779, 1e-05
        %v3796 = vadd.f32 %v3780, 1e-05
        %v3797 = vadd.f32 %v3781, 1e-05
        %v3798 = vadd.f32 %v3782, 1e-05
        %v3799 = vadd.f32 %v3783, 1e-05
        %v3800 = vadd.f32 %v3784, 1e-05
        %v3801 = vadd.f32 %v3785, 1e-05
        %v3802 = vadd.f32 %v3786, 1e-05
        %v3803 = vadd.f32 %v3787, 1e-05
        %v3804 = vadd.f32 %v3788, 1e-05
        %v3805 = vadd.f32 %v3789, 1e-05
        %v3806 = vadd.f32 %v3790, 1e-05
        %v3807 = vadd.f32 %v3791, 1e-05
        %v3808 = vadd.f32 %v3792, 1e-05
        %v3809 = vadd.f32 %v3793, 1e-05
        %v3810 = vadd.f32 %v3794, 1e-05
        %v3811 = vrsqrt.pop %v3795
        %v3812 = vrsqrt.pop %v3796
        %v3813 = vrsqrt.pop %v3797
        %v3814 = vrsqrt.pop %v3798
        %v3815 = vrsqrt.pop %v3799
        %v3816 = vrsqrt.pop %v3800
        %v3817 = vrsqrt.pop %v3801
        %v3818 = vrsqrt.pop %v3802
        %v3819 = vrsqrt.pop %v3803
        %v3820 = vrsqrt.pop %v3804
        %v3821 = vrsqrt.pop %v3805
        %v3822 = vrsqrt.pop %v3806
        %v3823 = vrsqrt.pop %v3807
        %v3824 = vrsqrt.pop %v3808
        %v3825 = vrsqrt.pop %v3809
        %v3826 = vrsqrt.pop %v3810
        %v3827 = vmul.f32 %v3699, %v3811
        %v3828 = vmul.f32 %v3700, %v3812
        %v3829 = vmul.f32 %v3701, %v3813
        %v3830 = vmul.f32 %v3702, %v3814
        %v3831 = vmul.f32 %v3703, %v3815
        %v3832 = vmul.f32 %v3704, %v3816
        %v3833 = vmul.f32 %v3705, %v3817
        %v3834 = vmul.f32 %v3706, %v3818
        %v3835 = vmul.f32 %v3707, %v3819
        %v3836 = vmul.f32 %v3708, %v3820
        %v3837 = vmul.f32 %v3709, %v3821
        %v3838 = vmul.f32 %v3710, %v3822
        %v3839 = vmul.f32 %v3711, %v3823
        %v3840 = vmul.f32 %v3712, %v3824
        %v3841 = vmul.f32 %v3713, %v3825
        %v3842 = vmul.f32 %v3714, %v3826
        %v3844 = vlaneseq
        %v3845 = vshrl.u32 %v3844, 7
        %v3846 = vsub.s32 0, %v3845
        %v3847 = vrot.slane %v3422, %v3846
        %v3849 = vmul.f32 %v3827, %v3847
        %v3850 = vmul.f32 %v3828, %v3847
        %v3851 = vmul.f32 %v3829, %v3847
        %v3852 = vmul.f32 %v3830, %v3847
        %v3853 = vmul.f32 %v3831, %v3847
        %v3854 = vmul.f32 %v3832, %v3847
        %v3855 = vmul.f32 %v3833, %v3847
        %v3856 = vmul.f32 %v3834, %v3847
        %v3857 = vmul.f32 %v3835, %v3847
        %v3858 = vmul.f32 %v3836, %v3847
        %v3859 = vmul.f32 %v3837, %v3847
        %v3860 = vmul.f32 %v3838, %v3847
        %v3861 = vmul.f32 %v3839, %v3847
        %v3862 = vmul.f32 %v3840, %v3847
        %v3863 = vmul.f32 %v3841, %v3847
        %v3864 = vmul.f32 %v3842, %v3847
        %v3866 = vlaneseq
        %v3867 = vshrl.u32 %v3866, 7
        %v3868 = vsub.s32 0, %v3867
        %v3869 = vrot.slane %v3423, %v3868
        %v3871 = vadd.f32 %v3849, %v3869
        %v3872 = vadd.f32 %v3850, %v3869
        %v3873 = vadd.f32 %v3851, %v3869
        %v3874 = vadd.f32 %v3852, %v3869
        %v3875 = vadd.f32 %v3853, %v3869
        %v3876 = vadd.f32 %v3854, %v3869
        %v3877 = vadd.f32 %v3855, %v3869
        %v3878 = vadd.f32 %v3856, %v3869
        %v3879 = vadd.f32 %v3857, %v3869
        %v3880 = vadd.f32 %v3858, %v3869
        %v3881 = vadd.f32 %v3859, %v3869
        %v3882 = vadd.f32 %v3860, %v3869
        %v3883 = vadd.f32 %v3861, %v3869
        %v3884 = vadd.f32 %v3862, %v3869
        %v3885 = vadd.f32 %v3863, %v3869
        %v3886 = vadd.f32 %v3864, %v3869
        %v3887 = vstv %s3536
        %v3888 = vmul.f32 %v3887, %v3871
        %v3889 = vmul.f32 %v3887, %v3872
        %v3890 = vmul.f32 %v3887, %v3873
        %v3891 = vmul.f32 %v3887, %v3874
        %v3892 = vmul.f32 %v3887, %v3875
        %v3893 = vmul.f32 %v3887, %v3876
        %v3894 = vmul.f32 %v3887, %v3877
        %v3895 = vmul.f32 %v3887, %v3878
        %v3896 = vmul.f32 %v3887, %v3879
        %v3897 = vmul.f32 %v3887, %v3880
        %v3898 = vmul.f32 %v3887, %v3881
        %v3899 = vmul.f32 %v3887, %v3882
        %v3900 = vmul.f32 %v3887, %v3883
        %v3901 = vmul.f32 %v3887, %v3884
        %v3902 = vmul.f32 %v3887, %v3885
        %v3903 = vmul.f32 %v3887, %v3886
        %s3904 = sld [smem:[#allocation4 + $0x1]]
        %3906 = vset.pattern.permute.xlu0 0
        %3907 = vperm.xlu0 %3906, %v3520
        %v3908 = vpop.permute.xlu0 %3907
        %3911 = vset.pattern.permute.xlu0 0
        %3912 = vperm.xlu0 %3911, %v3521
        %v3913 = vpop.permute.xlu0 %3912
        %3916 = vset.pattern.permute.xlu0 0
        %3917 = vperm.xlu0 %3916, %v3522
        %v3918 = vpop.permute.xlu0 %3917
        %3921 = vset.pattern.permute.xlu0 0
        %3922 = vperm.xlu0 %3921, %v3523
        %v3923 = vpop.permute.xlu0 %3922
        %3926 = vset.pattern.permute.xlu0 0
        %3927 = vperm.xlu0 %3926, %v3524
        %v3928 = vpop.permute.xlu0 %3927
        %3931 = vset.pattern.permute.xlu0 0
        %3932 = vperm.xlu0 %3931, %v3525
        %v3933 = vpop.permute.xlu0 %3932
        %3936 = vset.pattern.permute.xlu0 0
        %3937 = vperm.xlu0 %3936, %v3526
        %v3938 = vpop.permute.xlu0 %3937
        %3941 = vset.pattern.permute.xlu0 0
        %3942 = vperm.xlu0 %3941, %v3527
        %v3943 = vpop.permute.xlu0 %3942
        %3946 = vset.pattern.permute.xlu0 0
        %3947 = vperm.xlu0 %3946, %v3528
        %v3948 = vpop.permute.xlu0 %3947
        %3951 = vset.pattern.permute.xlu0 0
        %3952 = vperm.xlu0 %3951, %v3529
        %v3953 = vpop.permute.xlu0 %3952
        %3956 = vset.pattern.permute.xlu0 0
        %3957 = vperm.xlu0 %3956, %v3530
        %v3958 = vpop.permute.xlu0 %3957
        %3961 = vset.pattern.permute.xlu0 0
        %3962 = vperm.xlu0 %3961, %v3531
        %v3963 = vpop.permute.xlu0 %3962
        %3966 = vset.pattern.permute.xlu0 0
        %3967 = vperm.xlu0 %3966, %v3532
        %v3968 = vpop.permute.xlu0 %3967
        %3971 = vset.pattern.permute.xlu0 0
        %3972 = vperm.xlu0 %3971, %v3533
        %v3973 = vpop.permute.xlu0 %3972
        %3976 = vset.pattern.permute.xlu0 0
        %3977 = vperm.xlu0 %3976, %v3534
        %v3978 = vpop.permute.xlu0 %3977
        %3981 = vset.pattern.permute.xlu0 0
        %3982 = vperm.xlu0 %3981, %v3535
        %v3983 = vpop.permute.xlu0 %3982
        %v3985 = vmul.f32 %v3344, %v3908
        %v3986 = vmul.f32 %v3349, %v3913
        %v3987 = vmul.f32 %v3354, %v3918
        %v3988 = vmul.f32 %v3359, %v3923
        %v3989 = vmul.f32 %v3364, %v3928
        %v3990 = vmul.f32 %v3369, %v3933
        %v3991 = vmul.f32 %v3374, %v3938
        %v3992 = vmul.f32 %v3379, %v3943
        %v3993 = vmul.f32 %v3384, %v3948
        %v3994 = vmul.f32 %v3389, %v3953
        %v3995 = vmul.f32 %v3394, %v3958
        %v3996 = vmul.f32 %v3399, %v3963
        %v3997 = vmul.f32 %v3404, %v3968
        %v3998 = vmul.f32 %v3409, %v3973
        %v3999 = vmul.f32 %v3414, %v3978
        %v4000 = vmul.f32 %v3419, %v3983
        %v4001 = vsel %vm3633, %v3985, 0.0
        %4002 = vadd.xlane.f32.xlu0 %v4001
        %v4003 = vpop.xlane.xlu0 %4002
        %v4004 = vsel %vm3633, %v3986, 0.0
        %4005 = vadd.xlane.f32.xlu0 %v4004
        %v4006 = vpop.xlane.xlu0 %4005
        %v4007 = vsel %vm3633, %v3987, 0.0
        %4008 = vadd.xlane.f32.xlu0 %v4007
        %v4009 = vpop.xlane.xlu0 %4008
        %v4010 = vsel %vm3633, %v3988, 0.0
        %4011 = vadd.xlane.f32.xlu0 %v4010
        %v4012 = vpop.xlane.xlu0 %4011
        %v4013 = vsel %vm3633, %v3989, 0.0
        %4014 = vadd.xlane.f32.xlu0 %v4013
        %v4015 = vpop.xlane.xlu0 %4014
        %v4016 = vsel %vm3633, %v3990, 0.0
        %4017 = vadd.xlane.f32.xlu0 %v4016
        %v4018 = vpop.xlane.xlu0 %4017
        %v4019 = vsel %vm3633, %v3991, 0.0
        %4020 = vadd.xlane.f32.xlu0 %v4019
        %v4021 = vpop.xlane.xlu0 %4020
        %v4022 = vsel %vm3633, %v3992, 0.0
        %4023 = vadd.xlane.f32.xlu0 %v4022
        %v4024 = vpop.xlane.xlu0 %4023
        %v4025 = vsel %vm3633, %v3993, 0.0
        %4026 = vadd.xlane.f32.xlu0 %v4025
        %v4027 = vpop.xlane.xlu0 %4026
        %v4028 = vsel %vm3633, %v3994, 0.0
        %4029 = vadd.xlane.f32.xlu0 %v4028
        %v4030 = vpop.xlane.xlu0 %4029
        %v4031 = vsel %vm3633, %v3995, 0.0
        %4032 = vadd.xlane.f32.xlu0 %v4031
        %v4033 = vpop.xlane.xlu0 %4032
        %v4034 = vsel %vm3633, %v3996, 0.0
        %4035 = vadd.xlane.f32.xlu0 %v4034
        %v4036 = vpop.xlane.xlu0 %4035
        %v4037 = vsel %vm3633, %v3997, 0.0
        %4038 = vadd.xlane.f32.xlu0 %v4037
        %v4039 = vpop.xlane.xlu0 %4038
        %v4040 = vsel %vm3633, %v3998, 0.0
        %4041 = vadd.xlane.f32.xlu0 %v4040
        %v4042 = vpop.xlane.xlu0 %4041
        %v4043 = vsel %vm3633, %v3999, 0.0
        %4044 = vadd.xlane.f32.xlu0 %v4043
        %v4045 = vpop.xlane.xlu0 %4044
        %v4046 = vsel %vm3633, %v4000, 0.0
        %4047 = vadd.xlane.f32.xlu0 %v4046
        %v4048 = vpop.xlane.xlu0 %4047
        %v4049 = vmul.f32 %v4003, %v3682
        %v4050 = vmul.f32 %v4006, %v3682
        %v4051 = vmul.f32 %v4009, %v3682
        %v4052 = vmul.f32 %v4012, %v3682
        %v4053 = vmul.f32 %v4015, %v3682
        %v4054 = vmul.f32 %v4018, %v3682
        %v4055 = vmul.f32 %v4021, %v3682
        %v4056 = vmul.f32 %v4024, %v3682
        %v4057 = vmul.f32 %v4027, %v3682
        %v4058 = vmul.f32 %v4030, %v3682
        %v4059 = vmul.f32 %v4033, %v3682
        %v4060 = vmul.f32 %v4036, %v3682
        %v4061 = vmul.f32 %v4039, %v3682
        %v4062 = vmul.f32 %v4042, %v3682
        %v4063 = vmul.f32 %v4045, %v3682
        %v4064 = vmul.f32 %v4048, %v3682
        %v4065 = vsub.f32 %v3985, %v4049
        %v4066 = vsub.f32 %v3986, %v4050
        %v4067 = vsub.f32 %v3987, %v4051
        %v4068 = vsub.f32 %v3988, %v4052
        %v4069 = vsub.f32 %v3989, %v4053
        %v4070 = vsub.f32 %v3990, %v4054
        %v4071 = vsub.f32 %v3991, %v4055
        %v4072 = vsub.f32 %v3992, %v4056
        %v4073 = vsub.f32 %v3993, %v4057
        %v4074 = vsub.f32 %v3994, %v4058
        %v4075 = vsub.f32 %v3995, %v4059
        %v4076 = vsub.f32 %v3996, %v4060
        %v4077 = vsub.f32 %v3997, %v4061
        %v4078 = vsub.f32 %v3998, %v4062
        %v4079 = vsub.f32 %v3999, %v4063
        %v4080 = vsub.f32 %v4000, %v4064
        %v4081 = vmul.f32 %v4065, %v4065
        %v4082 = vmul.f32 %v4066, %v4066
        %v4083 = vmul.f32 %v4067, %v4067
        %v4084 = vmul.f32 %v4068, %v4068
        %v4085 = vmul.f32 %v4069, %v4069
        %v4086 = vmul.f32 %v4070, %v4070
        %v4087 = vmul.f32 %v4071, %v4071
        %v4088 = vmul.f32 %v4072, %v4072
        %v4089 = vmul.f32 %v4073, %v4073
        %v4090 = vmul.f32 %v4074, %v4074
        %v4091 = vmul.f32 %v4075, %v4075
        %v4092 = vmul.f32 %v4076, %v4076
        %v4093 = vmul.f32 %v4077, %v4077
        %v4094 = vmul.f32 %v4078, %v4078
        %v4095 = vmul.f32 %v4079, %v4079
        %v4096 = vmul.f32 %v4080, %v4080
        %v4097 = vsel %vm3633, %v4081, 0.0
        %4098 = vadd.xlane.f32.xlu0 %v4097
        %v4099 = vpop.xlane.xlu0 %4098
        %v4100 = vsel %vm3633, %v4082, 0.0
        %4101 = vadd.xlane.f32.xlu0 %v4100
        %v4102 = vpop.xlane.xlu0 %4101
        %v4103 = vsel %vm3633, %v4083, 0.0
        %4104 = vadd.xlane.f32.xlu0 %v4103
        %v4105 = vpop.xlane.xlu0 %4104
        %v4106 = vsel %vm3633, %v4084, 0.0
        %4107 = vadd.xlane.f32.xlu0 %v4106
        %v4108 = vpop.xlane.xlu0 %4107
        %v4109 = vsel %vm3633, %v4085, 0.0
        %4110 = vadd.xlane.f32.xlu0 %v4109
        %v4111 = vpop.xlane.xlu0 %4110
        %v4112 = vsel %vm3633, %v4086, 0.0
        %4113 = vadd.xlane.f32.xlu0 %v4112
        %v4114 = vpop.xlane.xlu0 %4113
        %v4115 = vsel %vm3633, %v4087, 0.0
        %4116 = vadd.xlane.f32.xlu0 %v4115
        %v4117 = vpop.xlane.xlu0 %4116
        %v4118 = vsel %vm3633, %v4088, 0.0
        %4119 = vadd.xlane.f32.xlu0 %v4118
        %v4120 = vpop.xlane.xlu0 %4119
        %v4121 = vsel %vm3633, %v4089, 0.0
        %4122 = vadd.xlane.f32.xlu0 %v4121
        %v4123 = vpop.xlane.xlu0 %4122
        %v4124 = vsel %vm3633, %v4090, 0.0
        %4125 = vadd.xlane.f32.xlu0 %v4124
        %v4126 = vpop.xlane.xlu0 %4125
        %v4127 = vsel %vm3633, %v4091, 0.0
        %4128 = vadd.xlane.f32.xlu0 %v4127
        %v4129 = vpop.xlane.xlu0 %4128
        %v4130 = vsel %vm3633, %v4092, 0.0
        %4131 = vadd.xlane.f32.xlu0 %v4130
        %v4132 = vpop.xlane.xlu0 %4131
        %v4133 = vsel %vm3633, %v4093, 0.0
        %4134 = vadd.xlane.f32.xlu0 %v4133
        %v4135 = vpop.xlane.xlu0 %4134
        %v4136 = vsel %vm3633, %v4094, 0.0
        %4137 = vadd.xlane.f32.xlu0 %v4136
        %v4138 = vpop.xlane.xlu0 %4137
        %v4139 = vsel %vm3633, %v4095, 0.0
        %4140 = vadd.xlane.f32.xlu0 %v4139
        %v4141 = vpop.xlane.xlu0 %4140
        %v4142 = vsel %vm3633, %v4096, 0.0
        %4143 = vadd.xlane.f32.xlu0 %v4142
        %v4144 = vpop.xlane.xlu0 %4143
        %v4145 = vmul.f32 %v4099, %v3682
        %v4146 = vmul.f32 %v4102, %v3682
        %v4147 = vmul.f32 %v4105, %v3682
        %v4148 = vmul.f32 %v4108, %v3682
        %v4149 = vmul.f32 %v4111, %v3682
        %v4150 = vmul.f32 %v4114, %v3682
        %v4151 = vmul.f32 %v4117, %v3682
        %v4152 = vmul.f32 %v4120, %v3682
        %v4153 = vmul.f32 %v4123, %v3682
        %v4154 = vmul.f32 %v4126, %v3682
        %v4155 = vmul.f32 %v4129, %v3682
        %v4156 = vmul.f32 %v4132, %v3682
        %v4157 = vmul.f32 %v4135, %v3682
        %v4158 = vmul.f32 %v4138, %v3682
        %v4159 = vmul.f32 %v4141, %v3682
        %v4160 = vmul.f32 %v4144, %v3682
        %v4161 = vadd.f32 %v4145, 1e-05
        %v4162 = vadd.f32 %v4146, 1e-05
        %v4163 = vadd.f32 %v4147, 1e-05
        %v4164 = vadd.f32 %v4148, 1e-05
        %v4165 = vadd.f32 %v4149, 1e-05
        %v4166 = vadd.f32 %v4150, 1e-05
        %v4167 = vadd.f32 %v4151, 1e-05
        %v4168 = vadd.f32 %v4152, 1e-05
        %v4169 = vadd.f32 %v4153, 1e-05
        %v4170 = vadd.f32 %v4154, 1e-05
        %v4171 = vadd.f32 %v4155, 1e-05
        %v4172 = vadd.f32 %v4156, 1e-05
        %v4173 = vadd.f32 %v4157, 1e-05
        %v4174 = vadd.f32 %v4158, 1e-05
        %v4175 = vadd.f32 %v4159, 1e-05
        %v4176 = vadd.f32 %v4160, 1e-05
        %v4177 = vrsqrt.pop %v4161
        %v4178 = vrsqrt.pop %v4162
        %v4179 = vrsqrt.pop %v4163
        %v4180 = vrsqrt.pop %v4164
        %v4181 = vrsqrt.pop %v4165
        %v4182 = vrsqrt.pop %v4166
        %v4183 = vrsqrt.pop %v4167
        %v4184 = vrsqrt.pop %v4168
        %v4185 = vrsqrt.pop %v4169
        %v4186 = vrsqrt.pop %v4170
        %v4187 = vrsqrt.pop %v4171
        %v4188 = vrsqrt.pop %v4172
        %v4189 = vrsqrt.pop %v4173
        %v4190 = vrsqrt.pop %v4174
        %v4191 = vrsqrt.pop %v4175
        %v4192 = vrsqrt.pop %v4176
        %v4193 = vmul.f32 %v4065, %v4177
        %v4194 = vmul.f32 %v4066, %v4178
        %v4195 = vmul.f32 %v4067, %v4179
        %v4196 = vmul.f32 %v4068, %v4180
        %v4197 = vmul.f32 %v4069, %v4181
        %v4198 = vmul.f32 %v4070, %v4182
        %v4199 = vmul.f32 %v4071, %v4183
        %v4200 = vmul.f32 %v4072, %v4184
        %v4201 = vmul.f32 %v4073, %v4185
        %v4202 = vmul.f32 %v4074, %v4186
        %v4203 = vmul.f32 %v4075, %v4187
        %v4204 = vmul.f32 %v4076, %v4188
        %v4205 = vmul.f32 %v4077, %v4189
        %v4206 = vmul.f32 %v4078, %v4190
        %v4207 = vmul.f32 %v4079, %v4191
        %v4208 = vmul.f32 %v4080, %v4192
        %v4209 = vmul.f32 %v4193, %v3847
        %v4210 = vmul.f32 %v4194, %v3847
        %v4211 = vmul.f32 %v4195, %v3847
        %v4212 = vmul.f32 %v4196, %v3847
        %v4213 = vmul.f32 %v4197, %v3847
        %v4214 = vmul.f32 %v4198, %v3847
        %v4215 = vmul.f32 %v4199, %v3847
        %v4216 = vmul.f32 %v4200, %v3847
        %v4217 = vmul.f32 %v4201, %v3847
        %v4218 = vmul.f32 %v4202, %v3847
        %v4219 = vmul.f32 %v4203, %v3847
        %v4220 = vmul.f32 %v4204, %v3847
        %v4221 = vmul.f32 %v4205, %v3847
        %v4222 = vmul.f32 %v4206, %v3847
        %v4223 = vmul.f32 %v4207, %v3847
        %v4224 = vmul.f32 %v4208, %v3847
        %v4225 = vadd.f32 %v4209, %v3869
        %v4226 = vadd.f32 %v4210, %v3869
        %v4227 = vadd.f32 %v4211, %v3869
        %v4228 = vadd.f32 %v4212, %v3869
        %v4229 = vadd.f32 %v4213, %v3869
        %v4230 = vadd.f32 %v4214, %v3869
        %v4231 = vadd.f32 %v4215, %v3869
        %v4232 = vadd.f32 %v4216, %v3869
        %v4233 = vadd.f32 %v4217, %v3869
        %v4234 = vadd.f32 %v4218, %v3869
        %v4235 = vadd.f32 %v4219, %v3869
        %v4236 = vadd.f32 %v4220, %v3869
        %v4237 = vadd.f32 %v4221, %v3869
        %v4238 = vadd.f32 %v4222, %v3869
        %v4239 = vadd.f32 %v4223, %v3869
        %v4240 = vadd.f32 %v4224, %v3869
        %v4241 = vstv %s3904
        %v4242 = vmul.f32 %v4241, %v4225
        %v4243 = vmul.f32 %v4241, %v4226
        %v4244 = vmul.f32 %v4241, %v4227
        %v4245 = vmul.f32 %v4241, %v4228
        %v4246 = vmul.f32 %v4241, %v4229
        %v4247 = vmul.f32 %v4241, %v4230
        %v4248 = vmul.f32 %v4241, %v4231
        %v4249 = vmul.f32 %v4241, %v4232
        %v4250 = vmul.f32 %v4241, %v4233
        %v4251 = vmul.f32 %v4241, %v4234
        %v4252 = vmul.f32 %v4241, %v4235
        %v4253 = vmul.f32 %v4241, %v4236
        %v4254 = vmul.f32 %v4241, %v4237
        %v4255 = vmul.f32 %v4241, %v4238
        %v4256 = vmul.f32 %v4241, %v4239
        %v4257 = vmul.f32 %v4241, %v4240
        %v4258 = vadd.f32 %v3888, %v4242
        %v4259 = vadd.f32 %v3889, %v4243
        %v4260 = vadd.f32 %v3890, %v4244
        %v4261 = vadd.f32 %v3891, %v4245
        %v4262 = vadd.f32 %v3892, %v4246
        %v4263 = vadd.f32 %v3893, %v4247
        %v4264 = vadd.f32 %v3894, %v4248
        %v4265 = vadd.f32 %v3895, %v4249
        %v4266 = vadd.f32 %v3896, %v4250
        %v4267 = vadd.f32 %v3897, %v4251
        %v4268 = vadd.f32 %v3898, %v4252
        %v4269 = vadd.f32 %v3899, %v4253
        %v4270 = vadd.f32 %v3900, %v4254
        %v4271 = vadd.f32 %v3901, %v4255
        %v4272 = vadd.f32 %v3902, %v4256
        %v4273 = vadd.f32 %v3903, %v4257
        %v4274 = vmul.f32 %v4258, %v4258
        %v4275 = vmul.f32 %v4259, %v4259
        %v4276 = vmul.f32 %v4260, %v4260
        %v4277 = vmul.f32 %v4261, %v4261
        %v4278 = vmul.f32 %v4262, %v4262
        %v4279 = vmul.f32 %v4263, %v4263
        %v4280 = vmul.f32 %v4264, %v4264
        %v4281 = vmul.f32 %v4265, %v4265
        %v4282 = vmul.f32 %v4266, %v4266
        %v4283 = vmul.f32 %v4267, %v4267
        %v4284 = vmul.f32 %v4268, %v4268
        %v4285 = vmul.f32 %v4269, %v4269
        %v4286 = vmul.f32 %v4270, %v4270
        %v4287 = vmul.f32 %v4271, %v4271
        %v4288 = vmul.f32 %v4272, %v4272
        %v4289 = vmul.f32 %v4273, %v4273
        %v4290 = vsel %vm3633, %v4274, 0.0
        %4291 = vadd.xlane.f32.xlu0 %v4290
        %v4292 = vpop.xlane.xlu0 %4291
        %v4293 = vsel %vm3633, %v4275, 0.0
        %4294 = vadd.xlane.f32.xlu0 %v4293
        %v4295 = vpop.xlane.xlu0 %4294
        %v4296 = vsel %vm3633, %v4276, 0.0
        %4297 = vadd.xlane.f32.xlu0 %v4296
        %v4298 = vpop.xlane.xlu0 %4297
        %v4299 = vsel %vm3633, %v4277, 0.0
        %4300 = vadd.xlane.f32.xlu0 %v4299
        %v4301 = vpop.xlane.xlu0 %4300
        %v4302 = vsel %vm3633, %v4278, 0.0
        %4303 = vadd.xlane.f32.xlu0 %v4302
        %v4304 = vpop.xlane.xlu0 %4303
        %v4305 = vsel %vm3633, %v4279, 0.0
        %4306 = vadd.xlane.f32.xlu0 %v4305
        %v4307 = vpop.xlane.xlu0 %4306
        %v4308 = vsel %vm3633, %v4280, 0.0
        %4309 = vadd.xlane.f32.xlu0 %v4308
        %v4310 = vpop.xlane.xlu0 %4309
        %v4311 = vsel %vm3633, %v4281, 0.0
        %4312 = vadd.xlane.f32.xlu0 %v4311
        %v4313 = vpop.xlane.xlu0 %4312
        %v4314 = vsel %vm3633, %v4282, 0.0
        %4315 = vadd.xlane.f32.xlu0 %v4314
        %v4316 = vpop.xlane.xlu0 %4315
        %v4317 = vsel %vm3633, %v4283, 0.0
        %4318 = vadd.xlane.f32.xlu0 %v4317
        %v4319 = vpop.xlane.xlu0 %4318
        %v4320 = vsel %vm3633, %v4284, 0.0
        %4321 = vadd.xlane.f32.xlu0 %v4320
        %v4322 = vpop.xlane.xlu0 %4321
        %v4323 = vsel %vm3633, %v4285, 0.0
        %4324 = vadd.xlane.f32.xlu0 %v4323
        %v4325 = vpop.xlane.xlu0 %4324
        %v4326 = vsel %vm3633, %v4286, 0.0
        %4327 = vadd.xlane.f32.xlu0 %v4326
        %v4328 = vpop.xlane.xlu0 %4327
        %v4329 = vsel %vm3633, %v4287, 0.0
        %4330 = vadd.xlane.f32.xlu0 %v4329
        %v4331 = vpop.xlane.xlu0 %4330
        %v4332 = vsel %vm3633, %v4288, 0.0
        %4333 = vadd.xlane.f32.xlu0 %v4332
        %v4334 = vpop.xlane.xlu0 %4333
        %v4335 = vsel %vm3633, %v4289, 0.0
        %4336 = vadd.xlane.f32.xlu0 %v4335
        %v4337 = vpop.xlane.xlu0 %4336
        %v4338 = vmax.f32 %v4292, 1e-24
        %v4339 = vmax.f32 %v4295, 1e-24
        %v4340 = vmax.f32 %v4298, 1e-24
        %v4341 = vmax.f32 %v4301, 1e-24
        %v4342 = vmax.f32 %v4304, 1e-24
        %v4343 = vmax.f32 %v4307, 1e-24
        %v4344 = vmax.f32 %v4310, 1e-24
        %v4345 = vmax.f32 %v4313, 1e-24
        %v4346 = vmax.f32 %v4316, 1e-24
        %v4347 = vmax.f32 %v4319, 1e-24
        %v4348 = vmax.f32 %v4322, 1e-24
        %v4349 = vmax.f32 %v4325, 1e-24
        %v4350 = vmax.f32 %v4328, 1e-24
        %v4351 = vmax.f32 %v4331, 1e-24
        %v4352 = vmax.f32 %v4334, 1e-24
        %v4353 = vmax.f32 %v4337, 1e-24
        %v4354 = vrsqrt.pop %v4338
        %v4355 = vrsqrt.pop %v4339
        %v4356 = vrsqrt.pop %v4340
        %v4357 = vrsqrt.pop %v4341
        %v4358 = vrsqrt.pop %v4342
        %v4359 = vrsqrt.pop %v4343
        %v4360 = vrsqrt.pop %v4344
        %v4361 = vrsqrt.pop %v4345
        %v4362 = vrsqrt.pop %v4346
        %v4363 = vrsqrt.pop %v4347
        %v4364 = vrsqrt.pop %v4348
        %v4365 = vrsqrt.pop %v4349
        %v4366 = vrsqrt.pop %v4350
        %v4367 = vrsqrt.pop %v4351
        %v4368 = vrsqrt.pop %v4352
        %v4369 = vrsqrt.pop %v4353
        %v4370 = vmul.f32 %v4258, %v4354
        %v4371 = vmul.f32 %v4259, %v4355
        %v4372 = vmul.f32 %v4260, %v4356
        %v4373 = vmul.f32 %v4261, %v4357
        %v4374 = vmul.f32 %v4262, %v4358
        %v4375 = vmul.f32 %v4263, %v4359
        %v4376 = vmul.f32 %v4264, %v4360
        %v4377 = vmul.f32 %v4265, %v4361
        %v4378 = vmul.f32 %v4266, %v4362
        %v4379 = vmul.f32 %v4267, %v4363
        %v4380 = vmul.f32 %v4268, %v4364
        %v4381 = vmul.f32 %v4269, %v4365
        %v4382 = vmul.f32 %v4270, %v4366
        %v4383 = vmul.f32 %v4271, %v4367
        %v4384 = vmul.f32 %v4272, %v4368
        %v4385 = vmul.f32 %v4273, %v4369
        %4386 = vst.msk [vmem:[%s481] sm:$0xff] %vm3633, %v4370
        %4387 = vst.msk [vmem:[%s481 + $0x8] sm:$0xff] %vm3633, %v4371
        %4388 = vst.msk [vmem:[%s481 + $0x10] sm:$0xff] %vm3633, %v4372
        %4389 = vst.msk [vmem:[%s481 + $0x18] sm:$0xff] %vm3633, %v4373
        %4390 = vst.msk [vmem:[%s481 + $0x20] sm:$0xff] %vm3633, %v4374
        %4391 = vst.msk [vmem:[%s481 + $0x28] sm:$0xff] %vm3633, %v4375
        %4392 = vst.msk [vmem:[%s481 + $0x30] sm:$0xff] %vm3633, %v4376
        %4393 = vst.msk [vmem:[%s481 + $0x38] sm:$0xff] %vm3633, %v4377
        %4394 = vst.msk [vmem:[%s481 + $0x40] sm:$0xff] %vm3633, %v4378
        %4395 = vst.msk [vmem:[%s481 + $0x48] sm:$0xff] %vm3633, %v4379
        %4396 = vst.msk [vmem:[%s481 + $0x50] sm:$0xff] %vm3633, %v4380
        %4397 = vst.msk [vmem:[%s481 + $0x58] sm:$0xff] %vm3633, %v4381
        %4398 = vst.msk [vmem:[%s481 + $0x60] sm:$0xff] %vm3633, %v4382
        %4399 = vst.msk [vmem:[%s481 + $0x68] sm:$0xff] %vm3633, %v4383
        %4400 = vst.msk [vmem:[%s481 + $0x70] sm:$0xff] %vm3633, %v4384
        %4401 = vst.msk [vmem:[%s481 + $0x78] sm:$0xff] %vm3633, %v4385
        %s4402 = smul.u32 16, %s24
        %p4403 = scmp.lt.s32.totalorder %s4402, 31
        %s4404 = scalar_select %p4403, %s4402, 31
        %s4405 = smul.addr %s4404, 8
        %s4406 = scalar_lea.vmem %s11, %s4405
        // Predicated region
        $region73: #{blocker_net_forward.1} parent=63 // pred_check
          %p4407 = pneg %p293
        $region74: #{blocker_net_forward.1} parent=63 // pred_check_branch
          %4409 = sbr.rel (%p4407) target = $region76
        $region75: #{blocker_net_forward.1} parent=63 // pred_region
          %s4410 = smul.u32 16, %s24
        $region76: #{blocker_net_forward.1} parent=63 // pred_fallthru
          _
      $region64: #{blocker_net_forward.1} parent=5 // pred_fallthru
        _
      %p4411 = scmp.le.s32.totalorder 2, %s19
      // Predicated region
      $region77: #{blocker_net_forward.1} parent=5 // pred_check
        %p4412 = pneg %p4411
      $region78: #{blocker_net_forward.1} parent=5 // pred_check_branch
        %4414 = sbr.rel (%p4412) target = $region80
      $region79: #{blocker_net_forward.1} parent=5 // pred_region
        %s4415 = ssub.s32 %s19, 2
        // Predicated region
        $region81: #{blocker_net_forward.1} parent=79 // pred_check
          %p4416 = pneg %p299
        $region82: #{blocker_net_forward.1} parent=79 // pred_check_branch
          %4418 = sbr.rel (%p4416) target = $region84
        $region83: #{blocker_net_forward.1} parent=79 // pred_region
          %s4419 = smul.u32 16, %s25
          %p4420 = scmp.lt.s32.totalorder %s4419, 31
          %s4421 = scalar_select %p4420, %s4419, 31
          %s4422 = smul.addr %s4421, 8
          %s4423 = scalar_lea.vmem %s11, %s4422
        $region84: #{blocker_net_forward.1} parent=79 // pred_fallthru
          _
      $region80: #{blocker_net_forward.1} parent=5 // pred_fallthru
        _
    $region6: #{blocker_net_forward.1} parent=1 // loop_footer
      %s23 = sadd.s32 1, %s19
    $region7: #{blocker_net_forward.1} parent=1 // loop_footer_branch
      %18 = sbr.rel target = $region3
    $region8: #{blocker_net_forward.1} parent=1 // loop_exit
      _
    %4424 = vsyncpa [#allocation3], 1
    %s4425 = scalar_lea.sflag [#allocation3], 1
    %4426 = vsyncpa %s4425, 1
    %4427 = vsyncpa [#allocation5], 1

</llo_original>
